<compile_context>
chip_gen: v6e
topology: v6e:2x2x1
jax: 0.10.0
libtpu: 0.0.40
codegen_flags: <defaults>
</compile_context>

<pallas_src>
import math

import jax
import jax.numpy as jnp
from jax.experimental import pallas as pl
from jax.experimental.pallas import tpu as pltpu  # noqa: F401  (TPU backend assumed)

NEG_SLOPE = 0.01  # torch F.leaky_relu_ default / GATConv negative_slope=0.01


# ------------------------------------------------------------ math helpers ----

def _leaky(x):
    return jnp.where(x > 0, x, NEG_SLOPE * x)


def _elu(x):
    # overflow-safe ELU(alpha=1): exp only evaluated on non-positive values
    return jnp.where(x > 0, x, jnp.exp(jnp.minimum(x, 0.0)) - 1.0)


def _masked_softmax(alpha, adj):
    # segment softmax over incoming edges (axis=1 = sources) per destination row
    amax = jnp.max(jnp.where(adj > 0, alpha, -1e30), axis=1, keepdims=True)
    p = jnp.where(adj > 0, jnp.exp(alpha - amax), 0.0)
    denom = jnp.sum(p, axis=1, keepdims=True) + 1e-16
    return p * pl.reciprocal(denom, approx=True)


def _edge2dconv(x, adj, ea, w1x, w1e, att_l, att_r, w2, bias):
    # Edge2dConv.forward (aggr='add'); softmax over incoming edges per destination.
    N, H = x.shape
    # lin1(cat([x_j, edge_attr])) split into per-source and per-edge terms.
    s = jnp.dot(x, w1x, preferred_element_type=jnp.float32)       # [N, H]   (source j)
    e = jnp.dot(ea, w1e, preferred_element_type=jnp.float32)      # [N*N, H] (edge i<-j)
    m = _leaky(s[None, :, :] + e.reshape(N, N, H))                # [N(dst), N(src), H]
    alpha_j = jnp.sum(m * att_l[None, :, :], axis=-1)             # [N, N]
    alpha_i = jnp.sum(x * att_r, axis=-1, keepdims=True)          # [N, 1]   (destination)
    w_att = _masked_softmax(_leaky(alpha_j + alpha_i), adj)       # [N, N]
    # aggregate-then-project (linearity): one [N,H]x[H,H] matmul instead of [N*N,H]x[H,H]
    agg = jnp.sum(m * w_att[:, :, None], axis=1)                  # [N, H]
    return jnp.dot(agg, w2, preferred_element_type=jnp.float32) + bias


def _gatconv(x, adj, w, att_src, att_dst, bias):
    # GATConv(heads=1, concat=True, add_self_loops=False, negative_slope=0.01)
    xl = jnp.dot(x, w, preferred_element_type=jnp.float32)                      # [N, H]
    a_dst = jnp.dot(xl, att_dst, preferred_element_type=jnp.float32)            # [N, 1]
    a_src = jax.lax.dot_general(att_src, xl, (((1,), (1,)), ((), ())),
                                preferred_element_type=jnp.float32)             # [1, N]
    w_att = _masked_softmax(_leaky(a_dst + a_src), adj)                          # [N, N]
    return jnp.dot(w_att, xl, preferred_element_type=jnp.float32) + bias


def _gru_relu(h_in, x, wih, whh, bih, bhh):
    # x_new = GRUCell(h_in, x).relu()   (gates stacked r|z|n along lanes)
    H = x.shape[1]
    gi = jnp.dot(h_in, wih, preferred_element_type=jnp.float32) + bih   # [N, 3H]
    gh = jnp.dot(x,    whh, preferred_element_type=jnp.float32) + bhh   # [N, 3H]
    r = jax.nn.sigmoid(gi[:, 0:H] + gh[:, 0:H])
    z = jax.nn.sigmoid(gi[:, H:2 * H] + gh[:, H:2 * H])
    n = jnp.tanh(gi[:, 2 * H:3 * H] + r * gh[:, 2 * H:3 * H])
    return jnp.maximum((1.0 - z) * n + z * x, 0.0)


def _layernorm(x):
    # F.layer_norm(x, (H,)) -- no affine params, eps=1e-5
    mu = jnp.mean(x, axis=-1, keepdims=True)
    xc = x - mu
    var = jnp.mean(xc * xc, axis=-1, keepdims=True)
    return xc * jax.lax.rsqrt(var + 1e-5)


# --------------------------------------------------------------- fused kernel ----

def _make_fused_kernel(depth):
    def kernel(*refs):
        x_ref, adj_ref, ea_ref = refs[0], refs[1], refs[2]
        o_ref = refs[-1]
        it = iter(r[...] for r in refs[3:-1])   # weights, consumed in input order

        adj = adj_ref[...]
        # x = leaky_relu(lin_enter(x))
        x = _leaky(jnp.dot(x_ref[...], next(it),
                           preferred_element_type=jnp.float32) + next(it))
        # layer 0: Edge2dConv -> ELU -> (dropout=identity) -> GRU -> ReLU
        h = _elu(_edge2dconv(x, adj, ea_ref[...],
                             next(it), next(it), next(it),
                             next(it), next(it), next(it)))
        x = _gru_relu(h, x, next(it), next(it), next(it), next(it))
        # layers 1..depth-1: GATConv -> ELU -> GRU -> ReLU
        for _ in range(depth - 1):
            h = _elu(_gatconv(x, adj, next(it), next(it), next(it), next(it)))
            x = _gru_relu(h, x, next(it), next(it), next(it), next(it))
        # final layer norm
        o_ref[...] = _layernorm(x)

    return kernel


def _vmem_spec(shape):
    nd = len(shape)
    # full-array block, no grid -> index_map takes no grid args
    return pl.BlockSpec(shape, lambda *_, _nd=nd: (0,) * _nd)


# ------------------------------------------------------------------- wrapper ----

def init_params(key, f_in, h, e, depth):
    keys = iter(jax.random.split(key, 64))

    def glorot(shape):
        lim = math.sqrt(6.0 / (shape[0] + shape[-1]))
        return jax.random.uniform(next(keys), shape, jnp.float32, -lim, lim)

    def uni(shape, lim):
        return jax.random.uniform(next(keys), shape, jnp.float32, -lim, lim)

    p = {
        "lin_enter_w": glorot((f_in, h)),
        "lin_enter_b": uni((1, h), 1.0 / math.sqrt(f_in)),
        # Edge2dConv
        "e2d_w1x": glorot((h, h)),
        "e2d_w1e": glorot((e, h)),
        "e2d_att_l": glorot((1, h)),
        "e2d_att_r": glorot((1, h)),
        "e2d_w2": glorot((h, h)),
        "e2d_bias": jnp.zeros((1, h), jnp.float32),
        "gat": [],
        "gru": [],
    }
    for _ in range(depth - 1):
        p["gat"].append({
            "w": glorot((h, h)),
            "att_src": glorot((1, h)),
            "att_dst": glorot((h, 1)),
            "bias": jnp.zeros((1, h), jnp.float32),
        })
    lim = 1.0 / math.sqrt(h)
    for _ in range(depth):
        # gates stacked along output axis: columns [0:h]=r, [h:2h]=z, [2h:3h]=n
        p["gru"].append({
            "wih": uni((h, 3 * h), lim),
            "whh": uni((h, 3 * h), lim),
            "bih": uni((1, 3 * h), lim),
            "bhh": uni((1, 3 * h), lim),
        })
    return p


def encoder2d_forward(params, x, adj, ea_flat):
    N, f_in = x.shape
    H = params["lin_enter_w"].shape[1]
    E = ea_flat.shape[1]
    depth = len(params["gru"])

    inputs = [x, adj, ea_flat,
              params["lin_enter_w"], params["lin_enter_b"],
              params["e2d_w1x"], params["e2d_w1e"], params["e2d_att_l"],
              params["e2d_att_r"], params["e2d_w2"], params["e2d_bias"]]
    g0 = params["gru"][0]
    inputs += [g0["wih"], g0["whh"], g0["bih"], g0["bhh"]]
    for gp, g in zip(params["gat"], params["gru"][1:]):
        inputs += [gp["w"], gp["att_src"], gp["att_dst"], gp["bias"],
                   g["wih"], g["whh"], g["bih"], g["bhh"]]

    # advisory cost estimate for XLA's scheduler around the fused custom call
    flops = 2 * N * f_in * H                                                   # lin_enter
    flops += 2 * (N * H * H + N * N * E * H + N * H * H) + 12 * N * N * H      # Edge2dConv
    flops += (depth - 1) * (2 * (N * H * H + N * N * H) + 8 * N * N)           # GATConvs
    flops += depth * (2 * 2 * N * H * 3 * H + 24 * N * H)                      # GRUCells
    transcendentals = depth * (N * N + 5 * N * H) + N
    bytes_accessed = 4 * (sum(int(a.size) for a in inputs) + N * H)

    return pl.pallas_call(
        _make_fused_kernel(depth),
        out_shape=jax.ShapeDtypeStruct((N, H), jnp.float32),
        in_specs=[_vmem_spec(a.shape) for a in inputs],
        out_specs=_vmem_spec((N, H)),
        cost_estimate=pl.CostEstimate(flops=flops,
                                      transcendentals=transcendentals,
                                      bytes_accessed=bytes_accessed),
    )(*inputs)


if __name__ == "__main__":
    N, F_IN, HID, E_DIM, DEPTH = 16, 6, 32, 8, 2
    key = jax.random.PRNGKey(0)
    k_x, k_adj, k_ea, k_p = jax.random.split(key, 4)

    x = jax.random.normal(k_x, (N, F_IN), jnp.float32)
    # dense adjacency mask: adj[dest, src]
    adj = (jax.random.uniform(k_adj, (N, N)) < 0.35).astype(jnp.float32)
    edge_attr_dense = jax.random.normal(k_ea, (N, N, E_DIM), jnp.float32)
    ea_flat = edge_attr_dense.reshape(N * N, E_DIM)

    params = init_params(k_p, F_IN, HID, E_DIM, DEPTH)

    fwd = jax.jit(encoder2d_forward)
    out = jax.block_until_ready(fwd(params, x, adj, ea_flat))

    assert out.shape == (N, HID), out.shape
    assert bool(jnp.all(jnp.isfinite(out)))
    print("KERNEL_OK")
</pallas_src>

<mosaic_0001>
module attributes {stable_mosaic.version = 11 : i64} {
  func.func @kernel(%arg0: memref<16x6xf32, #tpu.memory_space<vmem>>, %arg1: memref<16x16xf32, #tpu.memory_space<vmem>>, %arg2: memref<256x8xf32, #tpu.memory_space<vmem>>, %arg3: memref<6x32xf32, #tpu.memory_space<vmem>>, %arg4: memref<1x32xf32, #tpu.memory_space<vmem>>, %arg5: memref<32x32xf32, #tpu.memory_space<vmem>>, %arg6: memref<8x32xf32, #tpu.memory_space<vmem>>, %arg7: memref<1x32xf32, #tpu.memory_space<vmem>>, %arg8: memref<1x32xf32, #tpu.memory_space<vmem>>, %arg9: memref<32x32xf32, #tpu.memory_space<vmem>>, %arg10: memref<1x32xf32, #tpu.memory_space<vmem>>, %arg11: memref<32x96xf32, #tpu.memory_space<vmem>>, %arg12: memref<32x96xf32, #tpu.memory_space<vmem>>, %arg13: memref<1x96xf32, #tpu.memory_space<vmem>>, %arg14: memref<1x96xf32, #tpu.memory_space<vmem>>, %arg15: memref<32x32xf32, #tpu.memory_space<vmem>>, %arg16: memref<1x32xf32, #tpu.memory_space<vmem>>, %arg17: memref<32x1xf32, #tpu.memory_space<vmem>>, %arg18: memref<1x32xf32, #tpu.memory_space<vmem>>, %arg19: memref<32x96xf32, #tpu.memory_space<vmem>>, %arg20: memref<32x96xf32, #tpu.memory_space<vmem>>, %arg21: memref<1x96xf32, #tpu.memory_space<vmem>>, %arg22: memref<1x96xf32, #tpu.memory_space<vmem>>, %arg23: memref<16x32xf32, #tpu.memory_space<vmem>>) attributes {dimension_semantics = [], scalar_prefetch = 0 : i64, scratch_operands = 0 : i64, tpu.core_type = #tpu.core_type<tc>} {
    %c0 = arith.constant 0 : index
    %c0_0 = arith.constant 0 : index
    %0 = vector.load %arg1[%c0, %c0_0] : memref<16x16xf32, #tpu.memory_space<vmem>>, vector<16x16xf32>
    %c0_1 = arith.constant 0 : index
    %c0_2 = arith.constant 0 : index
    %1 = vector.load %arg0[%c0_1, %c0_2] : memref<16x6xf32, #tpu.memory_space<vmem>>, vector<16x6xf32>
    %c0_3 = arith.constant 0 : index
    %c0_4 = arith.constant 0 : index
    %2 = vector.load %arg3[%c0_3, %c0_4] : memref<6x32xf32, #tpu.memory_space<vmem>>, vector<6x32xf32>
    %cst = arith.constant dense<0.000000e+00> : vector<16x32xf32>
    %3 = tpu.matmul %1, %2, %cst {dimension_numbers = #tpu.dot_dimension_numbers<[1], [0], [0], [1], [0, 0, 1, 1], [], []>} : vector<16x6xf32>, vector<6x32xf32>, vector<16x32xf32> -> vector<16x32xf32>
    %c0_5 = arith.constant 0 : index
    %c0_6 = arith.constant 0 : index
    %4 = vector.load %arg4[%c0_5, %c0_6] : memref<1x32xf32, #tpu.memory_space<vmem>>, vector<1x32xf32>
    %5 = vector.broadcast %4 : vector<1x32xf32> to vector<16x32xf32>
    %6 = arith.addf %3, %5 : vector<16x32xf32>
    %cst_7 = arith.constant 0.000000e+00 : f32
    %7 = vector.broadcast %cst_7 : f32 to vector<16x32xf32>
    %8 = arith.cmpf ogt, %6, %7 : vector<16x32xf32>
    %cst_8 = arith.constant 0.00999999977 : f32
    %9 = vector.broadcast %cst_8 : f32 to vector<16x32xf32>
    %10 = arith.mulf %9, %6 : vector<16x32xf32>
    %11 = arith.select %8, %6, %10 : vector<16x32xi1>, vector<16x32xf32>
    %c0_9 = arith.constant 0 : index
    %c0_10 = arith.constant 0 : index
    %12 = vector.load %arg2[%c0_9, %c0_10] : memref<256x8xf32, #tpu.memory_space<vmem>>, vector<256x8xf32>
    %c0_11 = arith.constant 0 : index
    %c0_12 = arith.constant 0 : index
    %13 = vector.load %arg5[%c0_11, %c0_12] : memref<32x32xf32, #tpu.memory_space<vmem>>, vector<32x32xf32>
    %c0_13 = arith.constant 0 : index
    %c0_14 = arith.constant 0 : index
    %14 = vector.load %arg6[%c0_13, %c0_14] : memref<8x32xf32, #tpu.memory_space<vmem>>, vector<8x32xf32>
    %c0_15 = arith.constant 0 : index
    %c0_16 = arith.constant 0 : index
    %15 = vector.load %arg7[%c0_15, %c0_16] : memref<1x32xf32, #tpu.memory_space<vmem>>, vector<1x32xf32>
    %c0_17 = arith.constant 0 : index
    %c0_18 = arith.constant 0 : index
    %16 = vector.load %arg8[%c0_17, %c0_18] : memref<1x32xf32, #tpu.memory_space<vmem>>, vector<1x32xf32>
    %c0_19 = arith.constant 0 : index
    %c0_20 = arith.constant 0 : index
    %17 = vector.load %arg9[%c0_19, %c0_20] : memref<32x32xf32, #tpu.memory_space<vmem>>, vector<32x32xf32>
    %c0_21 = arith.constant 0 : index
    %c0_22 = arith.constant 0 : index
    %18 = vector.load %arg10[%c0_21, %c0_22] : memref<1x32xf32, #tpu.memory_space<vmem>>, vector<1x32xf32>
    %cst_23 = arith.constant dense<0.000000e+00> : vector<16x32xf32>
    %19 = tpu.matmul %11, %13, %cst_23 {dimension_numbers = #tpu.dot_dimension_numbers<[1], [0], [0], [1], [0, 0, 1, 1], [], []>} : vector<16x32xf32>, vector<32x32xf32>, vector<16x32xf32> -> vector<16x32xf32>
    %cst_24 = arith.constant dense<0.000000e+00> : vector<256x32xf32>
    %20 = tpu.matmul %12, %14, %cst_24 {dimension_numbers = #tpu.dot_dimension_numbers<[1], [0], [0], [1], [0, 0, 1, 1], [], []>} : vector<256x8xf32>, vector<8x32xf32>, vector<256x32xf32> -> vector<256x32xf32>
    %21 = vector.shape_cast %19 : vector<16x32xf32> to vector<1x16x32xf32>
    %22 = vector.shape_cast %20 : vector<256x32xf32> to vector<16x16x32xf32>
    %23 = vector.broadcast %21 : vector<1x16x32xf32> to vector<16x16x32xf32>
    %24 = arith.addf %23, %22 : vector<16x16x32xf32>
    %cst_25 = arith.constant 0.000000e+00 : f32
    %25 = vector.broadcast %cst_25 : f32 to vector<16x16x32xf32>
    %26 = arith.cmpf ogt, %24, %25 : vector<16x16x32xf32>
    %cst_26 = arith.constant 0.00999999977 : f32
    %27 = vector.broadcast %cst_26 : f32 to vector<16x16x32xf32>
    %28 = arith.mulf %27, %24 : vector<16x16x32xf32>
    %29 = arith.select %26, %24, %28 : vector<16x16x32xi1>, vector<16x16x32xf32>
    %30 = vector.shape_cast %15 : vector<1x32xf32> to vector<1x1x32xf32>
    %31 = vector.broadcast %30 : vector<1x1x32xf32> to vector<16x16x32xf32>
    %32 = arith.mulf %29, %31 : vector<16x16x32xf32>
    %cst_27 = arith.constant dense<0.000000e+00> : vector<16x16xf32>
    %33 = vector.multi_reduction <add>, %32, %cst_27 [2] : vector<16x16x32xf32> to vector<16x16xf32>
    %34 = vector.broadcast %16 : vector<1x32xf32> to vector<16x32xf32>
    %35 = arith.mulf %11, %34 : vector<16x32xf32>
    %cst_28 = arith.constant dense<0.000000e+00> : vector<16xf32>
    %36 = vector.multi_reduction <add>, %35, %cst_28 [1] : vector<16x32xf32> to vector<16xf32>
    %37 = vector.shape_cast %36 : vector<16xf32> to vector<16x1xf32>
    %38 = vector.broadcast %37 : vector<16x1xf32> to vector<16x16xf32>
    %39 = arith.addf %33, %38 : vector<16x16xf32>
    %cst_29 = arith.constant 0.000000e+00 : f32
    %40 = vector.broadcast %cst_29 : f32 to vector<16x16xf32>
    %41 = arith.cmpf ogt, %39, %40 : vector<16x16xf32>
    %cst_30 = arith.constant 0.00999999977 : f32
    %42 = vector.broadcast %cst_30 : f32 to vector<16x16xf32>
    %43 = arith.mulf %42, %39 : vector<16x16xf32>
    %44 = arith.select %41, %39, %43 : vector<16x16xi1>, vector<16x16xf32>
    %cst_31 = arith.constant 0.000000e+00 : f32
    %45 = vector.broadcast %cst_31 : f32 to vector<16x16xf32>
    %46 = arith.cmpf ogt, %0, %45 : vector<16x16xf32>
    %cst_32 = arith.constant -1.000000e+30 : f32
    %47 = vector.broadcast %cst_32 : f32 to vector<16x16xf32>
    %48 = arith.select %46, %44, %47 : vector<16x16xi1>, vector<16x16xf32>
    %cst_33 = arith.constant dense<0xFF800000> : vector<16xf32>
    %49 = vector.multi_reduction <maximumf>, %48, %cst_33 [1] : vector<16x16xf32> to vector<16xf32>
    %50 = vector.shape_cast %49 : vector<16xf32> to vector<16x1xf32>
    %cst_34 = arith.constant 0.000000e+00 : f32
    %51 = vector.broadcast %cst_34 : f32 to vector<16x16xf32>
    %52 = arith.cmpf ogt, %0, %51 : vector<16x16xf32>
    %53 = vector.broadcast %50 : vector<16x1xf32> to vector<16x16xf32>
    %54 = arith.subf %44, %53 : vector<16x16xf32>
    %55 = math.exp %54 : vector<16x16xf32>
    %cst_35 = arith.constant 0.000000e+00 : f32
    %56 = vector.broadcast %cst_35 : f32 to vector<16x16xf32>
    %57 = arith.select %52, %55, %56 : vector<16x16xi1>, vector<16x16xf32>
    %cst_36 = arith.constant dense<0.000000e+00> : vector<16xf32>
    %58 = vector.multi_reduction <add>, %57, %cst_36 [1] : vector<16x16xf32> to vector<16xf32>
    %59 = vector.shape_cast %58 : vector<16xf32> to vector<16x1xf32>
    %cst_37 = arith.constant 1.000000e-16 : f32
    %60 = vector.broadcast %cst_37 : f32 to vector<16x1xf32>
    %61 = arith.addf %59, %60 : vector<16x1xf32>
    %62 = tpu.reciprocal %61 {approx = true} : vector<16x1xf32> -> vector<16x1xf32>
    %63 = vector.broadcast %62 : vector<16x1xf32> to vector<16x16xf32>
    %64 = arith.mulf %57, %63 : vector<16x16xf32>
    %65 = vector.shape_cast %64 : vector<16x16xf32> to vector<16x16x1xf32>
    %66 = vector.broadcast %65 : vector<16x16x1xf32> to vector<16x16x32xf32>
    %67 = arith.mulf %29, %66 : vector<16x16x32xf32>
    %cst_38 = arith.constant dense<0.000000e+00> : vector<16x32xf32>
    %68 = vector.multi_reduction <add>, %67, %cst_38 [1] : vector<16x16x32xf32> to vector<16x32xf32>
    %cst_39 = arith.constant dense<0.000000e+00> : vector<16x32xf32>
    %69 = tpu.matmul %68, %17, %cst_39 {dimension_numbers = #tpu.dot_dimension_numbers<[1], [0], [0], [1], [0, 0, 1, 1], [], []>} : vector<16x32xf32>, vector<32x32xf32>, vector<16x32xf32> -> vector<16x32xf32>
    %70 = vector.broadcast %18 : vector<1x32xf32> to vector<16x32xf32>
    %71 = arith.addf %69, %70 : vector<16x32xf32>
    %cst_40 = arith.constant 0.000000e+00 : f32
    %72 = vector.broadcast %cst_40 : f32 to vector<16x32xf32>
    %73 = arith.cmpf ogt, %71, %72 : vector<16x32xf32>
    %cst_41 = arith.constant 0.000000e+00 : f32
    %74 = vector.broadcast %cst_41 : f32 to vector<16x32xf32>
    %75 = arith.minimumf %71, %74 : vector<16x32xf32>
    %76 = math.exp %75 : vector<16x32xf32>
    %cst_42 = arith.constant 1.000000e+00 : f32
    %77 = vector.broadcast %cst_42 : f32 to vector<16x32xf32>
    %78 = arith.subf %76, %77 : vector<16x32xf32>
    %79 = arith.select %73, %71, %78 : vector<16x32xi1>, vector<16x32xf32>
    %c0_43 = arith.constant 0 : index
    %c0_44 = arith.constant 0 : index
    %80 = vector.load %arg11[%c0_43, %c0_44] : memref<32x96xf32, #tpu.memory_space<vmem>>, vector<32x96xf32>
    %c0_45 = arith.constant 0 : index
    %c0_46 = arith.constant 0 : index
    %81 = vector.load %arg12[%c0_45, %c0_46] : memref<32x96xf32, #tpu.memory_space<vmem>>, vector<32x96xf32>
    %c0_47 = arith.constant 0 : index
    %c0_48 = arith.constant 0 : index
    %82 = vector.load %arg13[%c0_47, %c0_48] : memref<1x96xf32, #tpu.memory_space<vmem>>, vector<1x96xf32>
    %c0_49 = arith.constant 0 : index
    %c0_50 = arith.constant 0 : index
    %83 = vector.load %arg14[%c0_49, %c0_50] : memref<1x96xf32, #tpu.memory_space<vmem>>, vector<1x96xf32>
    %cst_51 = arith.constant dense<0.000000e+00> : vector<16x96xf32>
    %84 = tpu.matmul %79, %80, %cst_51 {dimension_numbers = #tpu.dot_dimension_numbers<[1], [0], [0], [1], [0, 0, 1, 1], [], []>} : vector<16x32xf32>, vector<32x96xf32>, vector<16x96xf32> -> vector<16x96xf32>
    %85 = vector.broadcast %82 : vector<1x96xf32> to vector<16x96xf32>
    %86 = arith.addf %84, %85 : vector<16x96xf32>
    %cst_52 = arith.constant dense<0.000000e+00> : vector<16x96xf32>
    %87 = tpu.matmul %11, %81, %cst_52 {dimension_numbers = #tpu.dot_dimension_numbers<[1], [0], [0], [1], [0, 0, 1, 1], [], []>} : vector<16x32xf32>, vector<32x96xf32>, vector<16x96xf32> -> vector<16x96xf32>
    %88 = vector.broadcast %83 : vector<1x96xf32> to vector<16x96xf32>
    %89 = arith.addf %87, %88 : vector<16x96xf32>
    %90 = vector.extract_strided_slice %86 {offsets = [0, 0], sizes = [16, 32], strides = [1, 1]} : vector<16x96xf32> to vector<16x32xf32>
    %91 = vector.extract_strided_slice %89 {offsets = [0, 0], sizes = [16, 32], strides = [1, 1]} : vector<16x96xf32> to vector<16x32xf32>
    %92 = arith.addf %90, %91 : vector<16x32xf32>
    %93 = arith.negf %92 : vector<16x32xf32>
    %94 = math.exp %93 : vector<16x32xf32>
    %cst_53 = arith.constant 1.000000e+00 : f32
    %95 = vector.broadcast %cst_53 : f32 to vector<16x32xf32>
    %96 = arith.addf %95, %94 : vector<16x32xf32>
    %97 = arith.divf %95, %96 : vector<16x32xf32>
    %98 = vector.extract_strided_slice %86 {offsets = [0, 32], sizes = [16, 32], strides = [1, 1]} : vector<16x96xf32> to vector<16x32xf32>
    %99 = vector.extract_strided_slice %89 {offsets = [0, 32], sizes = [16, 32], strides = [1, 1]} : vector<16x96xf32> to vector<16x32xf32>
    %100 = arith.addf %98, %99 : vector<16x32xf32>
    %101 = arith.negf %100 : vector<16x32xf32>
    %102 = math.exp %101 : vector<16x32xf32>
    %cst_54 = arith.constant 1.000000e+00 : f32
    %103 = vector.broadcast %cst_54 : f32 to vector<16x32xf32>
    %104 = arith.addf %103, %102 : vector<16x32xf32>
    %105 = arith.divf %103, %104 : vector<16x32xf32>
    %106 = vector.extract_strided_slice %86 {offsets = [0, 64], sizes = [16, 32], strides = [1, 1]} : vector<16x96xf32> to vector<16x32xf32>
    %107 = vector.extract_strided_slice %89 {offsets = [0, 64], sizes = [16, 32], strides = [1, 1]} : vector<16x96xf32> to vector<16x32xf32>
    %108 = arith.mulf %97, %107 : vector<16x32xf32>
    %109 = arith.addf %106, %108 : vector<16x32xf32>
    %110 = math.tanh %109 : vector<16x32xf32>
    %cst_55 = arith.constant 1.000000e+00 : f32
    %111 = vector.broadcast %cst_55 : f32 to vector<16x32xf32>
    %112 = arith.subf %111, %105 : vector<16x32xf32>
    %113 = arith.mulf %112, %110 : vector<16x32xf32>
    %114 = arith.mulf %105, %11 : vector<16x32xf32>
    %115 = arith.addf %113, %114 : vector<16x32xf32>
    %cst_56 = arith.constant 0.000000e+00 : f32
    %116 = vector.broadcast %cst_56 : f32 to vector<16x32xf32>
    %117 = arith.maximumf %115, %116 : vector<16x32xf32>
    %c0_57 = arith.constant 0 : index
    %c0_58 = arith.constant 0 : index
    %118 = vector.load %arg15[%c0_57, %c0_58] : memref<32x32xf32, #tpu.memory_space<vmem>>, vector<32x32xf32>
    %c0_59 = arith.constant 0 : index
    %c0_60 = arith.constant 0 : index
    %119 = vector.load %arg16[%c0_59, %c0_60] : memref<1x32xf32, #tpu.memory_space<vmem>>, vector<1x32xf32>
    %c0_61 = arith.constant 0 : index
    %c0_62 = arith.constant 0 : index
    %120 = vector.load %arg17[%c0_61, %c0_62] : memref<32x1xf32, #tpu.memory_space<vmem>>, vector<32x1xf32>
    %c0_63 = arith.constant 0 : index
    %c0_64 = arith.constant 0 : index
    %121 = vector.load %arg18[%c0_63, %c0_64] : memref<1x32xf32, #tpu.memory_space<vmem>>, vector<1x32xf32>
    %cst_65 = arith.constant dense<0.000000e+00> : vector<16x32xf32>
    %122 = tpu.matmul %117, %118, %cst_65 {dimension_numbers = #tpu.dot_dimension_numbers<[1], [0], [0], [1], [0, 0, 1, 1], [], []>} : vector<16x32xf32>, vector<32x32xf32>, vector<16x32xf32> -> vector<16x32xf32>
    %cst_66 = arith.constant dense<0.000000e+00> : vector<16x1xf32>
    %123 = tpu.matmul %122, %120, %cst_66 {dimension_numbers = #tpu.dot_dimension_numbers<[1], [0], [0], [1], [0, 0, 1, 1], [], []>} : vector<16x32xf32>, vector<32x1xf32>, vector<16x1xf32> -> vector<16x1xf32>
    %cst_67 = arith.constant dense<0.000000e+00> : vector<1x16xf32>
    %124 = tpu.matmul %119, %122, %cst_67 {dimension_numbers = #tpu.dot_dimension_numbers<[1], [1], [0], [0], [0, 0, 1, 0], [], []>} : vector<1x32xf32>, vector<16x32xf32>, vector<1x16xf32> -> vector<1x16xf32>
    %125 = vector.broadcast %123 : vector<16x1xf32> to vector<16x16xf32>
    %126 = vector.broadcast %124 : vector<1x16xf32> to vector<16x16xf32>
    %127 = arith.addf %125, %126 : vector<16x16xf32>
    %cst_68 = arith.constant 0.000000e+00 : f32
    %128 = vector.broadcast %cst_68 : f32 to vector<16x16xf32>
    %129 = arith.cmpf ogt, %127, %128 : vector<16x16xf32>
    %cst_69 = arith.constant 0.00999999977 : f32
    %130 = vector.broadcast %cst_69 : f32 to vector<16x16xf32>
    %131 = arith.mulf %130, %127 : vector<16x16xf32>
    %132 = arith.select %129, %127, %131 : vector<16x16xi1>, vector<16x16xf32>
    %cst_70 = arith.constant 0.000000e+00 : f32
    %133 = vector.broadcast %cst_70 : f32 to vector<16x16xf32>
    %134 = arith.cmpf ogt, %0, %133 : vector<16x16xf32>
    %cst_71 = arith.constant -1.000000e+30 : f32
    %135 = vector.broadcast %cst_71 : f32 to vector<16x16xf32>
    %136 = arith.select %134, %132, %135 : vector<16x16xi1>, vector<16x16xf32>
    %cst_72 = arith.constant dense<0xFF800000> : vector<16xf32>
    %137 = vector.multi_reduction <maximumf>, %136, %cst_72 [1] : vector<16x16xf32> to vector<16xf32>
    %138 = vector.shape_cast %137 : vector<16xf32> to vector<16x1xf32>
    %cst_73 = arith.constant 0.000000e+00 : f32
    %139 = vector.broadcast %cst_73 : f32 to vector<16x16xf32>
    %140 = arith.cmpf ogt, %0, %139 : vector<16x16xf32>
    %141 = vector.broadcast %138 : vector<16x1xf32> to vector<16x16xf32>
    %142 = arith.subf %132, %141 : vector<16x16xf32>
    %143 = math.exp %142 : vector<16x16xf32>
    %cst_74 = arith.constant 0.000000e+00 : f32
    %144 = vector.broadcast %cst_74 : f32 to vector<16x16xf32>
    %145 = arith.select %140, %143, %144 : vector<16x16xi1>, vector<16x16xf32>
    %cst_75 = arith.constant dense<0.000000e+00> : vector<16xf32>
    %146 = vector.multi_reduction <add>, %145, %cst_75 [1] : vector<16x16xf32> to vector<16xf32>
    %147 = vector.shape_cast %146 : vector<16xf32> to vector<16x1xf32>
    %cst_76 = arith.constant 1.000000e-16 : f32
    %148 = vector.broadcast %cst_76 : f32 to vector<16x1xf32>
    %149 = arith.addf %147, %148 : vector<16x1xf32>
    %150 = tpu.reciprocal %149 {approx = true} : vector<16x1xf32> -> vector<16x1xf32>
    %151 = vector.broadcast %150 : vector<16x1xf32> to vector<16x16xf32>
    %152 = arith.mulf %145, %151 : vector<16x16xf32>
    %cst_77 = arith.constant dense<0.000000e+00> : vector<16x32xf32>
    %153 = tpu.matmul %152, %122, %cst_77 {dimension_numbers = #tpu.dot_dimension_numbers<[1], [0], [0], [1], [0, 0, 1, 1], [], []>} : vector<16x16xf32>, vector<16x32xf32>, vector<16x32xf32> -> vector<16x32xf32>
    %154 = vector.broadcast %121 : vector<1x32xf32> to vector<16x32xf32>
    %155 = arith.addf %153, %154 : vector<16x32xf32>
    %cst_78 = arith.constant 0.000000e+00 : f32
    %156 = vector.broadcast %cst_78 : f32 to vector<16x32xf32>
    %157 = arith.cmpf ogt, %155, %156 : vector<16x32xf32>
    %cst_79 = arith.constant 0.000000e+00 : f32
    %158 = vector.broadcast %cst_79 : f32 to vector<16x32xf32>
    %159 = arith.minimumf %155, %158 : vector<16x32xf32>
    %160 = math.exp %159 : vector<16x32xf32>
    %cst_80 = arith.constant 1.000000e+00 : f32
    %161 = vector.broadcast %cst_80 : f32 to vector<16x32xf32>
    %162 = arith.subf %160, %161 : vector<16x32xf32>
    %163 = arith.select %157, %155, %162 : vector<16x32xi1>, vector<16x32xf32>
    %c0_81 = arith.constant 0 : index
    %c0_82 = arith.constant 0 : index
    %164 = vector.load %arg19[%c0_81, %c0_82] : memref<32x96xf32, #tpu.memory_space<vmem>>, vector<32x96xf32>
    %c0_83 = arith.constant 0 : index
    %c0_84 = arith.constant 0 : index
    %165 = vector.load %arg20[%c0_83, %c0_84] : memref<32x96xf32, #tpu.memory_space<vmem>>, vector<32x96xf32>
    %c0_85 = arith.constant 0 : index
    %c0_86 = arith.constant 0 : index
    %166 = vector.load %arg21[%c0_85, %c0_86] : memref<1x96xf32, #tpu.memory_space<vmem>>, vector<1x96xf32>
    %c0_87 = arith.constant 0 : index
    %c0_88 = arith.constant 0 : index
    %167 = vector.load %arg22[%c0_87, %c0_88] : memref<1x96xf32, #tpu.memory_space<vmem>>, vector<1x96xf32>
    %cst_89 = arith.constant dense<0.000000e+00> : vector<16x96xf32>
    %168 = tpu.matmul %163, %164, %cst_89 {dimension_numbers = #tpu.dot_dimension_numbers<[1], [0], [0], [1], [0, 0, 1, 1], [], []>} : vector<16x32xf32>, vector<32x96xf32>, vector<16x96xf32> -> vector<16x96xf32>
    %169 = vector.broadcast %166 : vector<1x96xf32> to vector<16x96xf32>
    %170 = arith.addf %168, %169 : vector<16x96xf32>
    %cst_90 = arith.constant dense<0.000000e+00> : vector<16x96xf32>
    %171 = tpu.matmul %117, %165, %cst_90 {dimension_numbers = #tpu.dot_dimension_numbers<[1], [0], [0], [1], [0, 0, 1, 1], [], []>} : vector<16x32xf32>, vector<32x96xf32>, vector<16x96xf32> -> vector<16x96xf32>
    %172 = vector.broadcast %167 : vector<1x96xf32> to vector<16x96xf32>
    %173 = arith.addf %171, %172 : vector<16x96xf32>
    %174 = vector.extract_strided_slice %170 {offsets = [0, 0], sizes = [16, 32], strides = [1, 1]} : vector<16x96xf32> to vector<16x32xf32>
    %175 = vector.extract_strided_slice %173 {offsets = [0, 0], sizes = [16, 32], strides = [1, 1]} : vector<16x96xf32> to vector<16x32xf32>
    %176 = arith.addf %174, %175 : vector<16x32xf32>
    %177 = arith.negf %176 : vector<16x32xf32>
    %178 = math.exp %177 : vector<16x32xf32>
    %cst_91 = arith.constant 1.000000e+00 : f32
    %179 = vector.broadcast %cst_91 : f32 to vector<16x32xf32>
    %180 = arith.addf %179, %178 : vector<16x32xf32>
    %181 = arith.divf %179, %180 : vector<16x32xf32>
    %182 = vector.extract_strided_slice %170 {offsets = [0, 32], sizes = [16, 32], strides = [1, 1]} : vector<16x96xf32> to vector<16x32xf32>
    %183 = vector.extract_strided_slice %173 {offsets = [0, 32], sizes = [16, 32], strides = [1, 1]} : vector<16x96xf32> to vector<16x32xf32>
    %184 = arith.addf %182, %183 : vector<16x32xf32>
    %185 = arith.negf %184 : vector<16x32xf32>
    %186 = math.exp %185 : vector<16x32xf32>
    %cst_92 = arith.constant 1.000000e+00 : f32
    %187 = vector.broadcast %cst_92 : f32 to vector<16x32xf32>
    %188 = arith.addf %187, %186 : vector<16x32xf32>
    %189 = arith.divf %187, %188 : vector<16x32xf32>
    %190 = vector.extract_strided_slice %170 {offsets = [0, 64], sizes = [16, 32], strides = [1, 1]} : vector<16x96xf32> to vector<16x32xf32>
    %191 = vector.extract_strided_slice %173 {offsets = [0, 64], sizes = [16, 32], strides = [1, 1]} : vector<16x96xf32> to vector<16x32xf32>
    %192 = arith.mulf %181, %191 : vector<16x32xf32>
    %193 = arith.addf %190, %192 : vector<16x32xf32>
    %194 = math.tanh %193 : vector<16x32xf32>
    %cst_93 = arith.constant 1.000000e+00 : f32
    %195 = vector.broadcast %cst_93 : f32 to vector<16x32xf32>
    %196 = arith.subf %195, %189 : vector<16x32xf32>
    %197 = arith.mulf %196, %194 : vector<16x32xf32>
    %198 = arith.mulf %189, %117 : vector<16x32xf32>
    %199 = arith.addf %197, %198 : vector<16x32xf32>
    %cst_94 = arith.constant 0.000000e+00 : f32
    %200 = vector.broadcast %cst_94 : f32 to vector<16x32xf32>
    %201 = arith.maximumf %199, %200 : vector<16x32xf32>
    %cst_95 = arith.constant dense<0.000000e+00> : vector<16xf32>
    %202 = vector.multi_reduction <add>, %201, %cst_95 [1] : vector<16x32xf32> to vector<16xf32>
    %203 = vector.shape_cast %202 : vector<16xf32> to vector<16x1xf32>
    %cst_96 = arith.constant 3.200000e+01 : f32
    %204 = vector.broadcast %cst_96 : f32 to vector<16x1xf32>
    %205 = arith.divf %203, %204 : vector<16x1xf32>
    %206 = vector.broadcast %205 : vector<16x1xf32> to vector<16x32xf32>
    %207 = arith.subf %201, %206 : vector<16x32xf32>
    %208 = arith.mulf %207, %207 : vector<16x32xf32>
    %cst_97 = arith.constant dense<0.000000e+00> : vector<16xf32>
    %209 = vector.multi_reduction <add>, %208, %cst_97 [1] : vector<16x32xf32> to vector<16xf32>
    %210 = vector.shape_cast %209 : vector<16xf32> to vector<16x1xf32>
    %cst_98 = arith.constant 3.200000e+01 : f32
    %211 = vector.broadcast %cst_98 : f32 to vector<16x1xf32>
    %212 = arith.divf %210, %211 : vector<16x1xf32>
    %cst_99 = arith.constant 9.99999974E-6 : f32
    %213 = vector.broadcast %cst_99 : f32 to vector<16x1xf32>
    %214 = arith.addf %212, %213 : vector<16x1xf32>
    %215 = math.rsqrt %214 : vector<16x1xf32>
    %216 = vector.broadcast %215 : vector<16x1xf32> to vector<16x32xf32>
    %217 = arith.mulf %207, %216 : vector<16x32xf32>
    %c0_100 = arith.constant 0 : index
    %c0_101 = arith.constant 0 : index
    %218 = vector.load %arg23[%c0_100, %c0_101] : memref<16x32xf32, #tpu.memory_space<vmem>>, vector<16x32xf32>
    tpu.vector_store %arg23[%c0_100, %c0_101], %217 {strides = array<i32>} : memref<16x32xf32, #tpu.memory_space<vmem>>, vector<16x32xf32>,
    return
  }
}

</mosaic_0001>

<llo_original>
// kernel: encoder2d_forward.1
$region0: #{encoder2d_forward.1}
  #allocation0 [shape = 'u32[]', space=smem, size = 0x4, offset = 0x4, fixed_abs, tag = 'smem constant byte address 0x4 - core index']
  #allocation1 [shape = 'u32[144,128]{1,0:T(1,128)}', space=vmem, size = 0x12000, scoped, tag = 'internal scratch']
  %s0 = inlined_call_operand.vmem [shape: f32[16,6], index: 0, kind: input, shape index: {}]
  %s1 = inlined_call_operand.vmem [shape: f32[16,16], index: 1, kind: input, shape index: {}]
  %s2 = inlined_call_operand.vmem [shape: f32[256,8], index: 2, kind: input, shape index: {}]
  %s3 = inlined_call_operand.vmem [shape: f32[6,32], index: 3, kind: input, shape index: {}]
  %s4 = inlined_call_operand.vmem [shape: f32[1,32], index: 4, kind: input, shape index: {}]
  %s5 = inlined_call_operand.vmem [shape: f32[32,32], index: 5, kind: input, shape index: {}]
  %s6 = inlined_call_operand.vmem [shape: f32[8,32], index: 6, kind: input, shape index: {}]
  %s7 = inlined_call_operand.vmem [shape: f32[1,32], index: 7, kind: input, shape index: {}]
  %s8 = inlined_call_operand.vmem [shape: f32[1,32], index: 8, kind: input, shape index: {}]
  %s9 = inlined_call_operand.vmem [shape: f32[32,32], index: 9, kind: input, shape index: {}]
  %s10 = inlined_call_operand.vmem [shape: f32[1,32], index: 10, kind: input, shape index: {}]
  %s11 = inlined_call_operand.vmem [shape: f32[32,96], index: 11, kind: input, shape index: {}]
  %s12 = inlined_call_operand.vmem [shape: f32[32,96], index: 12, kind: input, shape index: {}]
  %s13 = inlined_call_operand.vmem [shape: f32[1,96], index: 13, kind: input, shape index: {}]
  %s14 = inlined_call_operand.vmem [shape: f32[1,96], index: 14, kind: input, shape index: {}]
  %s15 = inlined_call_operand.vmem [shape: f32[32,32], index: 15, kind: input, shape index: {}]
  %s16 = inlined_call_operand.vmem [shape: f32[1,32], index: 16, kind: input, shape index: {}]
  %s17 = inlined_call_operand.vmem [shape: f32[32,1], index: 17, kind: input, shape index: {}]
  %s18 = inlined_call_operand.vmem [shape: f32[1,32], index: 18, kind: input, shape index: {}]
  %s19 = inlined_call_operand.vmem [shape: f32[32,96], index: 19, kind: input, shape index: {}]
  %s20 = inlined_call_operand.vmem [shape: f32[32,96], index: 20, kind: input, shape index: {}]
  %s21 = inlined_call_operand.vmem [shape: f32[1,96], index: 21, kind: input, shape index: {}]
  %s22 = inlined_call_operand.vmem [shape: f32[1,96], index: 22, kind: input, shape index: {}]
  %s23 = inlined_call_operand.hbm [shape: f32[16,32], index: 23, kind: output, shape index: {}]
  %s24 = sld [smem:[#allocation0]]
  $region102: #{encoder2d_forward.1} parent=0
    _
  %s26 = ssub.s32 1, %s24
  %s27 = scalar_select 0, %s26, %s24
  $region1: #{encoder2d_forward.1} parent=0
    #allocation2 [shape = 'u8[8192]{0}', space=vmem, size = 0x2000, scoped, tag = 'output window, operand 0, single buffered']
    #allocation3 [shape = 's32[1]{0}', space=sflag, size = 0x4, scoped, tag = 'scoped memory for encoder2d_forward.1']
    %28 = vsyncpa [#allocation3], 0
    // Predicated region
    $region2: #{encoder2d_forward.1} parent=1 // pred_check
      _
    $region3: #{encoder2d_forward.1} parent=1 // pred_check_branch
      %30 = sbr.rel (0) target = $region5
    $region4: #{encoder2d_forward.1} parent=1 // pred_region
      _
    $region5: #{encoder2d_forward.1} parent=1 // pred_fallthru
      _
    // Predicated region
    $region6: #{encoder2d_forward.1} parent=1 // pred_check
      _
    $region7: #{encoder2d_forward.1} parent=1 // pred_check_branch
      %32 = sbr.rel (0) target = $region9
    $region8: #{encoder2d_forward.1} parent=1 // pred_region
      _
    $region9: #{encoder2d_forward.1} parent=1 // pred_fallthru
      _
    // Predicated region
    $region10: #{encoder2d_forward.1} parent=1 // pred_check
      _
    $region11: #{encoder2d_forward.1} parent=1 // pred_check_branch
      %34 = sbr.rel (0) target = $region13
    $region12: #{encoder2d_forward.1} parent=1 // pred_region
      _
    $region13: #{encoder2d_forward.1} parent=1 // pred_fallthru
      _
    // Predicated region
    $region14: #{encoder2d_forward.1} parent=1 // pred_check
      _
    $region15: #{encoder2d_forward.1} parent=1 // pred_check_branch
      %36 = sbr.rel (0) target = $region17
    $region16: #{encoder2d_forward.1} parent=1 // pred_region
      _
    $region17: #{encoder2d_forward.1} parent=1 // pred_fallthru
      _
    // Predicated region
    $region18: #{encoder2d_forward.1} parent=1 // pred_check
      _
    $region19: #{encoder2d_forward.1} parent=1 // pred_check_branch
      %38 = sbr.rel (0) target = $region21
    $region20: #{encoder2d_forward.1} parent=1 // pred_region
      _
    $region21: #{encoder2d_forward.1} parent=1 // pred_fallthru
      _
    // Predicated region
    $region22: #{encoder2d_forward.1} parent=1 // pred_check
      _
    $region23: #{encoder2d_forward.1} parent=1 // pred_check_branch
      %40 = sbr.rel (0) target = $region25
    $region24: #{encoder2d_forward.1} parent=1 // pred_region
      _
    $region25: #{encoder2d_forward.1} parent=1 // pred_fallthru
      _
    // Predicated region
    $region26: #{encoder2d_forward.1} parent=1 // pred_check
      _
    $region27: #{encoder2d_forward.1} parent=1 // pred_check_branch
      %42 = sbr.rel (0) target = $region29
    $region28: #{encoder2d_forward.1} parent=1 // pred_region
      _
    $region29: #{encoder2d_forward.1} parent=1 // pred_fallthru
      _
    // Predicated region
    $region30: #{encoder2d_forward.1} parent=1 // pred_check
      _
    $region31: #{encoder2d_forward.1} parent=1 // pred_check_branch
      %44 = sbr.rel (0) target = $region33
    $region32: #{encoder2d_forward.1} parent=1 // pred_region
      _
    $region33: #{encoder2d_forward.1} parent=1 // pred_fallthru
      _
    // Predicated region
    $region34: #{encoder2d_forward.1} parent=1 // pred_check
      _
    $region35: #{encoder2d_forward.1} parent=1 // pred_check_branch
      %46 = sbr.rel (0) target = $region37
    $region36: #{encoder2d_forward.1} parent=1 // pred_region
      _
    $region37: #{encoder2d_forward.1} parent=1 // pred_fallthru
      _
    // Predicated region
    $region38: #{encoder2d_forward.1} parent=1 // pred_check
      _
    $region39: #{encoder2d_forward.1} parent=1 // pred_check_branch
      %48 = sbr.rel (0) target = $region41
    $region40: #{encoder2d_forward.1} parent=1 // pred_region
      _
    $region41: #{encoder2d_forward.1} parent=1 // pred_fallthru
      _
    // Predicated region
    $region42: #{encoder2d_forward.1} parent=1 // pred_check
      _
    $region43: #{encoder2d_forward.1} parent=1 // pred_check_branch
      %50 = sbr.rel (0) target = $region45
    $region44: #{encoder2d_forward.1} parent=1 // pred_region
      _
    $region45: #{encoder2d_forward.1} parent=1 // pred_fallthru
      _
    // Predicated region
    $region46: #{encoder2d_forward.1} parent=1 // pred_check
      _
    $region47: #{encoder2d_forward.1} parent=1 // pred_check_branch
      %52 = sbr.rel (0) target = $region49
    $region48: #{encoder2d_forward.1} parent=1 // pred_region
      _
    $region49: #{encoder2d_forward.1} parent=1 // pred_fallthru
      _
    // Predicated region
    $region50: #{encoder2d_forward.1} parent=1 // pred_check
      _
    $region51: #{encoder2d_forward.1} parent=1 // pred_check_branch
      %54 = sbr.rel (0) target = $region53
    $region52: #{encoder2d_forward.1} parent=1 // pred_region
      _
    $region53: #{encoder2d_forward.1} parent=1 // pred_fallthru
      _
    // Predicated region
    $region54: #{encoder2d_forward.1} parent=1 // pred_check
      _
    $region55: #{encoder2d_forward.1} parent=1 // pred_check_branch
      %56 = sbr.rel (0) target = $region57
    $region56: #{encoder2d_forward.1} parent=1 // pred_region
      _
    $region57: #{encoder2d_forward.1} parent=1 // pred_fallthru
      _
    // Predicated region
    $region58: #{encoder2d_forward.1} parent=1 // pred_check
      _
    $region59: #{encoder2d_forward.1} parent=1 // pred_check_branch
      %58 = sbr.rel (0) target = $region61
    $region60: #{encoder2d_forward.1} parent=1 // pred_region
      _
    $region61: #{encoder2d_forward.1} parent=1 // pred_fallthru
      _
    // Predicated region
    $region62: #{encoder2d_forward.1} parent=1 // pred_check
      _
    $region63: #{encoder2d_forward.1} parent=1 // pred_check_branch
      %60 = sbr.rel (0) target = $region65
    $region64: #{encoder2d_forward.1} parent=1 // pred_region
      _
    $region65: #{encoder2d_forward.1} parent=1 // pred_fallthru
      _
    // Predicated region
    $region66: #{encoder2d_forward.1} parent=1 // pred_check
      _
    $region67: #{encoder2d_forward.1} parent=1 // pred_check_branch
      %62 = sbr.rel (0) target = $region69
    $region68: #{encoder2d_forward.1} parent=1 // pred_region
      _
    $region69: #{encoder2d_forward.1} parent=1 // pred_fallthru
      _
    // Predicated region
    $region70: #{encoder2d_forward.1} parent=1 // pred_check
      _
    $region71: #{encoder2d_forward.1} parent=1 // pred_check_branch
      %64 = sbr.rel (0) target = $region73
    $region72: #{encoder2d_forward.1} parent=1 // pred_region
      _
    $region73: #{encoder2d_forward.1} parent=1 // pred_fallthru
      _
    // Predicated region
    $region74: #{encoder2d_forward.1} parent=1 // pred_check
      _
    $region75: #{encoder2d_forward.1} parent=1 // pred_check_branch
      %66 = sbr.rel (0) target = $region77
    $region76: #{encoder2d_forward.1} parent=1 // pred_region
      _
    $region77: #{encoder2d_forward.1} parent=1 // pred_fallthru
      _
    // Predicated region
    $region78: #{encoder2d_forward.1} parent=1 // pred_check
      _
    $region79: #{encoder2d_forward.1} parent=1 // pred_check_branch
      %68 = sbr.rel (0) target = $region81
    $region80: #{encoder2d_forward.1} parent=1 // pred_region
      _
    $region81: #{encoder2d_forward.1} parent=1 // pred_fallthru
      _
    // Predicated region
    $region82: #{encoder2d_forward.1} parent=1 // pred_check
      _
    $region83: #{encoder2d_forward.1} parent=1 // pred_check_branch
      %70 = sbr.rel (0) target = $region85
    $region84: #{encoder2d_forward.1} parent=1 // pred_region
      _
    $region85: #{encoder2d_forward.1} parent=1 // pred_fallthru
      _
    // Predicated region
    $region86: #{encoder2d_forward.1} parent=1 // pred_check
      _
    $region87: #{encoder2d_forward.1} parent=1 // pred_check_branch
      %72 = sbr.rel (0) target = $region89
    $region88: #{encoder2d_forward.1} parent=1 // pred_region
      _
    $region89: #{encoder2d_forward.1} parent=1 // pred_fallthru
      _
    // Predicated region
    $region90: #{encoder2d_forward.1} parent=1 // pred_check
      _
    $region91: #{encoder2d_forward.1} parent=1 // pred_check_branch
      %74 = sbr.rel (0) target = $region93
    $region92: #{encoder2d_forward.1} parent=1 // pred_region
      _
    $region93: #{encoder2d_forward.1} parent=1 // pred_fallthru
      _
    %v75 = vld [vmem:[%s1] sm:$0xff]
    %v76 = vld [vmem:[%s1 + $0x8] sm:$0xff]
    %v77 = vld [vmem:[%s0] sm:$0xff]
    %v78 = vld [vmem:[%s0 + $0x8] sm:$0xff]
    %v79 = vld [vmem:[%s3] sm:$0x3f]
    %v80 = vld [vmem:[%s4] sm:$0x1]
    %v82 = vlaneseq
    %v83 = vshrl.u32 %v82, 7
    %v84 = vsub.s32 0, %v83
    %v85 = vrot.slane %v80, %v84
    %vm87 = vcmask 48128
    %v89 = vsel %vm87, %v77, 0
    %v92 = vsel %vm87, %v78, 0
    %vm94 = vcmask 1045504
    %v96 = vsel %vm94, %v79, 0
    %98 = vmatprep.subr.mxu0 0.0
    %99 = vmatpush1.msra.mxu0 0.0
    %100 = vmatprep.subr.mxu0 0.0
    %101 = vmatpush1.msra.mxu0 0.0
    %102 = vmatprep.subr.mxu0 0.0
    %103 = vmatpush1.msra.mxu0 0.0
    %104 = vmatprep.subr.mxu0 0.0
    %105 = vmatpush1.msra.mxu0 0.0
    %106 = vmatprep.subr.mxu0 0.0
    %107 = vmatpush1.msra.mxu0 0.0
    %108 = vmatprep.subr.mxu0 0.0
    %109 = vmatpush1.msra.mxu0 0.0
    %110 = vmatprep.subr.mxu0 0.0
    %111 = vmatpush1.msra.mxu0 0.0
    %112 = vmatprep.subr.mxu0 0.0
    %113 = vmatpush1.msra.mxu0 0.0
    %114 = vmatprep.subr.mxu0 0.0
    %115 = vmatpush1.msra.mxu0 0.0
    %116 = vmatprep.subr.mxu0 0.0
    %117 = vmatpush1.msra.mxu0 0.0
    %118 = vmatprep.subr.mxu0 0.0
    %119 = vmatpush1.msra.mxu0 0.0
    %120 = vmatprep.subr.mxu0 0.0
    %121 = vmatpush1.msra.mxu0 0.0
    %122 = vmatprep.subr.mxu0 0.0
    %123 = vmatpush1.msra.mxu0 0.0
    %124 = vmatprep.subr.mxu0 0.0
    %125 = vmatpush1.msra.mxu0 0.0
    %126 = vmatprep.subr.mxu0 0.0
    %127 = vmatpush1.msra.mxu0 0.0
    %128 = vmatprep.subr.mxu0 0.0
    %129 = vmatpush1.msra.mxu0 %v96
    %130 = vmatprep.subr.mxu0 0.0
    %131 = vmatpush2.msra.mxu0 0.0
    %132 = vmatprep.subr.mxu0 0.0
    %133 = vmatpush2.msra.mxu0 0.0
    %134 = vmatprep.subr.mxu0 0.0
    %135 = vmatpush2.msra.mxu0 0.0
    %136 = vmatprep.subr.mxu0 0.0
    %137 = vmatpush2.msra.mxu0 0.0
    %138 = vmatprep.subr.mxu0 0.0
    %139 = vmatpush2.msra.mxu0 0.0
    %140 = vmatprep.subr.mxu0 0.0
    %141 = vmatpush2.msra.mxu0 0.0
    %142 = vmatprep.subr.mxu0 0.0
    %143 = vmatpush2.msra.mxu0 0.0
    %144 = vmatprep.subr.mxu0 0.0
    %145 = vmatpush2.msra.mxu0 0.0
    %146 = vmatprep.subr.mxu0 0.0
    %147 = vmatpush2.msra.mxu0 0.0
    %148 = vmatprep.subr.mxu0 0.0
    %149 = vmatpush2.msra.mxu0 0.0
    %150 = vmatprep.subr.mxu0 0.0
    %151 = vmatpush2.msra.mxu0 0.0
    %152 = vmatprep.subr.mxu0 0.0
    %153 = vmatpush2.msra.mxu0 0.0
    %154 = vmatprep.subr.mxu0 0.0
    %155 = vmatpush2.msra.mxu0 0.0
    %156 = vmatprep.subr.mxu0 0.0
    %157 = vmatpush2.msra.mxu0 0.0
    %158 = vmatprep.subr.mxu0 0.0
    %159 = vmatpush2.msra.mxu0 0.0
    %160 = vmatprep.subr.mxu0 0.0
    %161 = vmatpush2.msra.mxu0 0.0
    %162 = vmatprep.mubr.f32.mxu0 0.0
    %163 = vmatmul.mubr.f32.gmra.mxu0 %v89
    %v164 = vpop.f32.mrf.mxu0
    %v165 = vadd.f32 %v85, %v164
    %v166 = vpop.f32.mrf.mxu0
    %167 = vmatprep.mubr.f32.mxu0 0.0
    %168 = vmatmul.mubr.f32.gmra.mxu0 %v92
    %v169 = vpop.f32.mrf.mxu0
    %v170 = vadd.f32 %v85, %v169
    %v171 = vpop.f32.mrf.mxu0
    %172 = vdwg.mxu0
    %vm173 = vcmp.gt.f32.partialorder %v165, 0.0
    %vm174 = vcmp.gt.f32.partialorder %v170, 0.0
    %v175 = vmul.f32 %v165, 0.01
    %v176 = vmul.f32 %v170, 0.01
    %v177 = vsel %vm173, %v165, %v175
    %v178 = vsel %vm174, %v170, %v176
    %v179 = vld [vmem:[%s2] sm:$0xff]
    %v180 = vld [vmem:[%s2 + $0x8] sm:$0xff]
    %v181 = vld [vmem:[%s2 + $0x10] sm:$0xff]
    %v182 = vld [vmem:[%s2 + $0x18] sm:$0xff]
    %v183 = vld [vmem:[%s2 + $0x20] sm:$0xff]
    %v184 = vld [vmem:[%s2 + $0x28] sm:$0xff]
    %v185 = vld [vmem:[%s2 + $0x30] sm:$0xff]
    %v186 = vld [vmem:[%s2 + $0x38] sm:$0xff]
    %v187 = vld [vmem:[%s2 + $0x40] sm:$0xff]
    %v188 = vld [vmem:[%s2 + $0x48] sm:$0xff]
    %v189 = vld [vmem:[%s2 + $0x50] sm:$0xff]
    %v190 = vld [vmem:[%s2 + $0x58] sm:$0xff]
    %v191 = vld [vmem:[%s2 + $0x60] sm:$0xff]
    %v192 = vld [vmem:[%s2 + $0x68] sm:$0xff]
    %v193 = vld [vmem:[%s2 + $0x70] sm:$0xff]
    %v194 = vld [vmem:[%s2 + $0x78] sm:$0xff]
    %v195 = vld [vmem:[%s2 + $0x80] sm:$0xff]
    %v196 = vld [vmem:[%s2 + $0x88] sm:$0xff]
    %v197 = vld [vmem:[%s2 + $0x90] sm:$0xff]
    %v198 = vld [vmem:[%s2 + $0x98] sm:$0xff]
    %v199 = vld [vmem:[%s2 + $0xa0] sm:$0xff]
    %v200 = vld [vmem:[%s2 + $0xa8] sm:$0xff]
    %v201 = vld [vmem:[%s2 + $0xb0] sm:$0xff]
    %v202 = vld [vmem:[%s2 + $0xb8] sm:$0xff]
    %v203 = vld [vmem:[%s2 + $0xc0] sm:$0xff]
    %v204 = vld [vmem:[%s2 + $0xc8] sm:$0xff]
    %v205 = vld [vmem:[%s2 + $0xd0] sm:$0xff]
    %v206 = vld [vmem:[%s2 + $0xd8] sm:$0xff]
    %v207 = vld [vmem:[%s2 + $0xe0] sm:$0xff]
    %v208 = vld [vmem:[%s2 + $0xe8] sm:$0xff]
    %v209 = vld [vmem:[%s2 + $0xf0] sm:$0xff]
    %v210 = vld [vmem:[%s2 + $0xf8] sm:$0xff]
    %v211 = vld [vmem:[%s5] sm:$0xff]
    %v212 = vld [vmem:[%s5 + $0x8] sm:$0xff]
    %v213 = vld [vmem:[%s5 + $0x10] sm:$0xff]
    %v214 = vld [vmem:[%s5 + $0x18] sm:$0xff]
    %v215 = vld [vmem:[%s6] sm:$0xff]
    %v216 = vld [vmem:[%s7] sm:$0x1]
    %v217 = vld [vmem:[%s8] sm:$0x1]
    %v218 = vld [vmem:[%s9] sm:$0xff]
    %v219 = vld [vmem:[%s9 + $0x8] sm:$0xff]
    %v220 = vld [vmem:[%s9 + $0x10] sm:$0xff]
    %v221 = vld [vmem:[%s9 + $0x18] sm:$0xff]
    %v222 = vld [vmem:[%s10] sm:$0x1]
    %vm223 = vcmask 261120
    %v225 = vsel %vm223, %v177, 0
    %v228 = vsel %vm223, %v178, 0
    %230 = vmatprep.subr.mxu0 0.0
    %231 = vmatpush1.msra.mxu0 0.0
    %232 = vmatprep.subr.mxu0 0.0
    %233 = vmatpush1.msra.mxu0 0.0
    %234 = vmatprep.subr.mxu0 0.0
    %235 = vmatpush1.msra.mxu0 0.0
    %236 = vmatprep.subr.mxu0 0.0
    %237 = vmatpush1.msra.mxu0 0.0
    %238 = vmatprep.subr.mxu0 0.0
    %239 = vmatpush1.msra.mxu0 0.0
    %240 = vmatprep.subr.mxu0 0.0
    %241 = vmatpush1.msra.mxu0 0.0
    %242 = vmatprep.subr.mxu0 0.0
    %243 = vmatpush1.msra.mxu0 0.0
    %244 = vmatprep.subr.mxu0 0.0
    %245 = vmatpush1.msra.mxu0 0.0
    %246 = vmatprep.subr.mxu0 0.0
    %247 = vmatpush1.msra.mxu0 0.0
    %248 = vmatprep.subr.mxu0 0.0
    %249 = vmatpush1.msra.mxu0 0.0
    %250 = vmatprep.subr.mxu0 0.0
    %251 = vmatpush1.msra.mxu0 0.0
    %252 = vmatprep.subr.mxu0 0.0
    %253 = vmatpush1.msra.mxu0 0.0
    %254 = vmatprep.subr.mxu0 0.0
    %255 = vmatpush1.msra.mxu0 %v214
    %256 = vmatprep.subr.mxu0 0.0
    %257 = vmatpush1.msra.mxu0 %v213
    %258 = vmatprep.subr.mxu0 0.0
    %259 = vmatpush1.msra.mxu0 %v212
    %260 = vmatprep.subr.mxu0 0.0
    %261 = vmatpush1.msra.mxu0 %v211
    %262 = vmatprep.subr.mxu0 0.0
    %263 = vmatpush2.msra.mxu0 0.0
    %264 = vmatprep.subr.mxu0 0.0
    %265 = vmatpush2.msra.mxu0 0.0
    %266 = vmatprep.subr.mxu0 0.0
    %267 = vmatpush2.msra.mxu0 0.0
    %268 = vmatprep.subr.mxu0 0.0
    %269 = vmatpush2.msra.mxu0 0.0
    %270 = vmatprep.subr.mxu0 0.0
    %271 = vmatpush2.msra.mxu0 0.0
    %272 = vmatprep.subr.mxu0 0.0
    %273 = vmatpush2.msra.mxu0 0.0
    %274 = vmatprep.subr.mxu0 0.0
    %275 = vmatpush2.msra.mxu0 0.0
    %276 = vmatprep.subr.mxu0 0.0
    %277 = vmatpush2.msra.mxu0 0.0
    %278 = vmatprep.subr.mxu0 0.0
    %279 = vmatpush2.msra.mxu0 0.0
    %280 = vmatprep.subr.mxu0 0.0
    %281 = vmatpush2.msra.mxu0 0.0
    %282 = vmatprep.subr.mxu0 0.0
    %283 = vmatpush2.msra.mxu0 0.0
    %284 = vmatprep.subr.mxu0 0.0
    %285 = vmatpush2.msra.mxu0 0.0
    %286 = vmatprep.subr.mxu0 0.0
    %287 = vmatpush2.msra.mxu0 0.0
    %288 = vmatprep.subr.mxu0 0.0
    %289 = vmatpush2.msra.mxu0 0.0
    %290 = vmatprep.subr.mxu0 0.0
    %291 = vmatpush2.msra.mxu0 0.0
    %292 = vmatprep.subr.mxu0 0.0
    %293 = vmatpush2.msra.mxu0 0.0
    %294 = vmatprep.mubr.f32.mxu0 0.0
    %295 = vmatmul.mubr.f32.gmra.mxu0 %v225
    %v296 = vpop.f32.mrf.mxu0
    %v297 = vadd.f32 0.0, %v296
    %v298 = vpop.f32.mrf.mxu0
    %299 = vmatprep.mubr.f32.mxu0 0.0
    %300 = vmatmul.mubr.f32.gmra.mxu0 %v228
    %v301 = vpop.f32.mrf.mxu0
    %v302 = vadd.f32 0.0, %v301
    %v303 = vpop.f32.mrf.mxu0
    %304 = vdwg.mxu0
    %vm305 = vcmask 64512
    %v307 = vsel %vm305, %v179, 0
    %v310 = vsel %vm305, %v180, 0
    %v313 = vsel %vm305, %v181, 0
    %v316 = vsel %vm305, %v182, 0
    %v319 = vsel %vm305, %v183, 0
    %v322 = vsel %vm305, %v184, 0
    %v325 = vsel %vm305, %v185, 0
    %v328 = vsel %vm305, %v186, 0
    %v331 = vsel %vm305, %v187, 0
    %v334 = vsel %vm305, %v188, 0
    %v337 = vsel %vm305, %v189, 0
    %v340 = vsel %vm305, %v190, 0
    %v343 = vsel %vm305, %v191, 0
    %v346 = vsel %vm305, %v192, 0
    %v349 = vsel %vm305, %v193, 0
    %v352 = vsel %vm305, %v194, 0
    %v355 = vsel %vm305, %v195, 0
    %v358 = vsel %vm305, %v196, 0
    %v361 = vsel %vm305, %v197, 0
    %v364 = vsel %vm305, %v198, 0
    %v367 = vsel %vm305, %v199, 0
    %v370 = vsel %vm305, %v200, 0
    %v373 = vsel %vm305, %v201, 0
    %v376 = vsel %vm305, %v202, 0
    %v379 = vsel %vm305, %v203, 0
    %v382 = vsel %vm305, %v204, 0
    %v385 = vsel %vm305, %v205, 0
    %v388 = vsel %vm305, %v206, 0
    %v391 = vsel %vm305, %v207, 0
    %v394 = vsel %vm305, %v208, 0
    %v397 = vsel %vm305, %v209, 0
    %v400 = vsel %vm305, %v210, 0
    %402 = vmatprep.subr.mxu0 0.0
    %403 = vmatpush1.msra.mxu0 0.0
    %404 = vmatprep.subr.mxu0 0.0
    %405 = vmatpush1.msra.mxu0 0.0
    %406 = vmatprep.subr.mxu0 0.0
    %407 = vmatpush1.msra.mxu0 0.0
    %408 = vmatprep.subr.mxu0 0.0
    %409 = vmatpush1.msra.mxu0 0.0
    %410 = vmatprep.subr.mxu0 0.0
    %411 = vmatpush1.msra.mxu0 0.0
    %412 = vmatprep.subr.mxu0 0.0
    %413 = vmatpush1.msra.mxu0 0.0
    %414 = vmatprep.subr.mxu0 0.0
    %415 = vmatpush1.msra.mxu0 0.0
    %416 = vmatprep.subr.mxu0 0.0
    %417 = vmatpush1.msra.mxu0 0.0
    %418 = vmatprep.subr.mxu0 0.0
    %419 = vmatpush1.msra.mxu0 0.0
    %420 = vmatprep.subr.mxu0 0.0
    %421 = vmatpush1.msra.mxu0 0.0
    %422 = vmatprep.subr.mxu0 0.0
    %423 = vmatpush1.msra.mxu0 0.0
    %424 = vmatprep.subr.mxu0 0.0
    %425 = vmatpush1.msra.mxu0 0.0
    %426 = vmatprep.subr.mxu0 0.0
    %427 = vmatpush1.msra.mxu0 0.0
    %428 = vmatprep.subr.mxu0 0.0
    %429 = vmatpush1.msra.mxu0 0.0
    %430 = vmatprep.subr.mxu0 0.0
    %431 = vmatpush1.msra.mxu0 0.0
    %432 = vmatprep.subr.mxu0 0.0
    %433 = vmatpush1.msra.mxu0 %v215
    %434 = vmatprep.subr.mxu0 0.0
    %435 = vmatpush2.msra.mxu0 0.0
    %436 = vmatprep.subr.mxu0 0.0
    %437 = vmatpush2.msra.mxu0 0.0
    %438 = vmatprep.subr.mxu0 0.0
    %439 = vmatpush2.msra.mxu0 0.0
    %440 = vmatprep.subr.mxu0 0.0
    %441 = vmatpush2.msra.mxu0 0.0
    %442 = vmatprep.subr.mxu0 0.0
    %443 = vmatpush2.msra.mxu0 0.0
    %444 = vmatprep.subr.mxu0 0.0
    %445 = vmatpush2.msra.mxu0 0.0
    %446 = vmatprep.subr.mxu0 0.0
    %447 = vmatpush2.msra.mxu0 0.0
    %448 = vmatprep.subr.mxu0 0.0
    %449 = vmatpush2.msra.mxu0 0.0
    %450 = vmatprep.subr.mxu0 0.0
    %451 = vmatpush2.msra.mxu0 0.0
    %452 = vmatprep.subr.mxu0 0.0
    %453 = vmatpush2.msra.mxu0 0.0
    %454 = vmatprep.subr.mxu0 0.0
    %455 = vmatpush2.msra.mxu0 0.0
    %456 = vmatprep.subr.mxu0 0.0
    %457 = vmatpush2.msra.mxu0 0.0
    %458 = vmatprep.subr.mxu0 0.0
    %459 = vmatpush2.msra.mxu0 0.0
    %460 = vmatprep.subr.mxu0 0.0
    %461 = vmatpush2.msra.mxu0 0.0
    %462 = vmatprep.subr.mxu0 0.0
    %463 = vmatpush2.msra.mxu0 0.0
    %464 = vmatprep.subr.mxu0 0.0
    %465 = vmatpush2.msra.mxu0 0.0
    %466 = vmatprep.mubr.f32.mxu0 0.0
    %467 = vmatmul.mubr.f32.gmra.mxu0 %v307
    %v468 = vpop.f32.mrf.mxu0
    %v469 = vadd.f32 0.0, %v468
    %v470 = vpop.f32.mrf.mxu0
    %471 = vmatprep.mubr.f32.mxu0 0.0
    %472 = vmatmul.mubr.f32.gmra.mxu0 %v310
    %v473 = vpop.f32.mrf.mxu0
    %v474 = vadd.f32 0.0, %v473
    %v475 = vpop.f32.mrf.mxu0
    %476 = vmatprep.mubr.f32.mxu0 0.0
    %477 = vmatmul.mubr.f32.gmra.mxu0 %v313
    %v478 = vpop.f32.mrf.mxu0
    %v479 = vadd.f32 0.0, %v478
    %v480 = vpop.f32.mrf.mxu0
    %481 = vmatprep.mubr.f32.mxu0 0.0
    %482 = vmatmul.mubr.f32.gmra.mxu0 %v316
    %v483 = vpop.f32.mrf.mxu0
    %v484 = vadd.f32 0.0, %v483
    %v485 = vpop.f32.mrf.mxu0
    %486 = vmatprep.mubr.f32.mxu0 0.0
    %487 = vmatmul.mubr.f32.gmra.mxu0 %v319
    %v488 = vpop.f32.mrf.mxu0
    %v489 = vadd.f32 0.0, %v488
    %v490 = vpop.f32.mrf.mxu0
    %491 = vmatprep.mubr.f32.mxu0 0.0
    %492 = vmatmul.mubr.f32.gmra.mxu0 %v322
    %v493 = vpop.f32.mrf.mxu0
    %v494 = vadd.f32 0.0, %v493
    %v495 = vpop.f32.mrf.mxu0
    %496 = vmatprep.mubr.f32.mxu0 0.0
    %497 = vmatmul.mubr.f32.gmra.mxu0 %v325
    %v498 = vpop.f32.mrf.mxu0
    %v499 = vadd.f32 0.0, %v498
    %v500 = vpop.f32.mrf.mxu0
    %501 = vmatprep.mubr.f32.mxu0 0.0
    %502 = vmatmul.mubr.f32.gmra.mxu0 %v328
    %v503 = vpop.f32.mrf.mxu0
    %v504 = vadd.f32 0.0, %v503
    %v505 = vpop.f32.mrf.mxu0
    %506 = vmatprep.mubr.f32.mxu0 0.0
    %507 = vmatmul.mubr.f32.gmra.mxu0 %v331
    %v508 = vpop.f32.mrf.mxu0
    %v509 = vadd.f32 0.0, %v508
    %v510 = vpop.f32.mrf.mxu0
    %511 = vmatprep.mubr.f32.mxu0 0.0
    %512 = vmatmul.mubr.f32.gmra.mxu0 %v334
    %v513 = vpop.f32.mrf.mxu0
    %v514 = vadd.f32 0.0, %v513
    %v515 = vpop.f32.mrf.mxu0
    %516 = vmatprep.mubr.f32.mxu0 0.0
    %517 = vmatmul.mubr.f32.gmra.mxu0 %v337
    %v518 = vpop.f32.mrf.mxu0
    %v519 = vadd.f32 0.0, %v518
    %v520 = vpop.f32.mrf.mxu0
    %521 = vmatprep.mubr.f32.mxu0 0.0
    %522 = vmatmul.mubr.f32.gmra.mxu0 %v340
    %v523 = vpop.f32.mrf.mxu0
    %v524 = vadd.f32 0.0, %v523
    %v525 = vpop.f32.mrf.mxu0
    %526 = vmatprep.mubr.f32.mxu0 0.0
    %527 = vmatmul.mubr.f32.gmra.mxu0 %v343
    %v528 = vpop.f32.mrf.mxu0
    %v529 = vadd.f32 0.0, %v528
    %v530 = vpop.f32.mrf.mxu0
    %531 = vmatprep.mubr.f32.mxu0 0.0
    %532 = vmatmul.mubr.f32.gmra.mxu0 %v346
    %v533 = vpop.f32.mrf.mxu0
    %v534 = vadd.f32 0.0, %v533
    %v535 = vpop.f32.mrf.mxu0
    %536 = vmatprep.mubr.f32.mxu0 0.0
    %537 = vmatmul.mubr.f32.gmra.mxu0 %v349
    %v538 = vpop.f32.mrf.mxu0
    %v539 = vadd.f32 0.0, %v538
    %v540 = vpop.f32.mrf.mxu0
    %541 = vmatprep.mubr.f32.mxu0 0.0
    %542 = vmatmul.mubr.f32.gmra.mxu0 %v352
    %v543 = vpop.f32.mrf.mxu0
    %v544 = vadd.f32 0.0, %v543
    %v545 = vpop.f32.mrf.mxu0
    %546 = vmatprep.mubr.f32.mxu0 0.0
    %547 = vmatmul.mubr.f32.gmra.mxu0 %v355
    %v548 = vpop.f32.mrf.mxu0
    %v549 = vadd.f32 0.0, %v548
    %v550 = vpop.f32.mrf.mxu0
    %551 = vmatprep.mubr.f32.mxu0 0.0
    %552 = vmatmul.mubr.f32.gmra.mxu0 %v358
    %v553 = vpop.f32.mrf.mxu0
    %v554 = vadd.f32 0.0, %v553
    %v555 = vpop.f32.mrf.mxu0
    %556 = vmatprep.mubr.f32.mxu0 0.0
    %557 = vmatmul.mubr.f32.gmra.mxu0 %v361
    %v558 = vpop.f32.mrf.mxu0
    %v559 = vadd.f32 0.0, %v558
    %v560 = vpop.f32.mrf.mxu0
    %561 = vmatprep.mubr.f32.mxu0 0.0
    %562 = vmatmul.mubr.f32.gmra.mxu0 %v364
    %v563 = vpop.f32.mrf.mxu0
    %v564 = vadd.f32 0.0, %v563
    %v565 = vpop.f32.mrf.mxu0
    %566 = vmatprep.mubr.f32.mxu0 0.0
    %567 = vmatmul.mubr.f32.gmra.mxu0 %v367
    %v568 = vpop.f32.mrf.mxu0
    %v569 = vadd.f32 0.0, %v568
    %v570 = vpop.f32.mrf.mxu0
    %571 = vmatprep.mubr.f32.mxu0 0.0
    %572 = vmatmul.mubr.f32.gmra.mxu0 %v370
    %v573 = vpop.f32.mrf.mxu0
    %v574 = vadd.f32 0.0, %v573
    %v575 = vpop.f32.mrf.mxu0
    %576 = vmatprep.mubr.f32.mxu0 0.0
    %577 = vmatmul.mubr.f32.gmra.mxu0 %v373
    %v578 = vpop.f32.mrf.mxu0
    %v579 = vadd.f32 0.0, %v578
    %v580 = vpop.f32.mrf.mxu0
    %581 = vmatprep.mubr.f32.mxu0 0.0
    %582 = vmatmul.mubr.f32.gmra.mxu0 %v376
    %v583 = vpop.f32.mrf.mxu0
    %v584 = vadd.f32 0.0, %v583
    %v585 = vpop.f32.mrf.mxu0
    %586 = vmatprep.mubr.f32.mxu0 0.0
    %587 = vmatmul.mubr.f32.gmra.mxu0 %v379
    %v588 = vpop.f32.mrf.mxu0
    %v589 = vadd.f32 0.0, %v588
    %v590 = vpop.f32.mrf.mxu0
    %591 = vmatprep.mubr.f32.mxu0 0.0
    %592 = vmatmul.mubr.f32.gmra.mxu0 %v382
    %v593 = vpop.f32.mrf.mxu0
    %v594 = vadd.f32 0.0, %v593
    %v595 = vpop.f32.mrf.mxu0
    %596 = vmatprep.mubr.f32.mxu0 0.0
    %597 = vmatmul.mubr.f32.gmra.mxu0 %v385
    %v598 = vpop.f32.mrf.mxu0
    %v599 = vadd.f32 0.0, %v598
    %v600 = vpop.f32.mrf.mxu0
    %601 = vmatprep.mubr.f32.mxu0 0.0
    %602 = vmatmul.mubr.f32.gmra.mxu0 %v388
    %v603 = vpop.f32.mrf.mxu0
    %v604 = vadd.f32 0.0, %v603
    %v605 = vpop.f32.mrf.mxu0
    %606 = vmatprep.mubr.f32.mxu0 0.0
    %607 = vmatmul.mubr.f32.gmra.mxu0 %v391
    %v608 = vpop.f32.mrf.mxu0
    %v609 = vadd.f32 0.0, %v608
    %v610 = vpop.f32.mrf.mxu0
    %611 = vmatprep.mubr.f32.mxu0 0.0
    %612 = vmatmul.mubr.f32.gmra.mxu0 %v394
    %v613 = vpop.f32.mrf.mxu0
    %v614 = vadd.f32 0.0, %v613
    %v615 = vpop.f32.mrf.mxu0
    %616 = vmatprep.mubr.f32.mxu0 0.0
    %617 = vmatmul.mubr.f32.gmra.mxu0 %v397
    %v618 = vpop.f32.mrf.mxu0
    %v619 = vadd.f32 0.0, %v618
    %v620 = vpop.f32.mrf.mxu0
    %621 = vmatprep.mubr.f32.mxu0 0.0
    %622 = vmatmul.mubr.f32.gmra.mxu0 %v400
    %v623 = vpop.f32.mrf.mxu0
    %v624 = vadd.f32 0.0, %v623
    %v625 = vpop.f32.mrf.mxu0
    %626 = vdwg.mxu0
    %v627 = vadd.f32 %v297, %v469
    %v628 = vadd.f32 %v302, %v474
    %v629 = vadd.f32 %v297, %v479
    %v630 = vadd.f32 %v302, %v484
    %v631 = vadd.f32 %v297, %v489
    %v632 = vadd.f32 %v302, %v494
    %v633 = vadd.f32 %v297, %v499
    %v634 = vadd.f32 %v302, %v504
    %v635 = vadd.f32 %v297, %v509
    %v636 = vadd.f32 %v302, %v514
    %v637 = vadd.f32 %v297, %v519
    %v638 = vadd.f32 %v302, %v524
    %v639 = vadd.f32 %v297, %v529
    %v640 = vadd.f32 %v302, %v534
    %v641 = vadd.f32 %v297, %v539
    %v642 = vadd.f32 %v302, %v544
    %v643 = vadd.f32 %v297, %v549
    %v644 = vadd.f32 %v302, %v554
    %v645 = vadd.f32 %v297, %v559
    %v646 = vadd.f32 %v302, %v564
    %v647 = vadd.f32 %v297, %v569
    %v648 = vadd.f32 %v302, %v574
    %v649 = vadd.f32 %v297, %v579
    %v650 = vadd.f32 %v302, %v584
    %v651 = vadd.f32 %v297, %v589
    %v652 = vadd.f32 %v302, %v594
    %v653 = vadd.f32 %v297, %v599
    %v654 = vadd.f32 %v302, %v604
    %v655 = vadd.f32 %v297, %v609
    %v656 = vadd.f32 %v302, %v614
    %v657 = vadd.f32 %v297, %v619
    %v658 = vadd.f32 %v302, %v624
    %vm659 = vcmp.gt.f32.partialorder %v627, 0.0
    %vm660 = vcmp.gt.f32.partialorder %v628, 0.0
    %vm661 = vcmp.gt.f32.partialorder %v629, 0.0
    %vm662 = vcmp.gt.f32.partialorder %v630, 0.0
    %vm663 = vcmp.gt.f32.partialorder %v631, 0.0
    %vm664 = vcmp.gt.f32.partialorder %v632, 0.0
    %vm665 = vcmp.gt.f32.partialorder %v633, 0.0
    %vm666 = vcmp.gt.f32.partialorder %v634, 0.0
    %vm667 = vcmp.gt.f32.partialorder %v635, 0.0
    %vm668 = vcmp.gt.f32.partialorder %v636, 0.0
    %vm669 = vcmp.gt.f32.partialorder %v637, 0.0
    %vm670 = vcmp.gt.f32.partialorder %v638, 0.0
    %vm671 = vcmp.gt.f32.partialorder %v639, 0.0
    %vm672 = vcmp.gt.f32.partialorder %v640, 0.0
    %vm673 = vcmp.gt.f32.partialorder %v641, 0.0
    %vm674 = vcmp.gt.f32.partialorder %v642, 0.0
    %vm675 = vcmp.gt.f32.partialorder %v643, 0.0
    %vm676 = vcmp.gt.f32.partialorder %v644, 0.0
    %vm677 = vcmp.gt.f32.partialorder %v645, 0.0
    %vm678 = vcmp.gt.f32.partialorder %v646, 0.0
    %vm679 = vcmp.gt.f32.partialorder %v647, 0.0
    %vm680 = vcmp.gt.f32.partialorder %v648, 0.0
    %vm681 = vcmp.gt.f32.partialorder %v649, 0.0
    %vm682 = vcmp.gt.f32.partialorder %v650, 0.0
    %vm683 = vcmp.gt.f32.partialorder %v651, 0.0
    %vm684 = vcmp.gt.f32.partialorder %v652, 0.0
    %vm685 = vcmp.gt.f32.partialorder %v653, 0.0
    %vm686 = vcmp.gt.f32.partialorder %v654, 0.0
    %vm687 = vcmp.gt.f32.partialorder %v655, 0.0
    %vm688 = vcmp.gt.f32.partialorder %v656, 0.0
    %vm689 = vcmp.gt.f32.partialorder %v657, 0.0
    %vm690 = vcmp.gt.f32.partialorder %v658, 0.0
    %v691 = vmul.f32 %v627, 0.01
    %v692 = vmul.f32 %v628, 0.01
    %v693 = vmul.f32 %v629, 0.01
    %v694 = vmul.f32 %v630, 0.01
    %v695 = vmul.f32 %v631, 0.01
    %v696 = vmul.f32 %v632, 0.01
    %v697 = vmul.f32 %v633, 0.01
    %v698 = vmul.f32 %v634, 0.01
    %v699 = vmul.f32 %v635, 0.01
    %v700 = vmul.f32 %v636, 0.01
    %v701 = vmul.f32 %v637, 0.01
    %v702 = vmul.f32 %v638, 0.01
    %v703 = vmul.f32 %v639, 0.01
    %v704 = vmul.f32 %v640, 0.01
    %v705 = vmul.f32 %v641, 0.01
    %v706 = vmul.f32 %v642, 0.01
    %v707 = vmul.f32 %v643, 0.01
    %v708 = vmul.f32 %v644, 0.01
    %v709 = vmul.f32 %v645, 0.01
    %v710 = vmul.f32 %v646, 0.01
    %v711 = vmul.f32 %v647, 0.01
    %v712 = vmul.f32 %v648, 0.01
    %v713 = vmul.f32 %v649, 0.01
    %v714 = vmul.f32 %v650, 0.01
    %v715 = vmul.f32 %v651, 0.01
    %v716 = vmul.f32 %v652, 0.01
    %v717 = vmul.f32 %v653, 0.01
    %v718 = vmul.f32 %v654, 0.01
    %v719 = vmul.f32 %v655, 0.01
    %v720 = vmul.f32 %v656, 0.01
    %v721 = vmul.f32 %v657, 0.01
    %v722 = vmul.f32 %v658, 0.01
    %v723 = vsel %vm659, %v627, %v691
    %v724 = vsel %vm660, %v628, %v692
    %v725 = vsel %vm661, %v629, %v693
    %v726 = vsel %vm662, %v630, %v694
    %v727 = vsel %vm663, %v631, %v695
    %v728 = vsel %vm664, %v632, %v696
    %v729 = vsel %vm665, %v633, %v697
    %v730 = vsel %vm666, %v634, %v698
    %v731 = vsel %vm667, %v635, %v699
    %v732 = vsel %vm668, %v636, %v700
    %v733 = vsel %vm669, %v637, %v701
    %v734 = vsel %vm670, %v638, %v702
    %v735 = vsel %vm671, %v639, %v703
    %v736 = vsel %vm672, %v640, %v704
    %v737 = vsel %vm673, %v641, %v705
    %v738 = vsel %vm674, %v642, %v706
    %v739 = vsel %vm675, %v643, %v707
    %v740 = vsel %vm676, %v644, %v708
    %v741 = vsel %vm677, %v645, %v709
    %v742 = vsel %vm678, %v646, %v710
    %v743 = vsel %vm679, %v647, %v711
    %v744 = vsel %vm680, %v648, %v712
    %v745 = vsel %vm681, %v649, %v713
    %v746 = vsel %vm682, %v650, %v714
    %v747 = vsel %vm683, %v651, %v715
    %v748 = vsel %vm684, %v652, %v716
    %v749 = vsel %vm685, %v653, %v717
    %v750 = vsel %vm686, %v654, %v718
    %v751 = vsel %vm687, %v655, %v719
    %v752 = vsel %vm688, %v656, %v720
    %v753 = vsel %vm689, %v657, %v721
    %v754 = vsel %vm690, %v658, %v722
    %v756 = vlaneseq
    %v757 = vshrl.u32 %v756, 7
    %v758 = vsub.s32 0, %v757
    %v759 = vrot.slane %v216, %v758
    %v761 = vmul.f32 %v723, %v759
    %v762 = vmul.f32 %v724, %v759
    %v763 = vmul.f32 %v725, %v759
    %v764 = vmul.f32 %v726, %v759
    %v765 = vmul.f32 %v727, %v759
    %v766 = vmul.f32 %v728, %v759
    %v767 = vmul.f32 %v729, %v759
    %v768 = vmul.f32 %v730, %v759
    %v769 = vmul.f32 %v731, %v759
    %v770 = vmul.f32 %v732, %v759
    %v771 = vmul.f32 %v733, %v759
    %v772 = vmul.f32 %v734, %v759
    %v773 = vmul.f32 %v735, %v759
    %v774 = vmul.f32 %v736, %v759
    %v775 = vmul.f32 %v737, %v759
    %v776 = vmul.f32 %v738, %v759
    %v777 = vmul.f32 %v739, %v759
    %v778 = vmul.f32 %v740, %v759
    %v779 = vmul.f32 %v741, %v759
    %v780 = vmul.f32 %v742, %v759
    %v781 = vmul.f32 %v743, %v759
    %v782 = vmul.f32 %v744, %v759
    %v783 = vmul.f32 %v745, %v759
    %v784 = vmul.f32 %v746, %v759
    %v785 = vmul.f32 %v747, %v759
    %v786 = vmul.f32 %v748, %v759
    %v787 = vmul.f32 %v749, %v759
    %v788 = vmul.f32 %v750, %v759
    %v789 = vmul.f32 %v751, %v759
    %v790 = vmul.f32 %v752, %v759
    %v791 = vmul.f32 %v753, %v759
    %v792 = vmul.f32 %v754, %v759
    %v793 = vsel %vm223, %v761, 0.0
    %794 = vadd.xlane.f32.xlu0 %v793
    %v795 = vpop.xlane.xlu0 %794
    %v796 = vsel %vm223, %v762, 0.0
    %797 = vadd.xlane.f32.xlu0 %v796
    %v798 = vpop.xlane.xlu0 %797
    %v799 = vsel %vm223, %v763, 0.0
    %800 = vadd.xlane.f32.xlu0 %v799
    %v801 = vpop.xlane.xlu0 %800
    %v802 = vsel %vm223, %v764, 0.0
    %803 = vadd.xlane.f32.xlu0 %v802
    %v804 = vpop.xlane.xlu0 %803
    %v805 = vsel %vm223, %v765, 0.0
    %806 = vadd.xlane.f32.xlu0 %v805
    %v807 = vpop.xlane.xlu0 %806
    %v808 = vsel %vm223, %v766, 0.0
    %809 = vadd.xlane.f32.xlu0 %v808
    %v810 = vpop.xlane.xlu0 %809
    %v811 = vsel %vm223, %v767, 0.0
    %812 = vadd.xlane.f32.xlu0 %v811
    %v813 = vpop.xlane.xlu0 %812
    %v814 = vsel %vm223, %v768, 0.0
    %815 = vadd.xlane.f32.xlu0 %v814
    %v816 = vpop.xlane.xlu0 %815
    %v817 = vsel %vm223, %v769, 0.0
    %818 = vadd.xlane.f32.xlu0 %v817
    %v819 = vpop.xlane.xlu0 %818
    %v820 = vsel %vm223, %v770, 0.0
    %821 = vadd.xlane.f32.xlu0 %v820
    %v822 = vpop.xlane.xlu0 %821
    %v823 = vsel %vm223, %v771, 0.0
    %824 = vadd.xlane.f32.xlu0 %v823
    %v825 = vpop.xlane.xlu0 %824
    %v826 = vsel %vm223, %v772, 0.0
    %827 = vadd.xlane.f32.xlu0 %v826
    %v828 = vpop.xlane.xlu0 %827
    %v829 = vsel %vm223, %v773, 0.0
    %830 = vadd.xlane.f32.xlu0 %v829
    %v831 = vpop.xlane.xlu0 %830
    %v832 = vsel %vm223, %v774, 0.0
    %833 = vadd.xlane.f32.xlu0 %v832
    %v834 = vpop.xlane.xlu0 %833
    %v835 = vsel %vm223, %v775, 0.0
    %836 = vadd.xlane.f32.xlu0 %v835
    %v837 = vpop.xlane.xlu0 %836
    %v838 = vsel %vm223, %v776, 0.0
    %839 = vadd.xlane.f32.xlu0 %v838
    %v840 = vpop.xlane.xlu0 %839
    %v841 = vsel %vm223, %v777, 0.0
    %842 = vadd.xlane.f32.xlu0 %v841
    %v843 = vpop.xlane.xlu0 %842
    %v844 = vsel %vm223, %v778, 0.0
    %845 = vadd.xlane.f32.xlu0 %v844
    %v846 = vpop.xlane.xlu0 %845
    %v847 = vsel %vm223, %v779, 0.0
    %848 = vadd.xlane.f32.xlu0 %v847
    %v849 = vpop.xlane.xlu0 %848
    %v850 = vsel %vm223, %v780, 0.0
    %851 = vadd.xlane.f32.xlu0 %v850
    %v852 = vpop.xlane.xlu0 %851
    %v853 = vsel %vm223, %v781, 0.0
    %854 = vadd.xlane.f32.xlu0 %v853
    %v855 = vpop.xlane.xlu0 %854
    %v856 = vsel %vm223, %v782, 0.0
    %857 = vadd.xlane.f32.xlu0 %v856
    %v858 = vpop.xlane.xlu0 %857
    %v859 = vsel %vm223, %v783, 0.0
    %860 = vadd.xlane.f32.xlu0 %v859
    %v861 = vpop.xlane.xlu0 %860
    %v862 = vsel %vm223, %v784, 0.0
    %863 = vadd.xlane.f32.xlu0 %v862
    %v864 = vpop.xlane.xlu0 %863
    %v865 = vsel %vm223, %v785, 0.0
    %866 = vadd.xlane.f32.xlu0 %v865
    %v867 = vpop.xlane.xlu0 %866
    %v868 = vsel %vm223, %v786, 0.0
    %869 = vadd.xlane.f32.xlu0 %v868
    %v870 = vpop.xlane.xlu0 %869
    %v871 = vsel %vm223, %v787, 0.0
    %872 = vadd.xlane.f32.xlu0 %v871
    %v873 = vpop.xlane.xlu0 %872
    %v874 = vsel %vm223, %v788, 0.0
    %875 = vadd.xlane.f32.xlu0 %v874
    %v876 = vpop.xlane.xlu0 %875
    %v877 = vsel %vm223, %v789, 0.0
    %878 = vadd.xlane.f32.xlu0 %v877
    %v879 = vpop.xlane.xlu0 %878
    %v880 = vsel %vm223, %v790, 0.0
    %881 = vadd.xlane.f32.xlu0 %v880
    %v882 = vpop.xlane.xlu0 %881
    %v883 = vsel %vm223, %v791, 0.0
    %884 = vadd.xlane.f32.xlu0 %v883
    %v885 = vpop.xlane.xlu0 %884
    %v886 = vsel %vm223, %v792, 0.0
    %887 = vadd.xlane.f32.xlu0 %v886
    %v888 = vpop.xlane.xlu0 %887
    %v890 = vlaneseq
    %v891 = vshrl.u32 %v890, 7
    %v892 = vsub.s32 0, %v891
    %v893 = vrot.slane %v217, %v892
    %v895 = vmul.f32 %v177, %v893
    %v896 = vmul.f32 %v178, %v893
    %v897 = vsel %vm223, %v895, 0.0
    %898 = vadd.xlane.f32.xlu0 %v897
    %v899 = vpop.xlane.xlu0 %898
    %v900 = vsel %vm223, %v896, 0.0
    %901 = vadd.xlane.f32.xlu0 %v900
    %v902 = vpop.xlane.xlu0 %901
    %v905 = vlaneseq
    %v906 = vshrl.u32 %v905, 7
    %v907 = vsub.s32 0, %v906
    %v908 = vrot.slane %v899, %v907
    %v909 = vlaneseq
    %v910 = vshrl.u32 %v909, 7
    %v911 = vsub.s32 1, %v910
    %v912 = vrot.slane %v899, %v911
    %v913 = vlaneseq
    %v914 = vshrl.u32 %v913, 7
    %v915 = vsub.s32 2, %v914
    %v916 = vrot.slane %v899, %v915
    %v917 = vlaneseq
    %v918 = vshrl.u32 %v917, 7
    %v919 = vsub.s32 3, %v918
    %v920 = vrot.slane %v899, %v919
    %v921 = vlaneseq
    %v922 = vshrl.u32 %v921, 7
    %v923 = vsub.s32 4, %v922
    %v924 = vrot.slane %v899, %v923
    %v925 = vlaneseq
    %v926 = vshrl.u32 %v925, 7
    %v927 = vsub.s32 5, %v926
    %v928 = vrot.slane %v899, %v927
    %v929 = vlaneseq
    %v930 = vshrl.u32 %v929, 7
    %v931 = vsub.s32 6, %v930
    %v932 = vrot.slane %v899, %v931
    %v933 = vlaneseq
    %v934 = vshrl.u32 %v933, 7
    %v935 = vsub.s32 7, %v934
    %v936 = vrot.slane %v899, %v935
    %v937 = vlaneseq
    %v938 = vshrl.u32 %v937, 7
    %v939 = vsub.s32 0, %v938
    %v940 = vrot.slane %v902, %v939
    %v941 = vlaneseq
    %v942 = vshrl.u32 %v941, 7
    %v943 = vsub.s32 1, %v942
    %v944 = vrot.slane %v902, %v943
    %v945 = vlaneseq
    %v946 = vshrl.u32 %v945, 7
    %v947 = vsub.s32 2, %v946
    %v948 = vrot.slane %v902, %v947
    %v949 = vlaneseq
    %v950 = vshrl.u32 %v949, 7
    %v951 = vsub.s32 3, %v950
    %v952 = vrot.slane %v902, %v951
    %v953 = vlaneseq
    %v954 = vshrl.u32 %v953, 7
    %v955 = vsub.s32 4, %v954
    %v956 = vrot.slane %v902, %v955
    %v957 = vlaneseq
    %v958 = vshrl.u32 %v957, 7
    %v959 = vsub.s32 5, %v958
    %v960 = vrot.slane %v902, %v959
    %v961 = vlaneseq
    %v962 = vshrl.u32 %v961, 7
    %v963 = vsub.s32 6, %v962
    %v964 = vrot.slane %v902, %v963
    %v965 = vlaneseq
    %v966 = vshrl.u32 %v965, 7
    %v967 = vsub.s32 7, %v966
    %v968 = vrot.slane %v902, %v967
    %v985 = vadd.f32 %v795, %v908
    %v986 = vadd.f32 %v798, %v908
    %v987 = vadd.f32 %v801, %v912
    %v988 = vadd.f32 %v804, %v912
    %v989 = vadd.f32 %v807, %v916
    %v990 = vadd.f32 %v810, %v916
    %v991 = vadd.f32 %v813, %v920
    %v992 = vadd.f32 %v816, %v920
    %v993 = vadd.f32 %v819, %v924
    %v994 = vadd.f32 %v822, %v924
    %v995 = vadd.f32 %v825, %v928
    %v996 = vadd.f32 %v828, %v928
    %v997 = vadd.f32 %v831, %v932
    %v998 = vadd.f32 %v834, %v932
    %v999 = vadd.f32 %v837, %v936
    %v1000 = vadd.f32 %v840, %v936
    %v1001 = vadd.f32 %v843, %v940
    %v1002 = vadd.f32 %v846, %v940
    %v1003 = vadd.f32 %v849, %v944
    %v1004 = vadd.f32 %v852, %v944
    %v1005 = vadd.f32 %v855, %v948
    %v1006 = vadd.f32 %v858, %v948
    %v1007 = vadd.f32 %v861, %v952
    %v1008 = vadd.f32 %v864, %v952
    %v1009 = vadd.f32 %v867, %v956
    %v1010 = vadd.f32 %v870, %v956
    %v1011 = vadd.f32 %v873, %v960
    %v1012 = vadd.f32 %v876, %v960
    %v1013 = vadd.f32 %v879, %v964
    %v1014 = vadd.f32 %v882, %v964
    %v1015 = vadd.f32 %v885, %v968
    %v1016 = vadd.f32 %v888, %v968
    %vm1017 = vcmp.gt.f32.partialorder %v985, 0.0
    %vm1018 = vcmp.gt.f32.partialorder %v986, 0.0
    %vm1019 = vcmp.gt.f32.partialorder %v987, 0.0
    %vm1020 = vcmp.gt.f32.partialorder %v988, 0.0
    %vm1021 = vcmp.gt.f32.partialorder %v989, 0.0
    %vm1022 = vcmp.gt.f32.partialorder %v990, 0.0
    %vm1023 = vcmp.gt.f32.partialorder %v991, 0.0
    %vm1024 = vcmp.gt.f32.partialorder %v992, 0.0
    %vm1025 = vcmp.gt.f32.partialorder %v993, 0.0
    %vm1026 = vcmp.gt.f32.partialorder %v994, 0.0
    %vm1027 = vcmp.gt.f32.partialorder %v995, 0.0
    %vm1028 = vcmp.gt.f32.partialorder %v996, 0.0
    %vm1029 = vcmp.gt.f32.partialorder %v997, 0.0
    %vm1030 = vcmp.gt.f32.partialorder %v998, 0.0
    %vm1031 = vcmp.gt.f32.partialorder %v999, 0.0
    %vm1032 = vcmp.gt.f32.partialorder %v1000, 0.0
    %vm1033 = vcmp.gt.f32.partialorder %v1001, 0.0
    %vm1034 = vcmp.gt.f32.partialorder %v1002, 0.0
    %vm1035 = vcmp.gt.f32.partialorder %v1003, 0.0
    %vm1036 = vcmp.gt.f32.partialorder %v1004, 0.0
    %vm1037 = vcmp.gt.f32.partialorder %v1005, 0.0
    %vm1038 = vcmp.gt.f32.partialorder %v1006, 0.0
    %vm1039 = vcmp.gt.f32.partialorder %v1007, 0.0
    %vm1040 = vcmp.gt.f32.partialorder %v1008, 0.0
    %vm1041 = vcmp.gt.f32.partialorder %v1009, 0.0
    %vm1042 = vcmp.gt.f32.partialorder %v1010, 0.0
    %vm1043 = vcmp.gt.f32.partialorder %v1011, 0.0
    %vm1044 = vcmp.gt.f32.partialorder %v1012, 0.0
    %vm1045 = vcmp.gt.f32.partialorder %v1013, 0.0
    %vm1046 = vcmp.gt.f32.partialorder %v1014, 0.0
    %vm1047 = vcmp.gt.f32.partialorder %v1015, 0.0
    %vm1048 = vcmp.gt.f32.partialorder %v1016, 0.0
    %v1049 = vmul.f32 %v985, 0.01
    %v1050 = vmul.f32 %v986, 0.01
    %v1051 = vmul.f32 %v987, 0.01
    %v1052 = vmul.f32 %v988, 0.01
    %v1053 = vmul.f32 %v989, 0.01
    %v1054 = vmul.f32 %v990, 0.01
    %v1055 = vmul.f32 %v991, 0.01
    %v1056 = vmul.f32 %v992, 0.01
    %v1057 = vmul.f32 %v993, 0.01
    %v1058 = vmul.f32 %v994, 0.01
    %v1059 = vmul.f32 %v995, 0.01
    %v1060 = vmul.f32 %v996, 0.01
    %v1061 = vmul.f32 %v997, 0.01
    %v1062 = vmul.f32 %v998, 0.01
    %v1063 = vmul.f32 %v999, 0.01
    %v1064 = vmul.f32 %v1000, 0.01
    %v1065 = vmul.f32 %v1001, 0.01
    %v1066 = vmul.f32 %v1002, 0.01
    %v1067 = vmul.f32 %v1003, 0.01
    %v1068 = vmul.f32 %v1004, 0.01
    %v1069 = vmul.f32 %v1005, 0.01
    %v1070 = vmul.f32 %v1006, 0.01
    %v1071 = vmul.f32 %v1007, 0.01
    %v1072 = vmul.f32 %v1008, 0.01
    %v1073 = vmul.f32 %v1009, 0.01
    %v1074 = vmul.f32 %v1010, 0.01
    %v1075 = vmul.f32 %v1011, 0.01
    %v1076 = vmul.f32 %v1012, 0.01
    %v1077 = vmul.f32 %v1013, 0.01
    %v1078 = vmul.f32 %v1014, 0.01
    %v1079 = vmul.f32 %v1015, 0.01
    %v1080 = vmul.f32 %v1016, 0.01
    %v1081 = vsel %vm1017, %v985, %v1049
    %v1082 = vsel %vm1018, %v986, %v1050
    %v1083 = vsel %vm1019, %v987, %v1051
    %v1084 = vsel %vm1020, %v988, %v1052
    %v1085 = vsel %vm1021, %v989, %v1053
    %v1086 = vsel %vm1022, %v990, %v1054
    %v1087 = vsel %vm1023, %v991, %v1055
    %v1088 = vsel %vm1024, %v992, %v1056
    %v1089 = vsel %vm1025, %v993, %v1057
    %v1090 = vsel %vm1026, %v994, %v1058
    %v1091 = vsel %vm1027, %v995, %v1059
    %v1092 = vsel %vm1028, %v996, %v1060
    %v1093 = vsel %vm1029, %v997, %v1061
    %v1094 = vsel %vm1030, %v998, %v1062
    %v1095 = vsel %vm1031, %v999, %v1063
    %v1096 = vsel %vm1032, %v1000, %v1064
    %v1097 = vsel %vm1033, %v1001, %v1065
    %v1098 = vsel %vm1034, %v1002, %v1066
    %v1099 = vsel %vm1035, %v1003, %v1067
    %v1100 = vsel %vm1036, %v1004, %v1068
    %v1101 = vsel %vm1037, %v1005, %v1069
    %v1102 = vsel %vm1038, %v1006, %v1070
    %v1103 = vsel %vm1039, %v1007, %v1071
    %v1104 = vsel %vm1040, %v1008, %v1072
    %v1105 = vsel %vm1041, %v1009, %v1073
    %v1106 = vsel %vm1042, %v1010, %v1074
    %v1107 = vsel %vm1043, %v1011, %v1075
    %v1108 = vsel %vm1044, %v1012, %v1076
    %v1109 = vsel %vm1045, %v1013, %v1077
    %v1110 = vsel %vm1046, %v1014, %v1078
    %v1111 = vsel %vm1047, %v1015, %v1079
    %v1112 = vsel %vm1048, %v1016, %v1080
    %vm1113 = vcmp.gt.f32.partialorder %v75, 0.0
    %vm1114 = vcmp.gt.f32.partialorder %v76, 0.0
    %1147 = vset.pattern.permute.xlu0 0
    %1148 = vperm.xlu0 %1147, %v1081
    %v1149 = vpop.permute.xlu0 %1148
    %1150 = vset.pattern.permute.xlu0 0
    %1151 = vperm.xlu0 %1150, %v1082
    %v1152 = vpop.permute.xlu0 %1151
    %1153 = vset.pattern.permute.xlu0 0
    %1154 = vperm.xlu0 %1153, %v1083
    %v1155 = vpop.permute.xlu0 %1154
    %1156 = vset.pattern.permute.xlu0 0
    %1157 = vperm.xlu0 %1156, %v1084
    %v1158 = vpop.permute.xlu0 %1157
    %1159 = vset.pattern.permute.xlu0 0
    %1160 = vperm.xlu0 %1159, %v1085
    %v1161 = vpop.permute.xlu0 %1160
    %1162 = vset.pattern.permute.xlu0 0
    %1163 = vperm.xlu0 %1162, %v1086
    %v1164 = vpop.permute.xlu0 %1163
    %1165 = vset.pattern.permute.xlu0 0
    %1166 = vperm.xlu0 %1165, %v1087
    %v1167 = vpop.permute.xlu0 %1166
    %1168 = vset.pattern.permute.xlu0 0
    %1169 = vperm.xlu0 %1168, %v1088
    %v1170 = vpop.permute.xlu0 %1169
    %1171 = vset.pattern.permute.xlu0 0
    %1172 = vperm.xlu0 %1171, %v1089
    %v1173 = vpop.permute.xlu0 %1172
    %1174 = vset.pattern.permute.xlu0 0
    %1175 = vperm.xlu0 %1174, %v1090
    %v1176 = vpop.permute.xlu0 %1175
    %1177 = vset.pattern.permute.xlu0 0
    %1178 = vperm.xlu0 %1177, %v1091
    %v1179 = vpop.permute.xlu0 %1178
    %1180 = vset.pattern.permute.xlu0 0
    %1181 = vperm.xlu0 %1180, %v1092
    %v1182 = vpop.permute.xlu0 %1181
    %1183 = vset.pattern.permute.xlu0 0
    %1184 = vperm.xlu0 %1183, %v1093
    %v1185 = vpop.permute.xlu0 %1184
    %1186 = vset.pattern.permute.xlu0 0
    %1187 = vperm.xlu0 %1186, %v1094
    %v1188 = vpop.permute.xlu0 %1187
    %1189 = vset.pattern.permute.xlu0 0
    %1190 = vperm.xlu0 %1189, %v1095
    %v1191 = vpop.permute.xlu0 %1190
    %1192 = vset.pattern.permute.xlu0 0
    %1193 = vperm.xlu0 %1192, %v1096
    %v1194 = vpop.permute.xlu0 %1193
    %1195 = vset.pattern.permute.xlu0 0
    %1196 = vperm.xlu0 %1195, %v1097
    %v1197 = vpop.permute.xlu0 %1196
    %1198 = vset.pattern.permute.xlu0 0
    %1199 = vperm.xlu0 %1198, %v1098
    %v1200 = vpop.permute.xlu0 %1199
    %1201 = vset.pattern.permute.xlu0 0
    %1202 = vperm.xlu0 %1201, %v1099
    %v1203 = vpop.permute.xlu0 %1202
    %1204 = vset.pattern.permute.xlu0 0
    %1205 = vperm.xlu0 %1204, %v1100
    %v1206 = vpop.permute.xlu0 %1205
    %1207 = vset.pattern.permute.xlu0 0
    %1208 = vperm.xlu0 %1207, %v1101
    %v1209 = vpop.permute.xlu0 %1208
    %1210 = vset.pattern.permute.xlu0 0
    %1211 = vperm.xlu0 %1210, %v1102
    %v1212 = vpop.permute.xlu0 %1211
    %1213 = vset.pattern.permute.xlu0 0
    %1214 = vperm.xlu0 %1213, %v1103
    %v1215 = vpop.permute.xlu0 %1214
    %1216 = vset.pattern.permute.xlu0 0
    %1217 = vperm.xlu0 %1216, %v1104
    %v1218 = vpop.permute.xlu0 %1217
    %1219 = vset.pattern.permute.xlu0 0
    %1220 = vperm.xlu0 %1219, %v1105
    %v1221 = vpop.permute.xlu0 %1220
    %1222 = vset.pattern.permute.xlu0 0
    %1223 = vperm.xlu0 %1222, %v1106
    %v1224 = vpop.permute.xlu0 %1223
    %1225 = vset.pattern.permute.xlu0 0
    %1226 = vperm.xlu0 %1225, %v1107
    %v1227 = vpop.permute.xlu0 %1226
    %1228 = vset.pattern.permute.xlu0 0
    %1229 = vperm.xlu0 %1228, %v1108
    %v1230 = vpop.permute.xlu0 %1229
    %1231 = vset.pattern.permute.xlu0 0
    %1232 = vperm.xlu0 %1231, %v1109
    %v1233 = vpop.permute.xlu0 %1232
    %1234 = vset.pattern.permute.xlu0 0
    %1235 = vperm.xlu0 %1234, %v1110
    %v1236 = vpop.permute.xlu0 %1235
    %1237 = vset.pattern.permute.xlu0 0
    %1238 = vperm.xlu0 %1237, %v1111
    %v1239 = vpop.permute.xlu0 %1238
    %1240 = vset.pattern.permute.xlu0 0
    %1241 = vperm.xlu0 %1240, %v1112
    %v1242 = vpop.permute.xlu0 %1241
    %v1243 = vlaneseq
    %v1244 = vand.u32 %v1243, 127
    %v1245 = vlaneseq
    %v1246 = vshrl.u32 %v1245, 7
    %v1247 = vsub.s32 %v1244, %v1246
    %v1248 = vrot.slane %v1149, %v1247
    %v1249 = vadd.s32 %v1244, 4294967288
    %v1250 = vlaneseq
    %v1251 = vshrl.u32 %v1250, 7
    %v1252 = vsub.s32 %v1249, %v1251
    %v1253 = vrot.slane %v1152, %v1252
    %vm1254 = vcmask 130112
    %v1255 = vsel %vm1254, %v1253, %v1248
    %v1256 = vlaneseq
    %v1257 = vshrl.u32 %v1256, 7
    %v1258 = vsub.s32 %v1244, %v1257
    %v1259 = vrot.slane %v1155, %v1258
    %v1260 = vlaneseq
    %v1261 = vshrl.u32 %v1260, 7
    %v1262 = vsub.s32 %v1249, %v1261
    %v1263 = vrot.slane %v1158, %v1262
    %v1264 = vsel %vm1254, %v1263, %v1259
    %v1265 = vlaneseq
    %v1266 = vshrl.u32 %v1265, 7
    %v1267 = vsub.s32 %v1244, %v1266
    %v1268 = vrot.slane %v1161, %v1267
    %v1269 = vlaneseq
    %v1270 = vshrl.u32 %v1269, 7
    %v1271 = vsub.s32 %v1249, %v1270
    %v1272 = vrot.slane %v1164, %v1271
    %v1273 = vsel %vm1254, %v1272, %v1268
    %v1274 = vlaneseq
    %v1275 = vshrl.u32 %v1274, 7
    %v1276 = vsub.s32 %v1244, %v1275
    %v1277 = vrot.slane %v1167, %v1276
    %v1278 = vlaneseq
    %v1279 = vshrl.u32 %v1278, 7
    %v1280 = vsub.s32 %v1249, %v1279
    %v1281 = vrot.slane %v1170, %v1280
    %v1282 = vsel %vm1254, %v1281, %v1277
    %v1283 = vlaneseq
    %v1284 = vshrl.u32 %v1283, 7
    %v1285 = vsub.s32 %v1244, %v1284
    %v1286 = vrot.slane %v1173, %v1285
    %v1287 = vlaneseq
    %v1288 = vshrl.u32 %v1287, 7
    %v1289 = vsub.s32 %v1249, %v1288
    %v1290 = vrot.slane %v1176, %v1289
    %v1291 = vsel %vm1254, %v1290, %v1286
    %v1292 = vlaneseq
    %v1293 = vshrl.u32 %v1292, 7
    %v1294 = vsub.s32 %v1244, %v1293
    %v1295 = vrot.slane %v1179, %v1294
    %v1296 = vlaneseq
    %v1297 = vshrl.u32 %v1296, 7
    %v1298 = vsub.s32 %v1249, %v1297
    %v1299 = vrot.slane %v1182, %v1298
    %v1300 = vsel %vm1254, %v1299, %v1295
    %v1301 = vlaneseq
    %v1302 = vshrl.u32 %v1301, 7
    %v1303 = vsub.s32 %v1244, %v1302
    %v1304 = vrot.slane %v1185, %v1303
    %v1305 = vlaneseq
    %v1306 = vshrl.u32 %v1305, 7
    %v1307 = vsub.s32 %v1249, %v1306
    %v1308 = vrot.slane %v1188, %v1307
    %v1309 = vsel %vm1254, %v1308, %v1304
    %v1310 = vlaneseq
    %v1311 = vshrl.u32 %v1310, 7
    %v1312 = vsub.s32 %v1244, %v1311
    %v1313 = vrot.slane %v1191, %v1312
    %v1314 = vlaneseq
    %v1315 = vshrl.u32 %v1314, 7
    %v1316 = vsub.s32 %v1249, %v1315
    %v1317 = vrot.slane %v1194, %v1316
    %v1318 = vsel %vm1254, %v1317, %v1313
    %v1319 = vlaneseq
    %v1320 = vshrl.u32 %v1319, 7
    %v1321 = vsub.s32 %v1244, %v1320
    %v1322 = vrot.slane %v1197, %v1321
    %v1323 = vlaneseq
    %v1324 = vshrl.u32 %v1323, 7
    %v1325 = vsub.s32 %v1249, %v1324
    %v1326 = vrot.slane %v1200, %v1325
    %v1327 = vsel %vm1254, %v1326, %v1322
    %v1328 = vlaneseq
    %v1329 = vshrl.u32 %v1328, 7
    %v1330 = vsub.s32 %v1244, %v1329
    %v1331 = vrot.slane %v1203, %v1330
    %v1332 = vlaneseq
    %v1333 = vshrl.u32 %v1332, 7
    %v1334 = vsub.s32 %v1249, %v1333
    %v1335 = vrot.slane %v1206, %v1334
    %v1336 = vsel %vm1254, %v1335, %v1331
    %v1337 = vlaneseq
    %v1338 = vshrl.u32 %v1337, 7
    %v1339 = vsub.s32 %v1244, %v1338
    %v1340 = vrot.slane %v1209, %v1339
    %v1341 = vlaneseq
    %v1342 = vshrl.u32 %v1341, 7
    %v1343 = vsub.s32 %v1249, %v1342
    %v1344 = vrot.slane %v1212, %v1343
    %v1345 = vsel %vm1254, %v1344, %v1340
    %v1346 = vlaneseq
    %v1347 = vshrl.u32 %v1346, 7
    %v1348 = vsub.s32 %v1244, %v1347
    %v1349 = vrot.slane %v1215, %v1348
    %v1350 = vlaneseq
    %v1351 = vshrl.u32 %v1350, 7
    %v1352 = vsub.s32 %v1249, %v1351
    %v1353 = vrot.slane %v1218, %v1352
    %v1354 = vsel %vm1254, %v1353, %v1349
    %v1355 = vlaneseq
    %v1356 = vshrl.u32 %v1355, 7
    %v1357 = vsub.s32 %v1244, %v1356
    %v1358 = vrot.slane %v1221, %v1357
    %v1359 = vlaneseq
    %v1360 = vshrl.u32 %v1359, 7
    %v1361 = vsub.s32 %v1249, %v1360
    %v1362 = vrot.slane %v1224, %v1361
    %v1363 = vsel %vm1254, %v1362, %v1358
    %v1364 = vlaneseq
    %v1365 = vshrl.u32 %v1364, 7
    %v1366 = vsub.s32 %v1244, %v1365
    %v1367 = vrot.slane %v1227, %v1366
    %v1368 = vlaneseq
    %v1369 = vshrl.u32 %v1368, 7
    %v1370 = vsub.s32 %v1249, %v1369
    %v1371 = vrot.slane %v1230, %v1370
    %v1372 = vsel %vm1254, %v1371, %v1367
    %v1373 = vlaneseq
    %v1374 = vshrl.u32 %v1373, 7
    %v1375 = vsub.s32 %v1244, %v1374
    %v1376 = vrot.slane %v1233, %v1375
    %v1377 = vlaneseq
    %v1378 = vshrl.u32 %v1377, 7
    %v1379 = vsub.s32 %v1249, %v1378
    %v1380 = vrot.slane %v1236, %v1379
    %v1381 = vsel %vm1254, %v1380, %v1376
    %v1382 = vlaneseq
    %v1383 = vshrl.u32 %v1382, 7
    %v1384 = vsub.s32 %v1244, %v1383
    %v1385 = vrot.slane %v1239, %v1384
    %v1386 = vlaneseq
    %v1387 = vshrl.u32 %v1386, 7
    %v1388 = vsub.s32 %v1249, %v1387
    %v1389 = vrot.slane %v1242, %v1388
    %v1390 = vsel %vm1254, %v1389, %v1385
    %vm1391 = vcmask 1041409
    %v1392 = vsel %vm1391, %v1264, %v1255
    %vm1393 = vcmask 1042434
    %v1394 = vsel %vm1393, %v1273, %v1392
    %vm1395 = vcmask 1043459
    %v1396 = vsel %vm1395, %v1282, %v1394
    %vm1397 = vcmask 1044484
    %v1398 = vsel %vm1397, %v1291, %v1396
    %vm1399 = vcmask 1045509
    %v1400 = vsel %vm1399, %v1300, %v1398
    %vm1401 = vcmask 1046534
    %v1402 = vsel %vm1401, %v1309, %v1400
    %vm1403 = vcmask 1047559
    %v1404 = vsel %vm1403, %v1318, %v1402
    %v1405 = vsel %vm1391, %v1336, %v1327
    %v1406 = vsel %vm1393, %v1345, %v1405
    %v1407 = vsel %vm1395, %v1354, %v1406
    %v1408 = vsel %vm1397, %v1363, %v1407
    %v1409 = vsel %vm1399, %v1372, %v1408
    %v1410 = vsel %vm1401, %v1381, %v1409
    %v1411 = vsel %vm1403, %v1390, %v1410
    %v1414 = vsel %vm1113, %v1404, -1e+30
    %v1415 = vsel %vm1114, %v1411, -1e+30
    %vm1416 = vcmask 130048
    %v1417 = vsel %vm1416, %v1414, -inf
    %1418 = vmax.xlane.f32.xlu0 %v1417
    %v1419 = vpop.xlane.xlu0 %1418
    %v1420 = vsel %vm1416, %v1415, -inf
    %1421 = vmax.xlane.f32.xlu0 %v1420
    %v1422 = vpop.xlane.xlu0 %1421
    %v1425 = vlaneseq
    %v1426 = vshrl.u32 %v1425, 7
    %v1427 = vsub.s32 0, %v1426
    %v1428 = vrot.slane %v1419, %v1427
    %v1429 = vlaneseq
    %v1430 = vshrl.u32 %v1429, 7
    %v1431 = vsub.s32 1, %v1430
    %v1432 = vrot.slane %v1419, %v1431
    %v1433 = vlaneseq
    %v1434 = vshrl.u32 %v1433, 7
    %v1435 = vsub.s32 2, %v1434
    %v1436 = vrot.slane %v1419, %v1435
    %v1437 = vlaneseq
    %v1438 = vshrl.u32 %v1437, 7
    %v1439 = vsub.s32 3, %v1438
    %v1440 = vrot.slane %v1419, %v1439
    %v1441 = vlaneseq
    %v1442 = vshrl.u32 %v1441, 7
    %v1443 = vsub.s32 4, %v1442
    %v1444 = vrot.slane %v1419, %v1443
    %v1445 = vlaneseq
    %v1446 = vshrl.u32 %v1445, 7
    %v1447 = vsub.s32 5, %v1446
    %v1448 = vrot.slane %v1419, %v1447
    %v1449 = vlaneseq
    %v1450 = vshrl.u32 %v1449, 7
    %v1451 = vsub.s32 6, %v1450
    %v1452 = vrot.slane %v1419, %v1451
    %v1453 = vlaneseq
    %v1454 = vshrl.u32 %v1453, 7
    %v1455 = vsub.s32 7, %v1454
    %v1456 = vrot.slane %v1419, %v1455
    %v1457 = vlaneseq
    %v1458 = vshrl.u32 %v1457, 7
    %v1459 = vsub.s32 0, %v1458
    %v1460 = vrot.slane %v1422, %v1459
    %v1461 = vlaneseq
    %v1462 = vshrl.u32 %v1461, 7
    %v1463 = vsub.s32 1, %v1462
    %v1464 = vrot.slane %v1422, %v1463
    %v1465 = vlaneseq
    %v1466 = vshrl.u32 %v1465, 7
    %v1467 = vsub.s32 2, %v1466
    %v1468 = vrot.slane %v1422, %v1467
    %v1469 = vlaneseq
    %v1470 = vshrl.u32 %v1469, 7
    %v1471 = vsub.s32 3, %v1470
    %v1472 = vrot.slane %v1422, %v1471
    %v1473 = vlaneseq
    %v1474 = vshrl.u32 %v1473, 7
    %v1475 = vsub.s32 4, %v1474
    %v1476 = vrot.slane %v1422, %v1475
    %v1477 = vlaneseq
    %v1478 = vshrl.u32 %v1477, 7
    %v1479 = vsub.s32 5, %v1478
    %v1480 = vrot.slane %v1422, %v1479
    %v1481 = vlaneseq
    %v1482 = vshrl.u32 %v1481, 7
    %v1483 = vsub.s32 6, %v1482
    %v1484 = vrot.slane %v1422, %v1483
    %v1485 = vlaneseq
    %v1486 = vshrl.u32 %v1485, 7
    %v1487 = vsub.s32 7, %v1486
    %v1488 = vrot.slane %v1422, %v1487
    %v1505 = vsub.f32 %v1081, %v1428
    %v1506 = vsub.f32 %v1082, %v1428
    %v1507 = vsub.f32 %v1083, %v1432
    %v1508 = vsub.f32 %v1084, %v1432
    %v1509 = vsub.f32 %v1085, %v1436
    %v1510 = vsub.f32 %v1086, %v1436
    %v1511 = vsub.f32 %v1087, %v1440
    %v1512 = vsub.f32 %v1088, %v1440
    %v1513 = vsub.f32 %v1089, %v1444
    %v1514 = vsub.f32 %v1090, %v1444
    %v1515 = vsub.f32 %v1091, %v1448
    %v1516 = vsub.f32 %v1092, %v1448
    %v1517 = vsub.f32 %v1093, %v1452
    %v1518 = vsub.f32 %v1094, %v1452
    %v1519 = vsub.f32 %v1095, %v1456
    %v1520 = vsub.f32 %v1096, %v1456
    %v1521 = vsub.f32 %v1097, %v1460
    %v1522 = vsub.f32 %v1098, %v1460
    %v1523 = vsub.f32 %v1099, %v1464
    %v1524 = vsub.f32 %v1100, %v1464
    %v1525 = vsub.f32 %v1101, %v1468
    %v1526 = vsub.f32 %v1102, %v1468
    %v1527 = vsub.f32 %v1103, %v1472
    %v1528 = vsub.f32 %v1104, %v1472
    %v1529 = vsub.f32 %v1105, %v1476
    %v1530 = vsub.f32 %v1106, %v1476
    %v1531 = vsub.f32 %v1107, %v1480
    %v1532 = vsub.f32 %v1108, %v1480
    %v1533 = vsub.f32 %v1109, %v1484
    %v1534 = vsub.f32 %v1110, %v1484
    %v1535 = vsub.f32 %v1111, %v1488
    %v1536 = vsub.f32 %v1112, %v1488
    %v1537 = vmul.f32 %v1505, 1.442695
    %v1538 = vpow.pop %v1537
    %v1539 = vmul.f32 %v1506, 1.442695
    %v1540 = vpow.pop %v1539
    %v1541 = vmul.f32 %v1507, 1.442695
    %v1542 = vpow.pop %v1541
    %v1543 = vmul.f32 %v1508, 1.442695
    %v1544 = vpow.pop %v1543
    %v1545 = vmul.f32 %v1509, 1.442695
    %v1546 = vpow.pop %v1545
    %v1547 = vmul.f32 %v1510, 1.442695
    %v1548 = vpow.pop %v1547
    %v1549 = vmul.f32 %v1511, 1.442695
    %v1550 = vpow.pop %v1549
    %v1551 = vmul.f32 %v1512, 1.442695
    %v1552 = vpow.pop %v1551
    %v1553 = vmul.f32 %v1513, 1.442695
    %v1554 = vpow.pop %v1553
    %v1555 = vmul.f32 %v1514, 1.442695
    %v1556 = vpow.pop %v1555
    %v1557 = vmul.f32 %v1515, 1.442695
    %v1558 = vpow.pop %v1557
    %v1559 = vmul.f32 %v1516, 1.442695
    %v1560 = vpow.pop %v1559
    %v1561 = vmul.f32 %v1517, 1.442695
    %v1562 = vpow.pop %v1561
    %v1563 = vmul.f32 %v1518, 1.442695
    %v1564 = vpow.pop %v1563
    %v1565 = vmul.f32 %v1519, 1.442695
    %v1566 = vpow.pop %v1565
    %v1567 = vmul.f32 %v1520, 1.442695
    %v1568 = vpow.pop %v1567
    %v1569 = vmul.f32 %v1521, 1.442695
    %v1570 = vpow.pop %v1569
    %v1571 = vmul.f32 %v1522, 1.442695
    %v1572 = vpow.pop %v1571
    %v1573 = vmul.f32 %v1523, 1.442695
    %v1574 = vpow.pop %v1573
    %v1575 = vmul.f32 %v1524, 1.442695
    %v1576 = vpow.pop %v1575
    %v1577 = vmul.f32 %v1525, 1.442695
    %v1578 = vpow.pop %v1577
    %v1579 = vmul.f32 %v1526, 1.442695
    %v1580 = vpow.pop %v1579
    %v1581 = vmul.f32 %v1527, 1.442695
    %v1582 = vpow.pop %v1581
    %v1583 = vmul.f32 %v1528, 1.442695
    %v1584 = vpow.pop %v1583
    %v1585 = vmul.f32 %v1529, 1.442695
    %v1586 = vpow.pop %v1585
    %v1587 = vmul.f32 %v1530, 1.442695
    %v1588 = vpow.pop %v1587
    %v1589 = vmul.f32 %v1531, 1.442695
    %v1590 = vpow.pop %v1589
    %v1591 = vmul.f32 %v1532, 1.442695
    %v1592 = vpow.pop %v1591
    %v1593 = vmul.f32 %v1533, 1.442695
    %v1594 = vpow.pop %v1593
    %v1595 = vmul.f32 %v1534, 1.442695
    %v1596 = vpow.pop %v1595
    %v1597 = vmul.f32 %v1535, 1.442695
    %v1598 = vpow.pop %v1597
    %v1599 = vmul.f32 %v1536, 1.442695
    %v1600 = vpow.pop %v1599
    %1633 = vset.pattern.permute.xlu0 0
    %1634 = vperm.xlu0 %1633, %v1538
    %v1635 = vpop.permute.xlu0 %1634
    %1636 = vset.pattern.permute.xlu0 0
    %1637 = vperm.xlu0 %1636, %v1540
    %v1638 = vpop.permute.xlu0 %1637
    %1639 = vset.pattern.permute.xlu0 0
    %1640 = vperm.xlu0 %1639, %v1542
    %v1641 = vpop.permute.xlu0 %1640
    %1642 = vset.pattern.permute.xlu0 0
    %1643 = vperm.xlu0 %1642, %v1544
    %v1644 = vpop.permute.xlu0 %1643
    %1645 = vset.pattern.permute.xlu0 0
    %1646 = vperm.xlu0 %1645, %v1546
    %v1647 = vpop.permute.xlu0 %1646
    %1648 = vset.pattern.permute.xlu0 0
    %1649 = vperm.xlu0 %1648, %v1548
    %v1650 = vpop.permute.xlu0 %1649
    %1651 = vset.pattern.permute.xlu0 0
    %1652 = vperm.xlu0 %1651, %v1550
    %v1653 = vpop.permute.xlu0 %1652
    %1654 = vset.pattern.permute.xlu0 0
    %1655 = vperm.xlu0 %1654, %v1552
    %v1656 = vpop.permute.xlu0 %1655
    %1657 = vset.pattern.permute.xlu0 0
    %1658 = vperm.xlu0 %1657, %v1554
    %v1659 = vpop.permute.xlu0 %1658
    %1660 = vset.pattern.permute.xlu0 0
    %1661 = vperm.xlu0 %1660, %v1556
    %v1662 = vpop.permute.xlu0 %1661
    %1663 = vset.pattern.permute.xlu0 0
    %1664 = vperm.xlu0 %1663, %v1558
    %v1665 = vpop.permute.xlu0 %1664
    %1666 = vset.pattern.permute.xlu0 0
    %1667 = vperm.xlu0 %1666, %v1560
    %v1668 = vpop.permute.xlu0 %1667
    %1669 = vset.pattern.permute.xlu0 0
    %1670 = vperm.xlu0 %1669, %v1562
    %v1671 = vpop.permute.xlu0 %1670
    %1672 = vset.pattern.permute.xlu0 0
    %1673 = vperm.xlu0 %1672, %v1564
    %v1674 = vpop.permute.xlu0 %1673
    %1675 = vset.pattern.permute.xlu0 0
    %1676 = vperm.xlu0 %1675, %v1566
    %v1677 = vpop.permute.xlu0 %1676
    %1678 = vset.pattern.permute.xlu0 0
    %1679 = vperm.xlu0 %1678, %v1568
    %v1680 = vpop.permute.xlu0 %1679
    %1681 = vset.pattern.permute.xlu0 0
    %1682 = vperm.xlu0 %1681, %v1570
    %v1683 = vpop.permute.xlu0 %1682
    %1684 = vset.pattern.permute.xlu0 0
    %1685 = vperm.xlu0 %1684, %v1572
    %v1686 = vpop.permute.xlu0 %1685
    %1687 = vset.pattern.permute.xlu0 0
    %1688 = vperm.xlu0 %1687, %v1574
    %v1689 = vpop.permute.xlu0 %1688
    %1690 = vset.pattern.permute.xlu0 0
    %1691 = vperm.xlu0 %1690, %v1576
    %v1692 = vpop.permute.xlu0 %1691
    %1693 = vset.pattern.permute.xlu0 0
    %1694 = vperm.xlu0 %1693, %v1578
    %v1695 = vpop.permute.xlu0 %1694
    %1696 = vset.pattern.permute.xlu0 0
    %1697 = vperm.xlu0 %1696, %v1580
    %v1698 = vpop.permute.xlu0 %1697
    %1699 = vset.pattern.permute.xlu0 0
    %1700 = vperm.xlu0 %1699, %v1582
    %v1701 = vpop.permute.xlu0 %1700
    %1702 = vset.pattern.permute.xlu0 0
    %1703 = vperm.xlu0 %1702, %v1584
    %v1704 = vpop.permute.xlu0 %1703
    %1705 = vset.pattern.permute.xlu0 0
    %1706 = vperm.xlu0 %1705, %v1586
    %v1707 = vpop.permute.xlu0 %1706
    %1708 = vset.pattern.permute.xlu0 0
    %1709 = vperm.xlu0 %1708, %v1588
    %v1710 = vpop.permute.xlu0 %1709
    %1711 = vset.pattern.permute.xlu0 0
    %1712 = vperm.xlu0 %1711, %v1590
    %v1713 = vpop.permute.xlu0 %1712
    %1714 = vset.pattern.permute.xlu0 0
    %1715 = vperm.xlu0 %1714, %v1592
    %v1716 = vpop.permute.xlu0 %1715
    %1717 = vset.pattern.permute.xlu0 0
    %1718 = vperm.xlu0 %1717, %v1594
    %v1719 = vpop.permute.xlu0 %1718
    %1720 = vset.pattern.permute.xlu0 0
    %1721 = vperm.xlu0 %1720, %v1596
    %v1722 = vpop.permute.xlu0 %1721
    %1723 = vset.pattern.permute.xlu0 0
    %1724 = vperm.xlu0 %1723, %v1598
    %v1725 = vpop.permute.xlu0 %1724
    %1726 = vset.pattern.permute.xlu0 0
    %1727 = vperm.xlu0 %1726, %v1600
    %v1728 = vpop.permute.xlu0 %1727
    %v1729 = vlaneseq
    %v1730 = vshrl.u32 %v1729, 7
    %v1731 = vsub.s32 %v1244, %v1730
    %v1732 = vrot.slane %v1635, %v1731
    %v1733 = vlaneseq
    %v1734 = vshrl.u32 %v1733, 7
    %v1735 = vsub.s32 %v1249, %v1734
    %v1736 = vrot.slane %v1638, %v1735
    %v1737 = vsel %vm1254, %v1736, %v1732
    %v1738 = vlaneseq
    %v1739 = vshrl.u32 %v1738, 7
    %v1740 = vsub.s32 %v1244, %v1739
    %v1741 = vrot.slane %v1641, %v1740
    %v1742 = vlaneseq
    %v1743 = vshrl.u32 %v1742, 7
    %v1744 = vsub.s32 %v1249, %v1743
    %v1745 = vrot.slane %v1644, %v1744
    %v1746 = vsel %vm1254, %v1745, %v1741
    %v1747 = vlaneseq
    %v1748 = vshrl.u32 %v1747, 7
    %v1749 = vsub.s32 %v1244, %v1748
    %v1750 = vrot.slane %v1647, %v1749
    %v1751 = vlaneseq
    %v1752 = vshrl.u32 %v1751, 7
    %v1753 = vsub.s32 %v1249, %v1752
    %v1754 = vrot.slane %v1650, %v1753
    %v1755 = vsel %vm1254, %v1754, %v1750
    %v1756 = vlaneseq
    %v1757 = vshrl.u32 %v1756, 7
    %v1758 = vsub.s32 %v1244, %v1757
    %v1759 = vrot.slane %v1653, %v1758
    %v1760 = vlaneseq
    %v1761 = vshrl.u32 %v1760, 7
    %v1762 = vsub.s32 %v1249, %v1761
    %v1763 = vrot.slane %v1656, %v1762
    %v1764 = vsel %vm1254, %v1763, %v1759
    %v1765 = vlaneseq
    %v1766 = vshrl.u32 %v1765, 7
    %v1767 = vsub.s32 %v1244, %v1766
    %v1768 = vrot.slane %v1659, %v1767
    %v1769 = vlaneseq
    %v1770 = vshrl.u32 %v1769, 7
    %v1771 = vsub.s32 %v1249, %v1770
    %v1772 = vrot.slane %v1662, %v1771
    %v1773 = vsel %vm1254, %v1772, %v1768
    %v1774 = vlaneseq
    %v1775 = vshrl.u32 %v1774, 7
    %v1776 = vsub.s32 %v1244, %v1775
    %v1777 = vrot.slane %v1665, %v1776
    %v1778 = vlaneseq
    %v1779 = vshrl.u32 %v1778, 7
    %v1780 = vsub.s32 %v1249, %v1779
    %v1781 = vrot.slane %v1668, %v1780
    %v1782 = vsel %vm1254, %v1781, %v1777
    %v1783 = vlaneseq
    %v1784 = vshrl.u32 %v1783, 7
    %v1785 = vsub.s32 %v1244, %v1784
    %v1786 = vrot.slane %v1671, %v1785
    %v1787 = vlaneseq
    %v1788 = vshrl.u32 %v1787, 7
    %v1789 = vsub.s32 %v1249, %v1788
    %v1790 = vrot.slane %v1674, %v1789
    %v1791 = vsel %vm1254, %v1790, %v1786
    %v1792 = vlaneseq
    %v1793 = vshrl.u32 %v1792, 7
    %v1794 = vsub.s32 %v1244, %v1793
    %v1795 = vrot.slane %v1677, %v1794
    %v1796 = vlaneseq
    %v1797 = vshrl.u32 %v1796, 7
    %v1798 = vsub.s32 %v1249, %v1797
    %v1799 = vrot.slane %v1680, %v1798
    %v1800 = vsel %vm1254, %v1799, %v1795
    %v1801 = vlaneseq
    %v1802 = vshrl.u32 %v1801, 7
    %v1803 = vsub.s32 %v1244, %v1802
    %v1804 = vrot.slane %v1683, %v1803
    %v1805 = vlaneseq
    %v1806 = vshrl.u32 %v1805, 7
    %v1807 = vsub.s32 %v1249, %v1806
    %v1808 = vrot.slane %v1686, %v1807
    %v1809 = vsel %vm1254, %v1808, %v1804
    %v1810 = vlaneseq
    %v1811 = vshrl.u32 %v1810, 7
    %v1812 = vsub.s32 %v1244, %v1811
    %v1813 = vrot.slane %v1689, %v1812
    %v1814 = vlaneseq
    %v1815 = vshrl.u32 %v1814, 7
    %v1816 = vsub.s32 %v1249, %v1815
    %v1817 = vrot.slane %v1692, %v1816
    %v1818 = vsel %vm1254, %v1817, %v1813
    %v1819 = vlaneseq
    %v1820 = vshrl.u32 %v1819, 7
    %v1821 = vsub.s32 %v1244, %v1820
    %v1822 = vrot.slane %v1695, %v1821
    %v1823 = vlaneseq
    %v1824 = vshrl.u32 %v1823, 7
    %v1825 = vsub.s32 %v1249, %v1824
    %v1826 = vrot.slane %v1698, %v1825
    %v1827 = vsel %vm1254, %v1826, %v1822
    %v1828 = vlaneseq
    %v1829 = vshrl.u32 %v1828, 7
    %v1830 = vsub.s32 %v1244, %v1829
    %v1831 = vrot.slane %v1701, %v1830
    %v1832 = vlaneseq
    %v1833 = vshrl.u32 %v1832, 7
    %v1834 = vsub.s32 %v1249, %v1833
    %v1835 = vrot.slane %v1704, %v1834
    %v1836 = vsel %vm1254, %v1835, %v1831
    %v1837 = vlaneseq
    %v1838 = vshrl.u32 %v1837, 7
    %v1839 = vsub.s32 %v1244, %v1838
    %v1840 = vrot.slane %v1707, %v1839
    %v1841 = vlaneseq
    %v1842 = vshrl.u32 %v1841, 7
    %v1843 = vsub.s32 %v1249, %v1842
    %v1844 = vrot.slane %v1710, %v1843
    %v1845 = vsel %vm1254, %v1844, %v1840
    %v1846 = vlaneseq
    %v1847 = vshrl.u32 %v1846, 7
    %v1848 = vsub.s32 %v1244, %v1847
    %v1849 = vrot.slane %v1713, %v1848
    %v1850 = vlaneseq
    %v1851 = vshrl.u32 %v1850, 7
    %v1852 = vsub.s32 %v1249, %v1851
    %v1853 = vrot.slane %v1716, %v1852
    %v1854 = vsel %vm1254, %v1853, %v1849
    %v1855 = vlaneseq
    %v1856 = vshrl.u32 %v1855, 7
    %v1857 = vsub.s32 %v1244, %v1856
    %v1858 = vrot.slane %v1719, %v1857
    %v1859 = vlaneseq
    %v1860 = vshrl.u32 %v1859, 7
    %v1861 = vsub.s32 %v1249, %v1860
    %v1862 = vrot.slane %v1722, %v1861
    %v1863 = vsel %vm1254, %v1862, %v1858
    %v1864 = vlaneseq
    %v1865 = vshrl.u32 %v1864, 7
    %v1866 = vsub.s32 %v1244, %v1865
    %v1867 = vrot.slane %v1725, %v1866
    %v1868 = vlaneseq
    %v1869 = vshrl.u32 %v1868, 7
    %v1870 = vsub.s32 %v1249, %v1869
    %v1871 = vrot.slane %v1728, %v1870
    %v1872 = vsel %vm1254, %v1871, %v1867
    %v1873 = vsel %vm1391, %v1746, %v1737
    %v1874 = vsel %vm1393, %v1755, %v1873
    %v1875 = vsel %vm1395, %v1764, %v1874
    %v1876 = vsel %vm1397, %v1773, %v1875
    %v1877 = vsel %vm1399, %v1782, %v1876
    %v1878 = vsel %vm1401, %v1791, %v1877
    %v1879 = vsel %vm1403, %v1800, %v1878
    %v1880 = vsel %vm1391, %v1818, %v1809
    %v1881 = vsel %vm1393, %v1827, %v1880
    %v1882 = vsel %vm1395, %v1836, %v1881
    %v1883 = vsel %vm1397, %v1845, %v1882
    %v1884 = vsel %vm1399, %v1854, %v1883
    %v1885 = vsel %vm1401, %v1863, %v1884
    %v1886 = vsel %vm1403, %v1872, %v1885
    %v1889 = vsel %vm1113, %v1879, 0.0
    %v1890 = vsel %vm1114, %v1886, 0.0
    %v1891 = vsel %vm1416, %v1889, 0.0
    %1892 = vadd.xlane.f32.xlu0 %v1891
    %v1893 = vpop.xlane.xlu0 %1892
    %v1894 = vsel %vm1416, %v1890, 0.0
    %1895 = vadd.xlane.f32.xlu0 %v1894
    %v1896 = vpop.xlane.xlu0 %1895
    %v1897 = vadd.f32 %v1893, 1e-16
    %v1898 = vadd.f32 %v1896, 1e-16
    %v1899 = vrcp.pop %v1897
    %v1900 = vrcp.pop %v1898
    %v1901 = vmul.f32 %v1889, %v1899
    %v1902 = vmul.f32 %v1890, %v1900
    %v1903 = vlaneseq
    %v1904 = vshrl.u32 %v1903, 7
    %v1905 = vsub.s32 0, %v1904
    %v1906 = vrot.slane %v1901, %v1905
    %1908 = vbcast.lane.b32.xlu0 %v1906, 256
    %v1909 = vpop.permute.xlu0 %1908
    %s1911 = sor.u32 256, 8
    %1912 = vbcast.lane.b32.xlu0 %v1906, %s1911
    %v1913 = vpop.permute.xlu0 %1912
    %v1914 = vlaneseq
    %v1915 = vshrl.u32 %v1914, 7
    %v1916 = vsub.s32 1, %v1915
    %v1917 = vrot.slane %v1901, %v1916
    %1919 = vbcast.lane.b32.xlu0 %v1917, 256
    %v1920 = vpop.permute.xlu0 %1919
    %s1922 = sor.u32 256, 8
    %1923 = vbcast.lane.b32.xlu0 %v1917, %s1922
    %v1924 = vpop.permute.xlu0 %1923
    %v1925 = vlaneseq
    %v1926 = vshrl.u32 %v1925, 7
    %v1927 = vsub.s32 2, %v1926
    %v1928 = vrot.slane %v1901, %v1927
    %1930 = vbcast.lane.b32.xlu0 %v1928, 256
    %v1931 = vpop.permute.xlu0 %1930
    %s1933 = sor.u32 256, 8
    %1934 = vbcast.lane.b32.xlu0 %v1928, %s1933
    %v1935 = vpop.permute.xlu0 %1934
    %v1936 = vlaneseq
    %v1937 = vshrl.u32 %v1936, 7
    %v1938 = vsub.s32 3, %v1937
    %v1939 = vrot.slane %v1901, %v1938
    %1941 = vbcast.lane.b32.xlu0 %v1939, 256
    %v1942 = vpop.permute.xlu0 %1941
    %s1944 = sor.u32 256, 8
    %1945 = vbcast.lane.b32.xlu0 %v1939, %s1944
    %v1946 = vpop.permute.xlu0 %1945
    %v1947 = vlaneseq
    %v1948 = vshrl.u32 %v1947, 7
    %v1949 = vsub.s32 4, %v1948
    %v1950 = vrot.slane %v1901, %v1949
    %1952 = vbcast.lane.b32.xlu0 %v1950, 256
    %v1953 = vpop.permute.xlu0 %1952
    %s1955 = sor.u32 256, 8
    %1956 = vbcast.lane.b32.xlu0 %v1950, %s1955
    %v1957 = vpop.permute.xlu0 %1956
    %v1958 = vlaneseq
    %v1959 = vshrl.u32 %v1958, 7
    %v1960 = vsub.s32 5, %v1959
    %v1961 = vrot.slane %v1901, %v1960
    %1963 = vbcast.lane.b32.xlu0 %v1961, 256
    %v1964 = vpop.permute.xlu0 %1963
    %s1966 = sor.u32 256, 8
    %1967 = vbcast.lane.b32.xlu0 %v1961, %s1966
    %v1968 = vpop.permute.xlu0 %1967
    %v1969 = vlaneseq
    %v1970 = vshrl.u32 %v1969, 7
    %v1971 = vsub.s32 6, %v1970
    %v1972 = vrot.slane %v1901, %v1971
    %1974 = vbcast.lane.b32.xlu0 %v1972, 256
    %v1975 = vpop.permute.xlu0 %1974
    %s1977 = sor.u32 256, 8
    %1978 = vbcast.lane.b32.xlu0 %v1972, %s1977
    %v1979 = vpop.permute.xlu0 %1978
    %v1980 = vlaneseq
    %v1981 = vshrl.u32 %v1980, 7
    %v1982 = vsub.s32 7, %v1981
    %v1983 = vrot.slane %v1901, %v1982
    %1985 = vbcast.lane.b32.xlu0 %v1983, 256
    %v1986 = vpop.permute.xlu0 %1985
    %s1988 = sor.u32 256, 8
    %1989 = vbcast.lane.b32.xlu0 %v1983, %s1988
    %v1990 = vpop.permute.xlu0 %1989
    %v1991 = vlaneseq
    %v1992 = vshrl.u32 %v1991, 7
    %v1993 = vsub.s32 0, %v1992
    %v1994 = vrot.slane %v1902, %v1993
    %1996 = vbcast.lane.b32.xlu0 %v1994, 256
    %v1997 = vpop.permute.xlu0 %1996
    %s1999 = sor.u32 256, 8
    %2000 = vbcast.lane.b32.xlu0 %v1994, %s1999
    %v2001 = vpop.permute.xlu0 %2000
    %v2002 = vlaneseq
    %v2003 = vshrl.u32 %v2002, 7
    %v2004 = vsub.s32 1, %v2003
    %v2005 = vrot.slane %v1902, %v2004
    %2007 = vbcast.lane.b32.xlu0 %v2005, 256
    %v2008 = vpop.permute.xlu0 %2007
    %s2010 = sor.u32 256, 8
    %2011 = vbcast.lane.b32.xlu0 %v2005, %s2010
    %v2012 = vpop.permute.xlu0 %2011
    %v2013 = vlaneseq
    %v2014 = vshrl.u32 %v2013, 7
    %v2015 = vsub.s32 2, %v2014
    %v2016 = vrot.slane %v1902, %v2015
    %2018 = vbcast.lane.b32.xlu0 %v2016, 256
    %v2019 = vpop.permute.xlu0 %2018
    %s2021 = sor.u32 256, 8
    %2022 = vbcast.lane.b32.xlu0 %v2016, %s2021
    %v2023 = vpop.permute.xlu0 %2022
    %v2024 = vlaneseq
    %v2025 = vshrl.u32 %v2024, 7
    %v2026 = vsub.s32 3, %v2025
    %v2027 = vrot.slane %v1902, %v2026
    %2029 = vbcast.lane.b32.xlu0 %v2027, 256
    %v2030 = vpop.permute.xlu0 %2029
    %s2032 = sor.u32 256, 8
    %2033 = vbcast.lane.b32.xlu0 %v2027, %s2032
    %v2034 = vpop.permute.xlu0 %2033
    %v2035 = vlaneseq
    %v2036 = vshrl.u32 %v2035, 7
    %v2037 = vsub.s32 4, %v2036
    %v2038 = vrot.slane %v1902, %v2037
    %2040 = vbcast.lane.b32.xlu0 %v2038, 256
    %v2041 = vpop.permute.xlu0 %2040
    %s2043 = sor.u32 256, 8
    %2044 = vbcast.lane.b32.xlu0 %v2038, %s2043
    %v2045 = vpop.permute.xlu0 %2044
    %v2046 = vlaneseq
    %v2047 = vshrl.u32 %v2046, 7
    %v2048 = vsub.s32 5, %v2047
    %v2049 = vrot.slane %v1902, %v2048
    %2051 = vbcast.lane.b32.xlu0 %v2049, 256
    %v2052 = vpop.permute.xlu0 %2051
    %s2054 = sor.u32 256, 8
    %2055 = vbcast.lane.b32.xlu0 %v2049, %s2054
    %v2056 = vpop.permute.xlu0 %2055
    %v2057 = vlaneseq
    %v2058 = vshrl.u32 %v2057, 7
    %v2059 = vsub.s32 6, %v2058
    %v2060 = vrot.slane %v1902, %v2059
    %2062 = vbcast.lane.b32.xlu0 %v2060, 256
    %v2063 = vpop.permute.xlu0 %2062
    %s2065 = sor.u32 256, 8
    %2066 = vbcast.lane.b32.xlu0 %v2060, %s2065
    %v2067 = vpop.permute.xlu0 %2066
    %v2068 = vlaneseq
    %v2069 = vshrl.u32 %v2068, 7
    %v2070 = vsub.s32 7, %v2069
    %v2071 = vrot.slane %v1902, %v2070
    %2073 = vbcast.lane.b32.xlu0 %v2071, 256
    %v2074 = vpop.permute.xlu0 %2073
    %s2076 = sor.u32 256, 8
    %2077 = vbcast.lane.b32.xlu0 %v2071, %s2076
    %v2078 = vpop.permute.xlu0 %2077
    %v2079 = vmul.f32 %v723, %v1909
    %v2080 = vmul.f32 %v724, %v1913
    %v2081 = vmul.f32 %v725, %v1920
    %v2082 = vmul.f32 %v726, %v1924
    %v2083 = vmul.f32 %v727, %v1931
    %v2084 = vmul.f32 %v728, %v1935
    %v2085 = vmul.f32 %v729, %v1942
    %v2086 = vmul.f32 %v730, %v1946
    %v2087 = vmul.f32 %v731, %v1953
    %v2088 = vmul.f32 %v732, %v1957
    %v2089 = vmul.f32 %v733, %v1964
    %v2090 = vmul.f32 %v734, %v1968
    %v2091 = vmul.f32 %v735, %v1975
    %v2092 = vmul.f32 %v736, %v1979
    %v2093 = vmul.f32 %v737, %v1986
    %v2094 = vmul.f32 %v738, %v1990
    %v2095 = vmul.f32 %v739, %v1997
    %v2096 = vmul.f32 %v740, %v2001
    %v2097 = vmul.f32 %v741, %v2008
    %v2098 = vmul.f32 %v742, %v2012
    %v2099 = vmul.f32 %v743, %v2019
    %v2100 = vmul.f32 %v744, %v2023
    %v2101 = vmul.f32 %v745, %v2030
    %v2102 = vmul.f32 %v746, %v2034
    %v2103 = vmul.f32 %v747, %v2041
    %v2104 = vmul.f32 %v748, %v2045
    %v2105 = vmul.f32 %v749, %v2052
    %v2106 = vmul.f32 %v750, %v2056
    %v2107 = vmul.f32 %v751, %v2063
    %v2108 = vmul.f32 %v752, %v2067
    %v2109 = vmul.f32 %v753, %v2074
    %v2110 = vmul.f32 %v754, %v2078
    %v2111 = vsel %vm223, %v2079, 0.0
    %v2112 = vsel %vm223, %v2080, 0.0
    %v2113 = vadd.f32 %v2111, %v2112
    %v2114 = vrot.slane %v2113, 4
    %v2115 = vadd.f32 %v2113, %v2114
    %v2116 = vrot.slane %v2115, 2
    %v2117 = vadd.f32 %v2115, %v2116
    %v2118 = vrot.slane %v2117, 1
    %v2119 = vadd.f32 %v2117, %v2118
    %v2120 = vsel %vm223, %v2081, 0.0
    %v2121 = vsel %vm223, %v2082, 0.0
    %v2122 = vadd.f32 %v2120, %v2121
    %v2123 = vrot.slane %v2122, 4
    %v2124 = vadd.f32 %v2122, %v2123
    %v2125 = vrot.slane %v2124, 2
    %v2126 = vadd.f32 %v2124, %v2125
    %v2127 = vrot.slane %v2126, 1
    %v2128 = vadd.f32 %v2126, %v2127
    %v2129 = vsel %vm223, %v2083, 0.0
    %v2130 = vsel %vm223, %v2084, 0.0
    %v2131 = vadd.f32 %v2129, %v2130
    %v2132 = vrot.slane %v2131, 4
    %v2133 = vadd.f32 %v2131, %v2132
    %v2134 = vrot.slane %v2133, 2
    %v2135 = vadd.f32 %v2133, %v2134
    %v2136 = vrot.slane %v2135, 1
    %v2137 = vadd.f32 %v2135, %v2136
    %v2138 = vsel %vm223, %v2085, 0.0
    %v2139 = vsel %vm223, %v2086, 0.0
    %v2140 = vadd.f32 %v2138, %v2139
    %v2141 = vrot.slane %v2140, 4
    %v2142 = vadd.f32 %v2140, %v2141
    %v2143 = vrot.slane %v2142, 2
    %v2144 = vadd.f32 %v2142, %v2143
    %v2145 = vrot.slane %v2144, 1
    %v2146 = vadd.f32 %v2144, %v2145
    %v2147 = vsel %vm223, %v2087, 0.0
    %v2148 = vsel %vm223, %v2088, 0.0
    %v2149 = vadd.f32 %v2147, %v2148
    %v2150 = vrot.slane %v2149, 4
    %v2151 = vadd.f32 %v2149, %v2150
    %v2152 = vrot.slane %v2151, 2
    %v2153 = vadd.f32 %v2151, %v2152
    %v2154 = vrot.slane %v2153, 1
    %v2155 = vadd.f32 %v2153, %v2154
    %v2156 = vsel %vm223, %v2089, 0.0
    %v2157 = vsel %vm223, %v2090, 0.0
    %v2158 = vadd.f32 %v2156, %v2157
    %v2159 = vrot.slane %v2158, 4
    %v2160 = vadd.f32 %v2158, %v2159
    %v2161 = vrot.slane %v2160, 2
    %v2162 = vadd.f32 %v2160, %v2161
    %v2163 = vrot.slane %v2162, 1
    %v2164 = vadd.f32 %v2162, %v2163
    %v2165 = vsel %vm223, %v2091, 0.0
    %v2166 = vsel %vm223, %v2092, 0.0
    %v2167 = vadd.f32 %v2165, %v2166
    %v2168 = vrot.slane %v2167, 4
    %v2169 = vadd.f32 %v2167, %v2168
    %v2170 = vrot.slane %v2169, 2
    %v2171 = vadd.f32 %v2169, %v2170
    %v2172 = vrot.slane %v2171, 1
    %v2173 = vadd.f32 %v2171, %v2172
    %v2174 = vsel %vm223, %v2093, 0.0
    %v2175 = vsel %vm223, %v2094, 0.0
    %v2176 = vadd.f32 %v2174, %v2175
    %v2177 = vrot.slane %v2176, 4
    %v2178 = vadd.f32 %v2176, %v2177
    %v2179 = vrot.slane %v2178, 2
    %v2180 = vadd.f32 %v2178, %v2179
    %v2181 = vrot.slane %v2180, 1
    %v2182 = vadd.f32 %v2180, %v2181
    %v2183 = vsel %vm223, %v2095, 0.0
    %v2184 = vsel %vm223, %v2096, 0.0
    %v2185 = vadd.f32 %v2183, %v2184
    %v2186 = vrot.slane %v2185, 4
    %v2187 = vadd.f32 %v2185, %v2186
    %v2188 = vrot.slane %v2187, 2
    %v2189 = vadd.f32 %v2187, %v2188
    %v2190 = vrot.slane %v2189, 1
    %v2191 = vadd.f32 %v2189, %v2190
    %v2192 = vsel %vm223, %v2097, 0.0
    %v2193 = vsel %vm223, %v2098, 0.0
    %v2194 = vadd.f32 %v2192, %v2193
    %v2195 = vrot.slane %v2194, 4
    %v2196 = vadd.f32 %v2194, %v2195
    %v2197 = vrot.slane %v2196, 2
    %v2198 = vadd.f32 %v2196, %v2197
    %v2199 = vrot.slane %v2198, 1
    %v2200 = vadd.f32 %v2198, %v2199
    %v2201 = vsel %vm223, %v2099, 0.0
    %v2202 = vsel %vm223, %v2100, 0.0
    %v2203 = vadd.f32 %v2201, %v2202
    %v2204 = vrot.slane %v2203, 4
    %v2205 = vadd.f32 %v2203, %v2204
    %v2206 = vrot.slane %v2205, 2
    %v2207 = vadd.f32 %v2205, %v2206
    %v2208 = vrot.slane %v2207, 1
    %v2209 = vadd.f32 %v2207, %v2208
    %v2210 = vsel %vm223, %v2101, 0.0
    %v2211 = vsel %vm223, %v2102, 0.0
    %v2212 = vadd.f32 %v2210, %v2211
    %v2213 = vrot.slane %v2212, 4
    %v2214 = vadd.f32 %v2212, %v2213
    %v2215 = vrot.slane %v2214, 2
    %v2216 = vadd.f32 %v2214, %v2215
    %v2217 = vrot.slane %v2216, 1
    %v2218 = vadd.f32 %v2216, %v2217
    %v2219 = vsel %vm223, %v2103, 0.0
    %v2220 = vsel %vm223, %v2104, 0.0
    %v2221 = vadd.f32 %v2219, %v2220
    %v2222 = vrot.slane %v2221, 4
    %v2223 = vadd.f32 %v2221, %v2222
    %v2224 = vrot.slane %v2223, 2
    %v2225 = vadd.f32 %v2223, %v2224
    %v2226 = vrot.slane %v2225, 1
    %v2227 = vadd.f32 %v2225, %v2226
    %v2228 = vsel %vm223, %v2105, 0.0
    %v2229 = vsel %vm223, %v2106, 0.0
    %v2230 = vadd.f32 %v2228, %v2229
    %v2231 = vrot.slane %v2230, 4
    %v2232 = vadd.f32 %v2230, %v2231
    %v2233 = vrot.slane %v2232, 2
    %v2234 = vadd.f32 %v2232, %v2233
    %v2235 = vrot.slane %v2234, 1
    %v2236 = vadd.f32 %v2234, %v2235
    %v2237 = vsel %vm223, %v2107, 0.0
    %v2238 = vsel %vm223, %v2108, 0.0
    %v2239 = vadd.f32 %v2237, %v2238
    %v2240 = vrot.slane %v2239, 4
    %v2241 = vadd.f32 %v2239, %v2240
    %v2242 = vrot.slane %v2241, 2
    %v2243 = vadd.f32 %v2241, %v2242
    %v2244 = vrot.slane %v2243, 1
    %v2245 = vadd.f32 %v2243, %v2244
    %v2246 = vsel %vm223, %v2109, 0.0
    %v2247 = vsel %vm223, %v2110, 0.0
    %v2248 = vadd.f32 %v2246, %v2247
    %v2249 = vrot.slane %v2248, 4
    %v2250 = vadd.f32 %v2248, %v2249
    %v2251 = vrot.slane %v2250, 2
    %v2252 = vadd.f32 %v2250, %v2251
    %v2253 = vrot.slane %v2252, 1
    %v2254 = vadd.f32 %v2252, %v2253
    %v2256 = vlaneseq
    %v2257 = vshrl.u32 %v2256, 7
    %v2258 = vsub.s32 0, %v2257
    %v2259 = vrot.slane %v222, %v2258
    %v2277 = vsel %vm1391, %v2128, %v2119
    %v2278 = vsel %vm1393, %v2137, %v2277
    %v2279 = vsel %vm1395, %v2146, %v2278
    %v2280 = vsel %vm1397, %v2155, %v2279
    %v2281 = vsel %vm1399, %v2164, %v2280
    %v2282 = vsel %vm1401, %v2173, %v2281
    %v2283 = vsel %vm1403, %v2182, %v2282
    %v2284 = vsel %vm1391, %v2200, %v2191
    %v2285 = vsel %vm1393, %v2209, %v2284
    %v2286 = vsel %vm1395, %v2218, %v2285
    %v2287 = vsel %vm1397, %v2227, %v2286
    %v2288 = vsel %vm1399, %v2236, %v2287
    %v2289 = vsel %vm1401, %v2245, %v2288
    %v2290 = vsel %vm1403, %v2254, %v2289
    %v2291 = vsel %vm223, %v2283, 0
    %v2293 = vsel %vm223, %v2290, 0
    %2295 = vmatprep.subr.mxu0 0.0
    %2296 = vmatpush1.msra.mxu0 0.0
    %2297 = vmatprep.subr.mxu0 0.0
    %2298 = vmatpush1.msra.mxu0 0.0
    %2299 = vmatprep.subr.mxu0 0.0
    %2300 = vmatpush1.msra.mxu0 0.0
    %2301 = vmatprep.subr.mxu0 0.0
    %2302 = vmatpush1.msra.mxu0 0.0
    %2303 = vmatprep.subr.mxu0 0.0
    %2304 = vmatpush1.msra.mxu0 0.0
    %2305 = vmatprep.subr.mxu0 0.0
    %2306 = vmatpush1.msra.mxu0 0.0
    %2307 = vmatprep.subr.mxu0 0.0
    %2308 = vmatpush1.msra.mxu0 0.0
    %2309 = vmatprep.subr.mxu0 0.0
    %2310 = vmatpush1.msra.mxu0 0.0
    %2311 = vmatprep.subr.mxu0 0.0
    %2312 = vmatpush1.msra.mxu0 0.0
    %2313 = vmatprep.subr.mxu0 0.0
    %2314 = vmatpush1.msra.mxu0 0.0
    %2315 = vmatprep.subr.mxu0 0.0
    %2316 = vmatpush1.msra.mxu0 0.0
    %2317 = vmatprep.subr.mxu0 0.0
    %2318 = vmatpush1.msra.mxu0 0.0
    %2319 = vmatprep.subr.mxu0 0.0
    %2320 = vmatpush1.msra.mxu0 %v221
    %2321 = vmatprep.subr.mxu0 0.0
    %2322 = vmatpush1.msra.mxu0 %v220
    %2323 = vmatprep.subr.mxu0 0.0
    %2324 = vmatpush1.msra.mxu0 %v219
    %2325 = vmatprep.subr.mxu0 0.0
    %2326 = vmatpush1.msra.mxu0 %v218
    %2327 = vmatprep.subr.mxu0 0.0
    %2328 = vmatpush2.msra.mxu0 0.0
    %2329 = vmatprep.subr.mxu0 0.0
    %2330 = vmatpush2.msra.mxu0 0.0
    %2331 = vmatprep.subr.mxu0 0.0
    %2332 = vmatpush2.msra.mxu0 0.0
    %2333 = vmatprep.subr.mxu0 0.0
    %2334 = vmatpush2.msra.mxu0 0.0
    %2335 = vmatprep.subr.mxu0 0.0
    %2336 = vmatpush2.msra.mxu0 0.0
    %2337 = vmatprep.subr.mxu0 0.0
    %2338 = vmatpush2.msra.mxu0 0.0
    %2339 = vmatprep.subr.mxu0 0.0
    %2340 = vmatpush2.msra.mxu0 0.0
    %2341 = vmatprep.subr.mxu0 0.0
    %2342 = vmatpush2.msra.mxu0 0.0
    %2343 = vmatprep.subr.mxu0 0.0
    %2344 = vmatpush2.msra.mxu0 0.0
    %2345 = vmatprep.subr.mxu0 0.0
    %2346 = vmatpush2.msra.mxu0 0.0
    %2347 = vmatprep.subr.mxu0 0.0
    %2348 = vmatpush2.msra.mxu0 0.0
    %2349 = vmatprep.subr.mxu0 0.0
    %2350 = vmatpush2.msra.mxu0 0.0
    %2351 = vmatprep.subr.mxu0 0.0
    %2352 = vmatpush2.msra.mxu0 0.0
    %2353 = vmatprep.subr.mxu0 0.0
    %2354 = vmatpush2.msra.mxu0 0.0
    %2355 = vmatprep.subr.mxu0 0.0
    %2356 = vmatpush2.msra.mxu0 0.0
    %2357 = vmatprep.subr.mxu0 0.0
    %2358 = vmatpush2.msra.mxu0 0.0
    %2359 = vmatprep.mubr.f32.mxu0 0.0
    %2360 = vmatmul.mubr.f32.gmra.mxu0 %v2291
    %v2361 = vpop.f32.mrf.mxu0
    %v2362 = vadd.f32 %v2259, %v2361
    %v2363 = vpop.f32.mrf.mxu0
    %2364 = vmatprep.mubr.f32.mxu0 0.0
    %2365 = vmatmul.mubr.f32.gmra.mxu0 %v2293
    %v2366 = vpop.f32.mrf.mxu0
    %v2367 = vadd.f32 %v2259, %v2366
    %v2368 = vpop.f32.mrf.mxu0
    %2369 = vdwg.mxu0
    %vm2370 = vcmp.gt.f32.partialorder %v2362, 0.0
    %vm2371 = vcmp.gt.f32.partialorder %v2367, 0.0
    %v2372 = vmin.f32 %v2362, 0.0
    %v2373 = vmin.f32 %v2367, 0.0
    %v2374 = vmul.f32 %v2372, 1.442695
    %v2375 = vpow.pop %v2374
    %v2376 = vmul.f32 %v2373, 1.442695
    %v2377 = vpow.pop %v2376
    %v2378 = vsub.f32 %v2375, 1.0
    %v2379 = vsub.f32 %v2377, 1.0
    %v2380 = vsel %vm2370, %v2362, %v2378
    %v2381 = vsel %vm2371, %v2367, %v2379
    %v2382 = vld [vmem:[%s11] sm:$0xff]
    %v2383 = vld [vmem:[%s11 + $0x8] sm:$0xff]
    %v2384 = vld [vmem:[%s11 + $0x10] sm:$0xff]
    %v2385 = vld [vmem:[%s11 + $0x18] sm:$0xff]
    %v2386 = vld [vmem:[%s12] sm:$0xff]
    %v2387 = vld [vmem:[%s12 + $0x8] sm:$0xff]
    %v2388 = vld [vmem:[%s12 + $0x10] sm:$0xff]
    %v2389 = vld [vmem:[%s12 + $0x18] sm:$0xff]
    %v2390 = vld [vmem:[%s13] sm:$0x1]
    %v2391 = vld [vmem:[%s14] sm:$0x1]
    %v2393 = vlaneseq
    %v2394 = vshrl.u32 %v2393, 7
    %v2395 = vsub.s32 0, %v2394
    %v2396 = vrot.slane %v2390, %v2395
    %v2399 = vsel %vm223, %v2380, 0
    %v2402 = vsel %vm223, %v2381, 0
    %2404 = vmatprep.subr.mxu0 0.0
    %2405 = vmatpush1.msra.mxu0 0.0
    %2406 = vmatprep.subr.mxu0 0.0
    %2407 = vmatpush1.msra.mxu0 0.0
    %2408 = vmatprep.subr.mxu0 0.0
    %2409 = vmatpush1.msra.mxu0 0.0
    %2410 = vmatprep.subr.mxu0 0.0
    %2411 = vmatpush1.msra.mxu0 0.0
    %2412 = vmatprep.subr.mxu0 0.0
    %2413 = vmatpush1.msra.mxu0 0.0
    %2414 = vmatprep.subr.mxu0 0.0
    %2415 = vmatpush1.msra.mxu0 0.0
    %2416 = vmatprep.subr.mxu0 0.0
    %2417 = vmatpush1.msra.mxu0 0.0
    %2418 = vmatprep.subr.mxu0 0.0
    %2419 = vmatpush1.msra.mxu0 0.0
    %2420 = vmatprep.subr.mxu0 0.0
    %2421 = vmatpush1.msra.mxu0 0.0
    %2422 = vmatprep.subr.mxu0 0.0
    %2423 = vmatpush1.msra.mxu0 0.0
    %2424 = vmatprep.subr.mxu0 0.0
    %2425 = vmatpush1.msra.mxu0 0.0
    %2426 = vmatprep.subr.mxu0 0.0
    %2427 = vmatpush1.msra.mxu0 0.0
    %2428 = vmatprep.subr.mxu0 0.0
    %2429 = vmatpush1.msra.mxu0 %v2385
    %2430 = vmatprep.subr.mxu0 0.0
    %2431 = vmatpush1.msra.mxu0 %v2384
    %2432 = vmatprep.subr.mxu0 0.0
    %2433 = vmatpush1.msra.mxu0 %v2383
    %2434 = vmatprep.subr.mxu0 0.0
    %2435 = vmatpush1.msra.mxu0 %v2382
    %2436 = vmatprep.subr.mxu0 0.0
    %2437 = vmatpush2.msra.mxu0 0.0
    %2438 = vmatprep.subr.mxu0 0.0
    %2439 = vmatpush2.msra.mxu0 0.0
    %2440 = vmatprep.subr.mxu0 0.0
    %2441 = vmatpush2.msra.mxu0 0.0
    %2442 = vmatprep.subr.mxu0 0.0
    %2443 = vmatpush2.msra.mxu0 0.0
    %2444 = vmatprep.subr.mxu0 0.0
    %2445 = vmatpush2.msra.mxu0 0.0
    %2446 = vmatprep.subr.mxu0 0.0
    %2447 = vmatpush2.msra.mxu0 0.0
    %2448 = vmatprep.subr.mxu0 0.0
    %2449 = vmatpush2.msra.mxu0 0.0
    %2450 = vmatprep.subr.mxu0 0.0
    %2451 = vmatpush2.msra.mxu0 0.0
    %2452 = vmatprep.subr.mxu0 0.0
    %2453 = vmatpush2.msra.mxu0 0.0
    %2454 = vmatprep.subr.mxu0 0.0
    %2455 = vmatpush2.msra.mxu0 0.0
    %2456 = vmatprep.subr.mxu0 0.0
    %2457 = vmatpush2.msra.mxu0 0.0
    %2458 = vmatprep.subr.mxu0 0.0
    %2459 = vmatpush2.msra.mxu0 0.0
    %2460 = vmatprep.subr.mxu0 0.0
    %2461 = vmatpush2.msra.mxu0 0.0
    %2462 = vmatprep.subr.mxu0 0.0
    %2463 = vmatpush2.msra.mxu0 0.0
    %2464 = vmatprep.subr.mxu0 0.0
    %2465 = vmatpush2.msra.mxu0 0.0
    %2466 = vmatprep.subr.mxu0 0.0
    %2467 = vmatpush2.msra.mxu0 0.0
    %2468 = vmatprep.mubr.f32.mxu0 0.0
    %2469 = vmatmul.mubr.f32.gmra.mxu0 %v2399
    %v2470 = vpop.f32.mrf.mxu0
    %v2471 = vadd.f32 %v2396, %v2470
    %v2472 = vpop.f32.mrf.mxu0
    %2473 = vmatprep.mubr.f32.mxu0 0.0
    %2474 = vmatmul.mubr.f32.gmra.mxu0 %v2402
    %v2475 = vpop.f32.mrf.mxu0
    %v2476 = vadd.f32 %v2396, %v2475
    %v2477 = vpop.f32.mrf.mxu0
    %2478 = vdwg.mxu0
    %v2480 = vlaneseq
    %v2481 = vshrl.u32 %v2480, 7
    %v2482 = vsub.s32 0, %v2481
    %v2483 = vrot.slane %v2391, %v2482
    %2485 = vmatprep.subr.mxu0 0.0
    %2486 = vmatpush1.msra.mxu0 0.0
    %2487 = vmatprep.subr.mxu0 0.0
    %2488 = vmatpush1.msra.mxu0 0.0
    %2489 = vmatprep.subr.mxu0 0.0
    %2490 = vmatpush1.msra.mxu0 0.0
    %2491 = vmatprep.subr.mxu0 0.0
    %2492 = vmatpush1.msra.mxu0 0.0
    %2493 = vmatprep.subr.mxu0 0.0
    %2494 = vmatpush1.msra.mxu0 0.0
    %2495 = vmatprep.subr.mxu0 0.0
    %2496 = vmatpush1.msra.mxu0 0.0
    %2497 = vmatprep.subr.mxu0 0.0
    %2498 = vmatpush1.msra.mxu0 0.0
    %2499 = vmatprep.subr.mxu0 0.0
    %2500 = vmatpush1.msra.mxu0 0.0
    %2501 = vmatprep.subr.mxu0 0.0
    %2502 = vmatpush1.msra.mxu0 0.0
    %2503 = vmatprep.subr.mxu0 0.0
    %2504 = vmatpush1.msra.mxu0 0.0
    %2505 = vmatprep.subr.mxu0 0.0
    %2506 = vmatpush1.msra.mxu0 0.0
    %2507 = vmatprep.subr.mxu0 0.0
    %2508 = vmatpush1.msra.mxu0 0.0
    %2509 = vmatprep.subr.mxu0 0.0
    %2510 = vmatpush1.msra.mxu0 %v2389
    %2511 = vmatprep.subr.mxu0 0.0
    %2512 = vmatpush1.msra.mxu0 %v2388
    %2513 = vmatprep.subr.mxu0 0.0
    %2514 = vmatpush1.msra.mxu0 %v2387
    %2515 = vmatprep.subr.mxu0 0.0
    %2516 = vmatpush1.msra.mxu0 %v2386
    %2517 = vmatprep.subr.mxu0 0.0
    %2518 = vmatpush2.msra.mxu0 0.0
    %2519 = vmatprep.subr.mxu0 0.0
    %2520 = vmatpush2.msra.mxu0 0.0
    %2521 = vmatprep.subr.mxu0 0.0
    %2522 = vmatpush2.msra.mxu0 0.0
    %2523 = vmatprep.subr.mxu0 0.0
    %2524 = vmatpush2.msra.mxu0 0.0
    %2525 = vmatprep.subr.mxu0 0.0
    %2526 = vmatpush2.msra.mxu0 0.0
    %2527 = vmatprep.subr.mxu0 0.0
    %2528 = vmatpush2.msra.mxu0 0.0
    %2529 = vmatprep.subr.mxu0 0.0
    %2530 = vmatpush2.msra.mxu0 0.0
    %2531 = vmatprep.subr.mxu0 0.0
    %2532 = vmatpush2.msra.mxu0 0.0
    %2533 = vmatprep.subr.mxu0 0.0
    %2534 = vmatpush2.msra.mxu0 0.0
    %2535 = vmatprep.subr.mxu0 0.0
    %2536 = vmatpush2.msra.mxu0 0.0
    %2537 = vmatprep.subr.mxu0 0.0
    %2538 = vmatpush2.msra.mxu0 0.0
    %2539 = vmatprep.subr.mxu0 0.0
    %2540 = vmatpush2.msra.mxu0 0.0
    %2541 = vmatprep.subr.mxu0 0.0
    %2542 = vmatpush2.msra.mxu0 0.0
    %2543 = vmatprep.subr.mxu0 0.0
    %2544 = vmatpush2.msra.mxu0 0.0
    %2545 = vmatprep.subr.mxu0 0.0
    %2546 = vmatpush2.msra.mxu0 0.0
    %2547 = vmatprep.subr.mxu0 0.0
    %2548 = vmatpush2.msra.mxu0 0.0
    %2549 = vmatprep.mubr.f32.mxu0 0.0
    %2550 = vmatmul.mubr.f32.gmra.mxu0 %v225
    %v2551 = vpop.f32.mrf.mxu0
    %v2552 = vadd.f32 %v2483, %v2551
    %v2553 = vpop.f32.mrf.mxu0
    %2554 = vmatprep.mubr.f32.mxu0 0.0
    %2555 = vmatmul.mubr.f32.gmra.mxu0 %v228
    %v2556 = vpop.f32.mrf.mxu0
    %v2557 = vadd.f32 %v2483, %v2556
    %v2558 = vpop.f32.mrf.mxu0
    %2559 = vdwg.mxu0
    %v2560 = vadd.f32 %v2471, %v2552
    %v2561 = vadd.f32 %v2476, %v2557
    %v2562 = vxor.u32 %v2560, 2147483648
    %v2563 = vxor.u32 %v2561, 2147483648
    %v2564 = vmul.f32 %v2562, 1.442695
    %v2565 = vpow.pop %v2564
    %v2566 = vmul.f32 %v2563, 1.442695
    %v2567 = vpow.pop %v2566
    %v2568 = vadd.f32 %v2565, 1.0
    %v2569 = vadd.f32 %v2567, 1.0
    %v2570 = vrcp.pop %v2568
    %v2571 = vmul.f32 1.0, %v2570
    %v2572 = vrcp.pop %v2569
    %v2573 = vmul.f32 1.0, %v2572
    %2576 = vrot.lane.b32.xlu0 %v2552, 64
    %v2577 = vpop.permute.xlu0 %2576
    %2578 = vrot.lane.b32.xlu0 %v2557, 64
    %v2579 = vpop.permute.xlu0 %2578
    %v2582 = vmul.f32 %v2571, %v2577
    %v2583 = vmul.f32 %v2573, %v2579
    %2586 = vrot.lane.b32.xlu0 %v2582, 64
    %v2587 = vpop.permute.xlu0 %2586
    %2588 = vrot.lane.b32.xlu0 %v2583, 64
    %v2589 = vpop.permute.xlu0 %2588
    %v2592 = vadd.f32 %v2471, %v2587
    %v2593 = vadd.f32 %v2476, %v2589
    %v2594 = vtanh.pop %v2592
    %v2595 = vtanh.pop %v2593
    %v2596 = vsub.f32 1.0, %v2571
    %v2597 = vsub.f32 1.0, %v2573
    %2600 = vrot.lane.b32.xlu0 %v2594, 96
    %v2601 = vpop.permute.xlu0 %2600
    %2602 = vrot.lane.b32.xlu0 %v2595, 96
    %v2603 = vpop.permute.xlu0 %2602
    %v2606 = vmul.f32 %v2596, %v2601
    %v2607 = vmul.f32 %v2597, %v2603
    %2608 = vrot.lane.b32.xlu0 %v177, 32
    %v2609 = vpop.permute.xlu0 %2608
    %2610 = vrot.lane.b32.xlu0 %v178, 32
    %v2611 = vpop.permute.xlu0 %2610
    %v2614 = vmul.f32 %v2571, %v2609
    %v2615 = vmul.f32 %v2573, %v2611
    %v2616 = vadd.f32 %v2606, %v2614
    %v2617 = vadd.f32 %v2607, %v2615
    %v2618 = vmax.f32 %v2616, 0.0
    %v2619 = vmax.f32 %v2617, 0.0
    %v2620 = vld [vmem:[%s15] sm:$0xff]
    %v2621 = vld [vmem:[%s15 + $0x8] sm:$0xff]
    %v2622 = vld [vmem:[%s15 + $0x10] sm:$0xff]
    %v2623 = vld [vmem:[%s15 + $0x18] sm:$0xff]
    %v2624 = vld [vmem:[%s16] sm:$0x1]
    %v2625 = vld [vmem:[%s17] sm:$0xff]
    %v2626 = vld [vmem:[%s17 + $0x8] sm:$0xff]
    %v2627 = vld [vmem:[%s17 + $0x10] sm:$0xff]
    %v2628 = vld [vmem:[%s17 + $0x18] sm:$0xff]
    %v2629 = vld [vmem:[%s18] sm:$0x1]
    %2632 = vrot.lane.b32.xlu0 %v2618, 96
    %v2633 = vpop.permute.xlu0 %2632
    %2634 = vrot.lane.b32.xlu0 %v2619, 96
    %v2635 = vpop.permute.xlu0 %2634
    %v2636 = vsel %vm223, %v2633, 0
    %v2638 = vsel %vm223, %v2635, 0
    %2640 = vmatprep.subr.mxu0 0.0
    %2641 = vmatpush1.msra.mxu0 0.0
    %2642 = vmatprep.subr.mxu0 0.0
    %2643 = vmatpush1.msra.mxu0 0.0
    %2644 = vmatprep.subr.mxu0 0.0
    %2645 = vmatpush1.msra.mxu0 0.0
    %2646 = vmatprep.subr.mxu0 0.0
    %2647 = vmatpush1.msra.mxu0 0.0
    %2648 = vmatprep.subr.mxu0 0.0
    %2649 = vmatpush1.msra.mxu0 0.0
    %2650 = vmatprep.subr.mxu0 0.0
    %2651 = vmatpush1.msra.mxu0 0.0
    %2652 = vmatprep.subr.mxu0 0.0
    %2653 = vmatpush1.msra.mxu0 0.0
    %2654 = vmatprep.subr.mxu0 0.0
    %2655 = vmatpush1.msra.mxu0 0.0
    %2656 = vmatprep.subr.mxu0 0.0
    %2657 = vmatpush1.msra.mxu0 0.0
    %2658 = vmatprep.subr.mxu0 0.0
    %2659 = vmatpush1.msra.mxu0 0.0
    %2660 = vmatprep.subr.mxu0 0.0
    %2661 = vmatpush1.msra.mxu0 0.0
    %2662 = vmatprep.subr.mxu0 0.0
    %2663 = vmatpush1.msra.mxu0 0.0
    %2664 = vmatprep.subr.mxu0 0.0
    %2665 = vmatpush1.msra.mxu0 %v2623
    %2666 = vmatprep.subr.mxu0 0.0
    %2667 = vmatpush1.msra.mxu0 %v2622
    %2668 = vmatprep.subr.mxu0 0.0
    %2669 = vmatpush1.msra.mxu0 %v2621
    %2670 = vmatprep.subr.mxu0 0.0
    %2671 = vmatpush1.msra.mxu0 %v2620
    %2672 = vmatprep.subr.mxu0 0.0
    %2673 = vmatpush2.msra.mxu0 0.0
    %2674 = vmatprep.subr.mxu0 0.0
    %2675 = vmatpush2.msra.mxu0 0.0
    %2676 = vmatprep.subr.mxu0 0.0
    %2677 = vmatpush2.msra.mxu0 0.0
    %2678 = vmatprep.subr.mxu0 0.0
    %2679 = vmatpush2.msra.mxu0 0.0
    %2680 = vmatprep.subr.mxu0 0.0
    %2681 = vmatpush2.msra.mxu0 0.0
    %2682 = vmatprep.subr.mxu0 0.0
    %2683 = vmatpush2.msra.mxu0 0.0
    %2684 = vmatprep.subr.mxu0 0.0
    %2685 = vmatpush2.msra.mxu0 0.0
    %2686 = vmatprep.subr.mxu0 0.0
    %2687 = vmatpush2.msra.mxu0 0.0
    %2688 = vmatprep.subr.mxu0 0.0
    %2689 = vmatpush2.msra.mxu0 0.0
    %2690 = vmatprep.subr.mxu0 0.0
    %2691 = vmatpush2.msra.mxu0 0.0
    %2692 = vmatprep.subr.mxu0 0.0
    %2693 = vmatpush2.msra.mxu0 0.0
    %2694 = vmatprep.subr.mxu0 0.0
    %2695 = vmatpush2.msra.mxu0 0.0
    %2696 = vmatprep.subr.mxu0 0.0
    %2697 = vmatpush2.msra.mxu0 0.0
    %2698 = vmatprep.subr.mxu0 0.0
    %2699 = vmatpush2.msra.mxu0 0.0
    %2700 = vmatprep.subr.mxu0 0.0
    %2701 = vmatpush2.msra.mxu0 0.0
    %2702 = vmatprep.subr.mxu0 0.0
    %2703 = vmatpush2.msra.mxu0 0.0
    %2704 = vmatprep.mubr.f32.mxu0 0.0
    %2705 = vmatmul.mubr.f32.gmra.mxu0 %v2636
    %v2706 = vpop.f32.mrf.mxu0
    %v2707 = vadd.f32 0.0, %v2706
    %v2708 = vpop.f32.mrf.mxu0
    %2709 = vmatprep.mubr.f32.mxu0 0.0
    %2710 = vmatmul.mubr.f32.gmra.mxu0 %v2638
    %v2711 = vpop.f32.mrf.mxu0
    %v2712 = vadd.f32 0.0, %v2711
    %v2713 = vpop.f32.mrf.mxu0
    %2714 = vdwg.mxu0
    %v2716 = vsel %vm223, %v2707, 0
    %v2719 = vsel %vm223, %v2712, 0
    %2721 = vmatprep.subr.mxu0 0.0
    %2722 = vmatpush1.msra.mxu0 0.0
    %2723 = vmatprep.subr.mxu0 0.0
    %2724 = vmatpush1.msra.mxu0 0.0
    %2725 = vmatprep.subr.mxu0 0.0
    %2726 = vmatpush1.msra.mxu0 0.0
    %2727 = vmatprep.subr.mxu0 0.0
    %2728 = vmatpush1.msra.mxu0 0.0
    %2729 = vmatprep.subr.mxu0 0.0
    %2730 = vmatpush1.msra.mxu0 0.0
    %2731 = vmatprep.subr.mxu0 0.0
    %2732 = vmatpush1.msra.mxu0 0.0
    %2733 = vmatprep.subr.mxu0 0.0
    %2734 = vmatpush1.msra.mxu0 0.0
    %2735 = vmatprep.subr.mxu0 0.0
    %2736 = vmatpush1.msra.mxu0 0.0
    %2737 = vmatprep.subr.mxu0 0.0
    %2738 = vmatpush1.msra.mxu0 0.0
    %2739 = vmatprep.subr.mxu0 0.0
    %2740 = vmatpush1.msra.mxu0 0.0
    %2741 = vmatprep.subr.mxu0 0.0
    %2742 = vmatpush1.msra.mxu0 0.0
    %2743 = vmatprep.subr.mxu0 0.0
    %2744 = vmatpush1.msra.mxu0 0.0
    %2745 = vmatprep.subr.mxu0 0.0
    %2746 = vmatpush1.msra.mxu0 %v2628
    %2747 = vmatprep.subr.mxu0 0.0
    %2748 = vmatpush1.msra.mxu0 %v2627
    %2749 = vmatprep.subr.mxu0 0.0
    %2750 = vmatpush1.msra.mxu0 %v2626
    %2751 = vmatprep.subr.mxu0 0.0
    %2752 = vmatpush1.msra.mxu0 %v2625
    %2753 = vmatprep.subr.mxu0 0.0
    %2754 = vmatpush2.msra.mxu0 0.0
    %2755 = vmatprep.subr.mxu0 0.0
    %2756 = vmatpush2.msra.mxu0 0.0
    %2757 = vmatprep.subr.mxu0 0.0
    %2758 = vmatpush2.msra.mxu0 0.0
    %2759 = vmatprep.subr.mxu0 0.0
    %2760 = vmatpush2.msra.mxu0 0.0
    %2761 = vmatprep.subr.mxu0 0.0
    %2762 = vmatpush2.msra.mxu0 0.0
    %2763 = vmatprep.subr.mxu0 0.0
    %2764 = vmatpush2.msra.mxu0 0.0
    %2765 = vmatprep.subr.mxu0 0.0
    %2766 = vmatpush2.msra.mxu0 0.0
    %2767 = vmatprep.subr.mxu0 0.0
    %2768 = vmatpush2.msra.mxu0 0.0
    %2769 = vmatprep.subr.mxu0 0.0
    %2770 = vmatpush2.msra.mxu0 0.0
    %2771 = vmatprep.subr.mxu0 0.0
    %2772 = vmatpush2.msra.mxu0 0.0
    %2773 = vmatprep.subr.mxu0 0.0
    %2774 = vmatpush2.msra.mxu0 0.0
    %2775 = vmatprep.subr.mxu0 0.0
    %2776 = vmatpush2.msra.mxu0 0.0
    %2777 = vmatprep.subr.mxu0 0.0
    %2778 = vmatpush2.msra.mxu0 0.0
    %2779 = vmatprep.subr.mxu0 0.0
    %2780 = vmatpush2.msra.mxu0 0.0
    %2781 = vmatprep.subr.mxu0 0.0
    %2782 = vmatpush2.msra.mxu0 0.0
    %2783 = vmatprep.subr.mxu0 0.0
    %2784 = vmatpush2.msra.mxu0 0.0
    %2785 = vmatprep.mubr.f32.mxu0 0.0
    %2786 = vmatmul.mubr.f32.gmra.mxu0 %v2716
    %v2787 = vpop.f32.mrf.mxu0
    %v2788 = vadd.f32 0.0, %v2787
    %v2789 = vpop.f32.mrf.mxu0
    %2790 = vmatprep.mubr.f32.mxu0 0.0
    %2791 = vmatmul.mubr.f32.gmra.mxu0 %v2719
    %v2792 = vpop.f32.mrf.mxu0
    %v2793 = vadd.f32 0.0, %v2792
    %v2794 = vpop.f32.mrf.mxu0
    %2795 = vdwg.mxu0
    %v2797 = vsel %vm223, %v2624, 0
    %2799 = vmatprep.subr.mxu0 0.0
    %2800 = vmatpush1.xpose.msra.mxu0 0.0
    %2801 = vmatprep.subr.mxu0 0.0
    %2802 = vmatpush1.xpose.msra.mxu0 0.0
    %2803 = vmatprep.subr.mxu0 0.0
    %2804 = vmatpush1.xpose.msra.mxu0 0.0
    %2805 = vmatprep.subr.mxu0 0.0
    %2806 = vmatpush1.xpose.msra.mxu0 0.0
    %2807 = vmatprep.subr.mxu0 0.0
    %2808 = vmatpush1.xpose.msra.mxu0 0.0
    %2809 = vmatprep.subr.mxu0 0.0
    %2810 = vmatpush1.xpose.msra.mxu0 0.0
    %2811 = vmatprep.subr.mxu0 0.0
    %2812 = vmatpush1.xpose.msra.mxu0 0.0
    %2813 = vmatprep.subr.mxu0 0.0
    %2814 = vmatpush1.xpose.msra.mxu0 0.0
    %2815 = vmatprep.subr.mxu0 0.0
    %2816 = vmatpush1.xpose.msra.mxu0 0.0
    %2817 = vmatprep.subr.mxu0 0.0
    %2818 = vmatpush1.xpose.msra.mxu0 0.0
    %2819 = vmatprep.subr.mxu0 0.0
    %2820 = vmatpush1.xpose.msra.mxu0 0.0
    %2821 = vmatprep.subr.mxu0 0.0
    %2822 = vmatpush1.xpose.msra.mxu0 0.0
    %2823 = vmatprep.subr.mxu0 0.0
    %2824 = vmatpush1.xpose.msra.mxu0 0.0
    %2825 = vmatprep.subr.mxu0 0.0
    %2826 = vmatpush1.xpose.msra.mxu0 0.0
    %2827 = vmatprep.subr.mxu0 0.0
    %2828 = vmatpush1.xpose.msra.mxu0 %v2719
    %2829 = vmatprep.subr.mxu0 0.0
    %2830 = vmatpush1.xpose.msra.mxu0 %v2716
    %2831 = vmatprep.subr.mxu0 0.0
    %2832 = vmatpush2.xpose.msra.mxu0 0.0
    %2833 = vmatprep.subr.mxu0 0.0
    %2834 = vmatpush2.xpose.msra.mxu0 0.0
    %2835 = vmatprep.subr.mxu0 0.0
    %2836 = vmatpush2.xpose.msra.mxu0 0.0
    %2837 = vmatprep.subr.mxu0 0.0
    %2838 = vmatpush2.xpose.msra.mxu0 0.0
    %2839 = vmatprep.subr.mxu0 0.0
    %2840 = vmatpush2.xpose.msra.mxu0 0.0
    %2841 = vmatprep.subr.mxu0 0.0
    %2842 = vmatpush2.xpose.msra.mxu0 0.0
    %2843 = vmatprep.subr.mxu0 0.0
    %2844 = vmatpush2.xpose.msra.mxu0 0.0
    %2845 = vmatprep.subr.mxu0 0.0
    %2846 = vmatpush2.xpose.msra.mxu0 0.0
    %2847 = vmatprep.subr.mxu0 0.0
    %2848 = vmatpush2.xpose.msra.mxu0 0.0
    %2849 = vmatprep.subr.mxu0 0.0
    %2850 = vmatpush2.xpose.msra.mxu0 0.0
    %2851 = vmatprep.subr.mxu0 0.0
    %2852 = vmatpush2.xpose.msra.mxu0 0.0
    %2853 = vmatprep.subr.mxu0 0.0
    %2854 = vmatpush2.xpose.msra.mxu0 0.0
    %2855 = vmatprep.subr.mxu0 0.0
    %2856 = vmatpush2.xpose.msra.mxu0 0.0
    %2857 = vmatprep.subr.mxu0 0.0
    %2858 = vmatpush2.xpose.msra.mxu0 0.0
    %2859 = vmatprep.subr.mxu0 0.0
    %2860 = vmatpush2.xpose.msra.mxu0 0.0
    %2861 = vmatprep.subr.mxu0 0.0
    %2862 = vmatpush2.xpose.msra.mxu0 0.0
    %2863 = vmatprep.mubr.f32.mxu0 0.0
    %2864 = vmatmul.mubr.f32.gmra.mxu0 %v2797
    %v2865 = vpop.f32.mrf.mxu0
    %v2866 = vadd.f32 0.0, %v2865
    %v2867 = vpop.f32.mrf.mxu0
    %2868 = vdwg.mxu0
    %2870 = vset.pattern.permute.xlu0 0
    %2871 = vperm.xlu0 %2870, %v2788
    %v2872 = vpop.permute.xlu0 %2871
    %2875 = vset.pattern.permute.xlu0 0
    %2876 = vperm.xlu0 %2875, %v2793
    %v2877 = vpop.permute.xlu0 %2876
    %v2879 = vlaneseq
    %v2880 = vshrl.u32 %v2879, 7
    %v2881 = vsub.s32 0, %v2880
    %v2882 = vrot.slane %v2866, %v2881
    %v2883 = vadd.f32 %v2872, %v2882
    %v2884 = vadd.f32 %v2877, %v2882
    %vm2885 = vcmp.gt.f32.partialorder %v2883, 0.0
    %vm2886 = vcmp.gt.f32.partialorder %v2884, 0.0
    %v2887 = vmul.f32 %v2883, 0.01
    %v2888 = vmul.f32 %v2884, 0.01
    %v2889 = vsel %vm2885, %v2883, %v2887
    %v2890 = vsel %vm2886, %v2884, %v2888
    %v2891 = vsel %vm1113, %v2889, -1e+30
    %v2892 = vsel %vm1114, %v2890, -1e+30
    %v2893 = vsel %vm1416, %v2891, -inf
    %2894 = vmax.xlane.f32.xlu0 %v2893
    %v2895 = vpop.xlane.xlu0 %2894
    %v2896 = vsel %vm1416, %v2892, -inf
    %2897 = vmax.xlane.f32.xlu0 %v2896
    %v2898 = vpop.xlane.xlu0 %2897
    %v2899 = vsub.f32 %v2889, %v2895
    %v2900 = vsub.f32 %v2890, %v2898
    %v2901 = vmul.f32 %v2899, 1.442695
    %v2902 = vpow.pop %v2901
    %v2903 = vmul.f32 %v2900, 1.442695
    %v2904 = vpow.pop %v2903
    %v2905 = vsel %vm1113, %v2902, 0.0
    %v2906 = vsel %vm1114, %v2904, 0.0
    %v2907 = vsel %vm1416, %v2905, 0.0
    %2908 = vadd.xlane.f32.xlu0 %v2907
    %v2909 = vpop.xlane.xlu0 %2908
    %v2910 = vsel %vm1416, %v2906, 0.0
    %2911 = vadd.xlane.f32.xlu0 %v2910
    %v2912 = vpop.xlane.xlu0 %2911
    %v2913 = vadd.f32 %v2909, 1e-16
    %v2914 = vadd.f32 %v2912, 1e-16
    %v2915 = vrcp.pop %v2913
    %v2916 = vrcp.pop %v2914
    %v2917 = vmul.f32 %v2905, %v2915
    %v2918 = vmul.f32 %v2906, %v2916
    %v2920 = vlaneseq
    %v2921 = vshrl.u32 %v2920, 7
    %v2922 = vsub.s32 0, %v2921
    %v2923 = vrot.slane %v2629, %v2922
    %v2926 = vsel %vm1416, %v2917, 0
    %v2929 = vsel %vm1416, %v2918, 0
    %2931 = vmatprep.subr.mxu0 0.0
    %2932 = vmatpush1.msra.mxu0 0.0
    %2933 = vmatprep.subr.mxu0 0.0
    %2934 = vmatpush1.msra.mxu0 0.0
    %2935 = vmatprep.subr.mxu0 0.0
    %2936 = vmatpush1.msra.mxu0 0.0
    %2937 = vmatprep.subr.mxu0 0.0
    %2938 = vmatpush1.msra.mxu0 0.0
    %2939 = vmatprep.subr.mxu0 0.0
    %2940 = vmatpush1.msra.mxu0 0.0
    %2941 = vmatprep.subr.mxu0 0.0
    %2942 = vmatpush1.msra.mxu0 0.0
    %2943 = vmatprep.subr.mxu0 0.0
    %2944 = vmatpush1.msra.mxu0 0.0
    %2945 = vmatprep.subr.mxu0 0.0
    %2946 = vmatpush1.msra.mxu0 0.0
    %2947 = vmatprep.subr.mxu0 0.0
    %2948 = vmatpush1.msra.mxu0 0.0
    %2949 = vmatprep.subr.mxu0 0.0
    %2950 = vmatpush1.msra.mxu0 0.0
    %2951 = vmatprep.subr.mxu0 0.0
    %2952 = vmatpush1.msra.mxu0 0.0
    %2953 = vmatprep.subr.mxu0 0.0
    %2954 = vmatpush1.msra.mxu0 0.0
    %2955 = vmatprep.subr.mxu0 0.0
    %2956 = vmatpush1.msra.mxu0 0.0
    %2957 = vmatprep.subr.mxu0 0.0
    %2958 = vmatpush1.msra.mxu0 0.0
    %2959 = vmatprep.subr.mxu0 0.0
    %2960 = vmatpush1.msra.mxu0 %v2712
    %2961 = vmatprep.subr.mxu0 0.0
    %2962 = vmatpush1.msra.mxu0 %v2707
    %2963 = vmatprep.subr.mxu0 0.0
    %2964 = vmatpush2.msra.mxu0 0.0
    %2965 = vmatprep.subr.mxu0 0.0
    %2966 = vmatpush2.msra.mxu0 0.0
    %2967 = vmatprep.subr.mxu0 0.0
    %2968 = vmatpush2.msra.mxu0 0.0
    %2969 = vmatprep.subr.mxu0 0.0
    %2970 = vmatpush2.msra.mxu0 0.0
    %2971 = vmatprep.subr.mxu0 0.0
    %2972 = vmatpush2.msra.mxu0 0.0
    %2973 = vmatprep.subr.mxu0 0.0
    %2974 = vmatpush2.msra.mxu0 0.0
    %2975 = vmatprep.subr.mxu0 0.0
    %2976 = vmatpush2.msra.mxu0 0.0
    %2977 = vmatprep.subr.mxu0 0.0
    %2978 = vmatpush2.msra.mxu0 0.0
    %2979 = vmatprep.subr.mxu0 0.0
    %2980 = vmatpush2.msra.mxu0 0.0
    %2981 = vmatprep.subr.mxu0 0.0
    %2982 = vmatpush2.msra.mxu0 0.0
    %2983 = vmatprep.subr.mxu0 0.0
    %2984 = vmatpush2.msra.mxu0 0.0
    %2985 = vmatprep.subr.mxu0 0.0
    %2986 = vmatpush2.msra.mxu0 0.0
    %2987 = vmatprep.subr.mxu0 0.0
    %2988 = vmatpush2.msra.mxu0 0.0
    %2989 = vmatprep.subr.mxu0 0.0
    %2990 = vmatpush2.msra.mxu0 0.0
    %2991 = vmatprep.subr.mxu0 0.0
    %2992 = vmatpush2.msra.mxu0 0.0
    %2993 = vmatprep.subr.mxu0 0.0
    %2994 = vmatpush2.msra.mxu0 0.0
    %2995 = vmatprep.mubr.f32.mxu0 0.0
    %2996 = vmatmul.mubr.f32.gmra.mxu0 %v2926
    %v2997 = vpop.f32.mrf.mxu0
    %v2998 = vadd.f32 %v2923, %v2997
    %v2999 = vpop.f32.mrf.mxu0
    %3000 = vmatprep.mubr.f32.mxu0 0.0
    %3001 = vmatmul.mubr.f32.gmra.mxu0 %v2929
    %v3002 = vpop.f32.mrf.mxu0
    %v3003 = vadd.f32 %v2923, %v3002
    %v3004 = vpop.f32.mrf.mxu0
    %3005 = vdwg.mxu0
    %vm3006 = vcmp.gt.f32.partialorder %v2998, 0.0
    %vm3007 = vcmp.gt.f32.partialorder %v3003, 0.0
    %v3008 = vmin.f32 %v2998, 0.0
    %v3009 = vmin.f32 %v3003, 0.0
    %v3010 = vmul.f32 %v3008, 1.442695
    %v3011 = vpow.pop %v3010
    %v3012 = vmul.f32 %v3009, 1.442695
    %v3013 = vpow.pop %v3012
    %v3014 = vsub.f32 %v3011, 1.0
    %v3015 = vsub.f32 %v3013, 1.0
    %v3016 = vsel %vm3006, %v2998, %v3014
    %v3017 = vsel %vm3007, %v3003, %v3015
    %v3018 = vld [vmem:[%s19] sm:$0xff]
    %v3019 = vld [vmem:[%s19 + $0x8] sm:$0xff]
    %v3020 = vld [vmem:[%s19 + $0x10] sm:$0xff]
    %v3021 = vld [vmem:[%s19 + $0x18] sm:$0xff]
    %v3022 = vld [vmem:[%s20] sm:$0xff]
    %v3023 = vld [vmem:[%s20 + $0x8] sm:$0xff]
    %v3024 = vld [vmem:[%s20 + $0x10] sm:$0xff]
    %v3025 = vld [vmem:[%s20 + $0x18] sm:$0xff]
    %v3026 = vld [vmem:[%s21] sm:$0x1]
    %v3027 = vld [vmem:[%s22] sm:$0x1]
    %v3029 = vlaneseq
    %v3030 = vshrl.u32 %v3029, 7
    %v3031 = vsub.s32 0, %v3030
    %v3032 = vrot.slane %v3026, %v3031
    %v3035 = vsel %vm223, %v3016, 0
    %v3038 = vsel %vm223, %v3017, 0
    %3040 = vmatprep.subr.mxu0 0.0
    %3041 = vmatpush1.msra.mxu0 0.0
    %3042 = vmatprep.subr.mxu0 0.0
    %3043 = vmatpush1.msra.mxu0 0.0
    %3044 = vmatprep.subr.mxu0 0.0
    %3045 = vmatpush1.msra.mxu0 0.0
    %3046 = vmatprep.subr.mxu0 0.0
    %3047 = vmatpush1.msra.mxu0 0.0
    %3048 = vmatprep.subr.mxu0 0.0
    %3049 = vmatpush1.msra.mxu0 0.0
    %3050 = vmatprep.subr.mxu0 0.0
    %3051 = vmatpush1.msra.mxu0 0.0
    %3052 = vmatprep.subr.mxu0 0.0
    %3053 = vmatpush1.msra.mxu0 0.0
    %3054 = vmatprep.subr.mxu0 0.0
    %3055 = vmatpush1.msra.mxu0 0.0
    %3056 = vmatprep.subr.mxu0 0.0
    %3057 = vmatpush1.msra.mxu0 0.0
    %3058 = vmatprep.subr.mxu0 0.0
    %3059 = vmatpush1.msra.mxu0 0.0
    %3060 = vmatprep.subr.mxu0 0.0
    %3061 = vmatpush1.msra.mxu0 0.0
    %3062 = vmatprep.subr.mxu0 0.0
    %3063 = vmatpush1.msra.mxu0 0.0
    %3064 = vmatprep.subr.mxu0 0.0
    %3065 = vmatpush1.msra.mxu0 %v3021
    %3066 = vmatprep.subr.mxu0 0.0
    %3067 = vmatpush1.msra.mxu0 %v3020
    %3068 = vmatprep.subr.mxu0 0.0
    %3069 = vmatpush1.msra.mxu0 %v3019
    %3070 = vmatprep.subr.mxu0 0.0
    %3071 = vmatpush1.msra.mxu0 %v3018
    %3072 = vmatprep.subr.mxu0 0.0
    %3073 = vmatpush2.msra.mxu0 0.0
    %3074 = vmatprep.subr.mxu0 0.0
    %3075 = vmatpush2.msra.mxu0 0.0
    %3076 = vmatprep.subr.mxu0 0.0
    %3077 = vmatpush2.msra.mxu0 0.0
    %3078 = vmatprep.subr.mxu0 0.0
    %3079 = vmatpush2.msra.mxu0 0.0
    %3080 = vmatprep.subr.mxu0 0.0
    %3081 = vmatpush2.msra.mxu0 0.0
    %3082 = vmatprep.subr.mxu0 0.0
    %3083 = vmatpush2.msra.mxu0 0.0
    %3084 = vmatprep.subr.mxu0 0.0
    %3085 = vmatpush2.msra.mxu0 0.0
    %3086 = vmatprep.subr.mxu0 0.0
    %3087 = vmatpush2.msra.mxu0 0.0
    %3088 = vmatprep.subr.mxu0 0.0
    %3089 = vmatpush2.msra.mxu0 0.0
    %3090 = vmatprep.subr.mxu0 0.0
    %3091 = vmatpush2.msra.mxu0 0.0
    %3092 = vmatprep.subr.mxu0 0.0
    %3093 = vmatpush2.msra.mxu0 0.0
    %3094 = vmatprep.subr.mxu0 0.0
    %3095 = vmatpush2.msra.mxu0 0.0
    %3096 = vmatprep.subr.mxu0 0.0
    %3097 = vmatpush2.msra.mxu0 0.0
    %3098 = vmatprep.subr.mxu0 0.0
    %3099 = vmatpush2.msra.mxu0 0.0
    %3100 = vmatprep.subr.mxu0 0.0
    %3101 = vmatpush2.msra.mxu0 0.0
    %3102 = vmatprep.subr.mxu0 0.0
    %3103 = vmatpush2.msra.mxu0 0.0
    %3104 = vmatprep.mubr.f32.mxu0 0.0
    %3105 = vmatmul.mubr.f32.gmra.mxu0 %v3035
    %v3106 = vpop.f32.mrf.mxu0
    %v3107 = vadd.f32 %v3032, %v3106
    %v3108 = vpop.f32.mrf.mxu0
    %3109 = vmatprep.mubr.f32.mxu0 0.0
    %3110 = vmatmul.mubr.f32.gmra.mxu0 %v3038
    %v3111 = vpop.f32.mrf.mxu0
    %v3112 = vadd.f32 %v3032, %v3111
    %v3113 = vpop.f32.mrf.mxu0
    %3114 = vdwg.mxu0
    %v3116 = vlaneseq
    %v3117 = vshrl.u32 %v3116, 7
    %v3118 = vsub.s32 0, %v3117
    %v3119 = vrot.slane %v3027, %v3118
    %3121 = vmatprep.subr.mxu0 0.0
    %3122 = vmatpush1.msra.mxu0 0.0
    %3123 = vmatprep.subr.mxu0 0.0
    %3124 = vmatpush1.msra.mxu0 0.0
    %3125 = vmatprep.subr.mxu0 0.0
    %3126 = vmatpush1.msra.mxu0 0.0
    %3127 = vmatprep.subr.mxu0 0.0
    %3128 = vmatpush1.msra.mxu0 0.0
    %3129 = vmatprep.subr.mxu0 0.0
    %3130 = vmatpush1.msra.mxu0 0.0
    %3131 = vmatprep.subr.mxu0 0.0
    %3132 = vmatpush1.msra.mxu0 0.0
    %3133 = vmatprep.subr.mxu0 0.0
    %3134 = vmatpush1.msra.mxu0 0.0
    %3135 = vmatprep.subr.mxu0 0.0
    %3136 = vmatpush1.msra.mxu0 0.0
    %3137 = vmatprep.subr.mxu0 0.0
    %3138 = vmatpush1.msra.mxu0 0.0
    %3139 = vmatprep.subr.mxu0 0.0
    %3140 = vmatpush1.msra.mxu0 0.0
    %3141 = vmatprep.subr.mxu0 0.0
    %3142 = vmatpush1.msra.mxu0 0.0
    %3143 = vmatprep.subr.mxu0 0.0
    %3144 = vmatpush1.msra.mxu0 0.0
    %3145 = vmatprep.subr.mxu0 0.0
    %3146 = vmatpush1.msra.mxu0 %v3025
    %3147 = vmatprep.subr.mxu0 0.0
    %3148 = vmatpush1.msra.mxu0 %v3024
    %3149 = vmatprep.subr.mxu0 0.0
    %3150 = vmatpush1.msra.mxu0 %v3023
    %3151 = vmatprep.subr.mxu0 0.0
    %3152 = vmatpush1.msra.mxu0 %v3022
    %3153 = vmatprep.subr.mxu0 0.0
    %3154 = vmatpush2.msra.mxu0 0.0
    %3155 = vmatprep.subr.mxu0 0.0
    %3156 = vmatpush2.msra.mxu0 0.0
    %3157 = vmatprep.subr.mxu0 0.0
    %3158 = vmatpush2.msra.mxu0 0.0
    %3159 = vmatprep.subr.mxu0 0.0
    %3160 = vmatpush2.msra.mxu0 0.0
    %3161 = vmatprep.subr.mxu0 0.0
    %3162 = vmatpush2.msra.mxu0 0.0
    %3163 = vmatprep.subr.mxu0 0.0
    %3164 = vmatpush2.msra.mxu0 0.0
    %3165 = vmatprep.subr.mxu0 0.0
    %3166 = vmatpush2.msra.mxu0 0.0
    %3167 = vmatprep.subr.mxu0 0.0
    %3168 = vmatpush2.msra.mxu0 0.0
    %3169 = vmatprep.subr.mxu0 0.0
    %3170 = vmatpush2.msra.mxu0 0.0
    %3171 = vmatprep.subr.mxu0 0.0
    %3172 = vmatpush2.msra.mxu0 0.0
    %3173 = vmatprep.subr.mxu0 0.0
    %3174 = vmatpush2.msra.mxu0 0.0
    %3175 = vmatprep.subr.mxu0 0.0
    %3176 = vmatpush2.msra.mxu0 0.0
    %3177 = vmatprep.subr.mxu0 0.0
    %3178 = vmatpush2.msra.mxu0 0.0
    %3179 = vmatprep.subr.mxu0 0.0
    %3180 = vmatpush2.msra.mxu0 0.0
    %3181 = vmatprep.subr.mxu0 0.0
    %3182 = vmatpush2.msra.mxu0 0.0
    %3183 = vmatprep.subr.mxu0 0.0
    %3184 = vmatpush2.msra.mxu0 0.0
    %3185 = vmatprep.mubr.f32.mxu0 0.0
    %3186 = vmatmul.mubr.f32.gmra.mxu0 %v2636
    %v3187 = vpop.f32.mrf.mxu0
    %v3188 = vadd.f32 %v3119, %v3187
    %v3189 = vpop.f32.mrf.mxu0
    %3190 = vmatprep.mubr.f32.mxu0 0.0
    %3191 = vmatmul.mubr.f32.gmra.mxu0 %v2638
    %v3192 = vpop.f32.mrf.mxu0
    %v3193 = vadd.f32 %v3119, %v3192
    %v3194 = vpop.f32.mrf.mxu0
    %3195 = vdwg.mxu0
    %v3196 = vadd.f32 %v3107, %v3188
    %v3197 = vadd.f32 %v3112, %v3193
    %v3198 = vxor.u32 %v3196, 2147483648
    %v3199 = vxor.u32 %v3197, 2147483648
    %v3200 = vmul.f32 %v3198, 1.442695
    %v3201 = vpow.pop %v3200
    %v3202 = vmul.f32 %v3199, 1.442695
    %v3203 = vpow.pop %v3202
    %v3204 = vadd.f32 %v3201, 1.0
    %v3205 = vadd.f32 %v3203, 1.0
    %v3206 = vrcp.pop %v3204
    %v3207 = vmul.f32 1.0, %v3206
    %v3208 = vrcp.pop %v3205
    %v3209 = vmul.f32 1.0, %v3208
    %3212 = vrot.lane.b32.xlu0 %v3188, 64
    %v3213 = vpop.permute.xlu0 %3212
    %3214 = vrot.lane.b32.xlu0 %v3193, 64
    %v3215 = vpop.permute.xlu0 %3214
    %v3218 = vmul.f32 %v3207, %v3213
    %v3219 = vmul.f32 %v3209, %v3215
    %3222 = vrot.lane.b32.xlu0 %v3218, 64
    %v3223 = vpop.permute.xlu0 %3222
    %3224 = vrot.lane.b32.xlu0 %v3219, 64
    %v3225 = vpop.permute.xlu0 %3224
    %v3228 = vadd.f32 %v3107, %v3223
    %v3229 = vadd.f32 %v3112, %v3225
    %v3230 = vtanh.pop %v3228
    %v3231 = vtanh.pop %v3229
    %v3232 = vsub.f32 1.0, %v3207
    %v3233 = vsub.f32 1.0, %v3209
    %3236 = vrot.lane.b32.xlu0 %v3230, 96
    %v3237 = vpop.permute.xlu0 %3236
    %3238 = vrot.lane.b32.xlu0 %v3231, 96
    %v3239 = vpop.permute.xlu0 %3238
    %v3242 = vmul.f32 %v3232, %v3237
    %v3243 = vmul.f32 %v3233, %v3239
    %v3244 = vmul.f32 %v3207, %v2618
    %v3245 = vmul.f32 %v3209, %v2619
    %v3246 = vadd.f32 %v3242, %v3244
    %v3247 = vadd.f32 %v3243, %v3245
    %v3248 = vmax.f32 %v3246, 0.0
    %v3249 = vmax.f32 %v3247, 0.0
    %3252 = vrot.lane.b32.xlu0 %v3248, 96
    %v3253 = vpop.permute.xlu0 %3252
    %3254 = vrot.lane.b32.xlu0 %v3249, 96
    %v3255 = vpop.permute.xlu0 %3254
    %v3258 = vsel %vm223, %v3253, 0.0
    %3259 = vadd.xlane.f32.xlu0 %v3258
    %v3260 = vpop.xlane.xlu0 %3259
    %v3261 = vsel %vm223, %v3255, 0.0
    %3262 = vadd.xlane.f32.xlu0 %v3261
    %v3263 = vpop.xlane.xlu0 %3262
    %v3264 = vrcp.pop 32.0
    %v3265 = vmul.f32 %v3260, %v3264
    %v3266 = vmul.f32 %v3263, %v3264
    %v3267 = vsub.f32 %v3248, %v3265
    %v3268 = vsub.f32 %v3249, %v3266
    %v3269 = vmul.f32 %v3267, %v3267
    %v3270 = vmul.f32 %v3268, %v3268
    %3273 = vrot.lane.b32.xlu0 %v3269, 96
    %v3274 = vpop.permute.xlu0 %3273
    %3275 = vrot.lane.b32.xlu0 %v3270, 96
    %v3276 = vpop.permute.xlu0 %3275
    %v3279 = vsel %vm223, %v3274, 0.0
    %3280 = vadd.xlane.f32.xlu0 %v3279
    %v3281 = vpop.xlane.xlu0 %3280
    %v3282 = vsel %vm223, %v3276, 0.0
    %3283 = vadd.xlane.f32.xlu0 %v3282
    %v3284 = vpop.xlane.xlu0 %3283
    %v3285 = vmul.f32 %v3281, %v3264
    %v3286 = vmul.f32 %v3284, %v3264
    %v3287 = vadd.f32 %v3285, 1e-05
    %v3288 = vadd.f32 %v3286, 1e-05
    %v3289 = vrsqrt.pop %v3287
    %v3290 = vrsqrt.pop %v3288
    %v3291 = vmul.f32 %v3267, %v3289
    %v3292 = vmul.f32 %v3268, %v3290
    %3295 = vrot.lane.b32.xlu0 %v3291, 96
    %v3296 = vpop.permute.xlu0 %3295
    %3297 = vrot.lane.b32.xlu0 %v3292, 96
    %v3298 = vpop.permute.xlu0 %3297
    %3301 = vst.msk [vmem:[#allocation2] sm:$0xff] %vm223, %v3296
    %3302 = vst.msk [vmem:[#allocation2 + $0x8] sm:$0xff] %vm223, %v3298
    // Predicated region
    $region94: #{encoder2d_forward.1} parent=1 // pred_check
      _
    $region95: #{encoder2d_forward.1} parent=1 // pred_check_branch
      %3304 = sbr.rel (0) target = $region97
    $region96: #{encoder2d_forward.1} parent=1 // pred_region
      %s3306 = ssub.s32 256, 256
      %3307 = vsyncadd [#allocation3], %s3306
      %s3308 = sshll.u32 [#allocation2], 4
      %s3309 = int_to_ptr.vmem [resolvable:$true] %s3308
      %3314 = dma.vmem_to_hbm [thread:$0]  %s3309, 256, %s23, [#allocation3], 128, 128, 8
    $region97: #{encoder2d_forward.1} parent=1 // pred_fallthru
      _
    // Predicated region
    $region98: #{encoder2d_forward.1} parent=1 // pred_check
      _
    $region99: #{encoder2d_forward.1} parent=1 // pred_check_branch
      %3316 = sbr.rel (0) target = $region101
    $region100: #{encoder2d_forward.1} parent=1 // pred_region
      %3317 = dma.done [#allocation3], 256
    $region101: #{encoder2d_forward.1} parent=1 // pred_fallthru
      _
    %3318 = vsyncpa [#allocation3], 1

</llo_original>
